<compile_context>
chip_gen: v6e
topology: v6e:2x2x1
jax: 0.10.0
libtpu: 0.0.40
codegen_flags: <defaults>
</compile_context>

<pallas_src>
import functools

import jax
import jax.numpy as jnp
from jax import lax
from jax.experimental import pallas as pl
from jax.experimental.pallas import tpu as pltpu


def _down_dc_kernel(xp_ref, w1_ref, w2_ref, g1_ref, be1_ref, g2_ref, be2_ref,
                    m1_ref, o_ref, *, ws, inv1, inv2):
    """[conv3x3 -> BN -> ReLU] x2 on a pooled, frame-flat, lane-dense layout.

    xp_ref : (C_in, Lpad)      pooled + circular-H + zero-W padded frames + zero frame tail
    w1_ref : (9, C_out, C_in)  conv1 tap weights, tap order (dy, dx)
    w2_ref : (9, C_out, C_out) conv2 tap weights
    g*/be* : (C_out, 1)        BatchNorm affine parameters
    m1_ref : (1, Lw1) f32      1.0 at valid conv1 output lanes, else 0.0
    o_ref  : (C_out, L)        output in frame-flat layout (wrapper crops to NCHW)
    """
    l = o_ref.shape[1]          # N * Hs * Ws
    lw1 = m1_ref.shape[1]       # l + E, E = 2*ws + 2
    eps = 1e-5

    # ---- conv1: 9 tap matmuls accumulated (no im2col scratch, no patch stores) ------
    # A 3x3 tap (dy, dx) is a static lane shift of dy*ws + dx inside a frame; lanes that
    # would read across a frame boundary only pollute positions that are masked out of
    # the BN statistics and cropped by the wrapper, never the valid outputs.
    y1 = None
    for dy in range(3):
        for dx in range(3):
            t = dy * 3 + dx
            k = dy * ws + dx
            part = jnp.dot(w1_ref[t], xp_ref[:, k:k + lw1],
                           preferred_element_type=jnp.float32)       # (C_out, Lw1)
            y1 = part if y1 is None else y1 + part

    # ---- BatchNorm1: one-pass masked stats (E[y], E[y^2]) + folded affine + ReLU ----
    m1 = m1_ref[...]                                                 # (1, Lw1)
    y1m = y1 * m1
    mean1 = jnp.sum(y1m, axis=1, keepdims=True) * inv1               # (C_out, 1)
    ex2_1 = jnp.sum(y1m * y1, axis=1, keepdims=True) * inv1
    var1 = jnp.maximum(ex2_1 - mean1 * mean1, 0.0)
    scale1 = lax.rsqrt(var1 + eps) * g1_ref[...]
    shift1 = be1_ref[...] - mean1 * scale1
    a1 = jnp.maximum(y1 * scale1 + shift1, 0.0)                      # (C_out, Lw1)

    # ---- conv2: same 9-tap accumulate -------------------------------------------------
    y2 = None
    for dy in range(3):
        for dx in range(3):
            t = dy * 3 + dx
            k = dy * ws + dx
            part = jnp.dot(w2_ref[t], a1[:, k:k + l],
                           preferred_element_type=jnp.float32)       # (C_out, L)
            y2 = part if y2 is None else y2 + part

    # ---- BatchNorm2 (mask derived from mask1), ReLU, single dense lane-wide store ----
    # valid2(h, w) = valid1(h, w+2) * valid1(h+2, w)  ==  m1[i+2] * m1[i+2*ws]
    m2 = m1[:, 2:2 + l] * m1[:, 2 * ws:2 * ws + l]                   # (1, L)
    y2m = y2 * m2
    mean2 = jnp.sum(y2m, axis=1, keepdims=True) * inv2
    ex2_2 = jnp.sum(y2m * y2, axis=1, keepdims=True) * inv2
    var2 = jnp.maximum(ex2_2 - mean2 * mean2, 0.0)
    scale2 = lax.rsqrt(var2 + eps) * g2_ref[...]
    shift2 = be2_ref[...] - mean2 * scale2
    o_ref[...] = jnp.maximum(y2 * scale2 + shift2, 0.0)


def down_dc_forward(x, params, seidel=None):
    """Down_DC.forward(x, seidel), non-seidel branch (seidel is unused there)."""
    del seidel
    w1, b1, g1, be1, w2, b2, g2, be2 = params
    del b1, b2  # cancelled exactly by the training-mode BatchNorm mean subtraction

    N, C_in, H, W = x.shape
    C_out = w1.shape[0]
    Hh, Wh = H // 2, W // 2          # after MaxPool2d(2)
    Hs, Ws = Hh + 4, Wh + 4          # frame size (circular H pad 2, zero W pad 2)
    H1, W1 = Hh + 2, Wh + 2          # after first valid 3x3 conv
    H2, W2 = Hh, Wh                  # after second valid 3x3 conv
    F = Hs * Ws                      # lanes per frame
    L = N * F                        # flat frame length
    E = 2 * Ws + 2                   # largest tap offset (dy=dx=2); note F >= 2*E always
    Lw1 = L + E                      # conv1 output lanes (conv2 reads up to L-1+E)
    Lpad = (N + 1) * F               # one extra zero frame covers the <= 2*E lane tail

    # ---- wrapper: pool once in XLA, then layout plumbing with a single pad ----------
    xp = x.reshape(N, C_in, Hh, 2, Wh, 2).max(axis=(3, 5))             # MaxPool2d(2)
    xp = jnp.concatenate([xp[:, :, -2:, :], xp, xp[:, :, :2, :]], axis=2)  # circular H pad
    xp = xp.transpose(1, 0, 2, 3)                                       # (C_in, N, Hs, Wh)
    xp = jnp.pad(xp, ((0, 0), (0, 1), (0, 0), (2, 2)))                   # W pad + zero tail frame
    xp = xp.reshape(C_in, Lpad)

    # Tap-ordered weight stacks: w_taps[dy*3+dx] = w[:, :, dy, dx]  (biases dropped).
    w1t = w1.transpose(2, 3, 0, 1).reshape(9, C_out, C_in)
    w2t = w2.transpose(2, 3, 0, 1).reshape(9, C_out, C_out)

    # BN affine parameters as (C_out, 1) columns.
    g1c, be1c = g1.reshape(C_out, 1), be1.reshape(C_out, 1)
    g2c, be2c = g2.reshape(C_out, 1), be2.reshape(C_out, 1)

    # Conv1 validity mask (conv2 mask is derived from it inside the kernel).
    hi = jnp.arange(Hs)[:, None]
    wi = jnp.arange(Ws)[None, :]
    v1 = ((hi < H1) & (wi < W1)).astype(jnp.float32).reshape(-1)         # (F,)
    mask1 = jnp.pad(jnp.tile(v1, N), (0, E)).reshape(1, Lw1)

    vmem = pl.BlockSpec(memory_space=pltpu.MemorySpace.VMEM)
    kernel = functools.partial(_down_dc_kernel, ws=Ws,
                               inv1=1.0 / float(N * H1 * W1),
                               inv2=1.0 / float(N * H2 * W2))

    flops = 2 * 9 * C_out * C_in * Lw1 + 2 * 9 * C_out * C_out * L
    bytes_inout = 4 * (C_in * Lpad + 9 * C_out * (C_in + C_out) + 4 * C_out
                       + Lw1 + C_out * L)
    # VMEM budget: inputs + output + ~3 live (C_out, Lw1) f32 temporaries (y, a, masked y)
    bytes_live = 4 * 3 * C_out * Lw1
    vmem_limit = int(min(max(2 * (bytes_inout + bytes_live), 16 << 20), 64 << 20))

    # Single grid point: launch/latency bound at these sizes (see TODO about tiling).
    out_flat = pl.pallas_call(
        kernel,
        out_shape=jax.ShapeDtypeStruct((C_out, L), jnp.float32),
        in_specs=[vmem] * 8,
        out_specs=vmem,
        compiler_params=pltpu.CompilerParams(vmem_limit_bytes=vmem_limit),
        cost_estimate=pl.CostEstimate(flops=flops, transcendentals=2 * C_out,
                                      bytes_accessed=bytes_inout),
    )(xp, w1t, w2t, g1c, be1c, g2c, be2c, mask1)

    # Crop the valid frame region and go back to NCHW.
    out = out_flat.reshape(C_out, N, Hs, Ws)[:, :, :H2, :W2].transpose(1, 0, 2, 3)
    return out


# ---------------- pure-JAX reference (for correctness check) --------------------------
def _bn_relu_ref(y, gamma, beta):
    mean = jnp.mean(y, axis=(0, 2, 3), keepdims=True)
    var = jnp.mean((y - mean) ** 2, axis=(0, 2, 3), keepdims=True)
    z = (y - mean) * lax.rsqrt(var + 1e-5)
    return jnp.maximum(z * gamma[None, :, None, None] + beta[None, :, None, None], 0.0)


def reference_forward(x, params):
    w1, b1, g1, be1, w2, b2, g2, be2 = params
    N, C, H, W = x.shape
    y = x.reshape(N, C, H // 2, 2, W // 2, 2).max(axis=(3, 5))          # MaxPool2d(2)
    y = jnp.concatenate([y[:, :, -2:, :], y, y[:, :, :2, :]], axis=2)    # circular H pad
    y = jnp.pad(y, ((0, 0), (0, 0), (0, 0), (2, 2)))                     # zero W pad
    dn = ('NCHW', 'OIHW', 'NCHW')
    hp = lax.Precision.HIGHEST
    y = lax.conv_general_dilated(y, w1, (1, 1), 'VALID', dimension_numbers=dn,
                                 precision=hp) + b1[None, :, None, None]
    y = _bn_relu_ref(y, g1, be1)
    y = lax.conv_general_dilated(y, w2, (1, 1), 'VALID', dimension_numbers=dn,
                                 precision=hp) + b2[None, :, None, None]
    y = _bn_relu_ref(y, g2, be2)
    return y


if __name__ == "__main__":
    N, C_in, C_out, H, W = 2, 4, 8, 16, 16

    key = jax.random.PRNGKey(0)
    ks = jax.random.split(key, 9)
    x = jax.random.normal(ks[0], (N, C_in, H, W), jnp.float32)

    # Deterministic synthetic parameters (torch Conv2d OIHW weight layout).
    w1 = jax.random.normal(ks[1], (C_out, C_in, 3, 3), jnp.float32) * 0.2
    b1 = jax.random.normal(ks[2], (C_out,), jnp.float32) * 0.1
    w2 = jax.random.normal(ks[3], (C_out, C_out, 3, 3), jnp.float32) * 0.2
    b2 = jax.random.normal(ks[4], (C_out,), jnp.float32) * 0.1
    g1 = 1.0 + 0.1 * jax.random.normal(ks[5], (C_out,), jnp.float32)
    be1 = 0.1 * jax.random.normal(ks[6], (C_out,), jnp.float32)
    g2 = 1.0 + 0.1 * jax.random.normal(ks[7], (C_out,), jnp.float32)
    be2 = 0.1 * jax.random.normal(ks[8], (C_out,), jnp.float32)
    params = (w1, b1, g1, be1, w2, b2, g2, be2)
    seidel = jnp.zeros((N, 6), jnp.float32)     # ignored by the non-seidel branch

    out = jax.jit(down_dc_forward)(x, params, seidel)
    out = jax.block_until_ready(out)

    ref = reference_forward(x, params)
    assert out.shape == (N, C_out, H // 2, W // 2), out.shape
    max_err = float(jnp.max(jnp.abs(out - ref)))
    assert jnp.allclose(out, ref, atol=5e-3, rtol=5e-3), max_err
    print("KERNEL_OK")
</pallas_src>

<mosaic_0001>
module attributes {stable_mosaic.version = 11 : i64} {
  func.func @_down_dc_kernel(%arg0: memref<4x432xf32, #tpu.memory_space<vmem>>, %arg1: memref<9x8x4xf32, #tpu.memory_space<vmem>>, %arg2: memref<9x8x8xf32, #tpu.memory_space<vmem>>, %arg3: memref<8x1xf32, #tpu.memory_space<vmem>>, %arg4: memref<8x1xf32, #tpu.memory_space<vmem>>, %arg5: memref<8x1xf32, #tpu.memory_space<vmem>>, %arg6: memref<8x1xf32, #tpu.memory_space<vmem>>, %arg7: memref<1x314xf32, #tpu.memory_space<vmem>>, %arg8: memref<8x288xf32, #tpu.memory_space<vmem>>) attributes {dimension_semantics = [], scalar_prefetch = 0 : i64, scratch_operands = 0 : i64, tpu.core_type = #tpu.core_type<tc>} {
    %c0 = arith.constant 0 : index
    %c0_0 = arith.constant 0 : index
    %c0_1 = arith.constant 0 : index
    %0 = vector.load %arg1[%c0, %c0_0, %c0_1] : memref<9x8x4xf32, #tpu.memory_space<vmem>>, vector<1x8x4xf32>
    %1 = vector.shape_cast %0 : vector<1x8x4xf32> to vector<8x4xf32>
    %c0_2 = arith.constant 0 : index
    %c0_3 = arith.constant 0 : index
    %2 = vector.load %arg0[%c0_2, %c0_3] : memref<4x432xf32, #tpu.memory_space<vmem>>, vector<4x314xf32>
    %cst = arith.constant dense<0.000000e+00> : vector<8x314xf32>
    %3 = tpu.matmul %1, %2, %cst {dimension_numbers = #tpu.dot_dimension_numbers<[1], [0], [0], [1], [0, 0, 1, 1], [], []>} : vector<8x4xf32>, vector<4x314xf32>, vector<8x314xf32> -> vector<8x314xf32>
    %c1 = arith.constant 1 : index
    %c0_4 = arith.constant 0 : index
    %c0_5 = arith.constant 0 : index
    %4 = vector.load %arg1[%c1, %c0_4, %c0_5] : memref<9x8x4xf32, #tpu.memory_space<vmem>>, vector<1x8x4xf32>
    %5 = vector.shape_cast %4 : vector<1x8x4xf32> to vector<8x4xf32>
    %c0_6 = arith.constant 0 : index
    %c1_7 = arith.constant 1 : index
    %6 = vector.load %arg0[%c0_6, %c1_7] : memref<4x432xf32, #tpu.memory_space<vmem>>, vector<4x314xf32>
    %cst_8 = arith.constant dense<0.000000e+00> : vector<8x314xf32>
    %7 = tpu.matmul %5, %6, %cst_8 {dimension_numbers = #tpu.dot_dimension_numbers<[1], [0], [0], [1], [0, 0, 1, 1], [], []>} : vector<8x4xf32>, vector<4x314xf32>, vector<8x314xf32> -> vector<8x314xf32>
    %8 = arith.addf %3, %7 : vector<8x314xf32>
    %c2 = arith.constant 2 : index
    %c0_9 = arith.constant 0 : index
    %c0_10 = arith.constant 0 : index
    %9 = vector.load %arg1[%c2, %c0_9, %c0_10] : memref<9x8x4xf32, #tpu.memory_space<vmem>>, vector<1x8x4xf32>
    %10 = vector.shape_cast %9 : vector<1x8x4xf32> to vector<8x4xf32>
    %c0_11 = arith.constant 0 : index
    %c2_12 = arith.constant 2 : index
    %11 = vector.load %arg0[%c0_11, %c2_12] : memref<4x432xf32, #tpu.memory_space<vmem>>, vector<4x314xf32>
    %cst_13 = arith.constant dense<0.000000e+00> : vector<8x314xf32>
    %12 = tpu.matmul %10, %11, %cst_13 {dimension_numbers = #tpu.dot_dimension_numbers<[1], [0], [0], [1], [0, 0, 1, 1], [], []>} : vector<8x4xf32>, vector<4x314xf32>, vector<8x314xf32> -> vector<8x314xf32>
    %13 = arith.addf %8, %12 : vector<8x314xf32>
    %c3 = arith.constant 3 : index
    %c0_14 = arith.constant 0 : index
    %c0_15 = arith.constant 0 : index
    %14 = vector.load %arg1[%c3, %c0_14, %c0_15] : memref<9x8x4xf32, #tpu.memory_space<vmem>>, vector<1x8x4xf32>
    %15 = vector.shape_cast %14 : vector<1x8x4xf32> to vector<8x4xf32>
    %c0_16 = arith.constant 0 : index
    %c12 = arith.constant 12 : index
    %16 = vector.load %arg0[%c0_16, %c12] : memref<4x432xf32, #tpu.memory_space<vmem>>, vector<4x314xf32>
    %cst_17 = arith.constant dense<0.000000e+00> : vector<8x314xf32>
    %17 = tpu.matmul %15, %16, %cst_17 {dimension_numbers = #tpu.dot_dimension_numbers<[1], [0], [0], [1], [0, 0, 1, 1], [], []>} : vector<8x4xf32>, vector<4x314xf32>, vector<8x314xf32> -> vector<8x314xf32>
    %18 = arith.addf %13, %17 : vector<8x314xf32>
    %c4 = arith.constant 4 : index
    %c0_18 = arith.constant 0 : index
    %c0_19 = arith.constant 0 : index
    %19 = vector.load %arg1[%c4, %c0_18, %c0_19] : memref<9x8x4xf32, #tpu.memory_space<vmem>>, vector<1x8x4xf32>
    %20 = vector.shape_cast %19 : vector<1x8x4xf32> to vector<8x4xf32>
    %c0_20 = arith.constant 0 : index
    %c13 = arith.constant 13 : index
    %21 = vector.load %arg0[%c0_20, %c13] : memref<4x432xf32, #tpu.memory_space<vmem>>, vector<4x314xf32>
    %cst_21 = arith.constant dense<0.000000e+00> : vector<8x314xf32>
    %22 = tpu.matmul %20, %21, %cst_21 {dimension_numbers = #tpu.dot_dimension_numbers<[1], [0], [0], [1], [0, 0, 1, 1], [], []>} : vector<8x4xf32>, vector<4x314xf32>, vector<8x314xf32> -> vector<8x314xf32>
    %23 = arith.addf %18, %22 : vector<8x314xf32>
    %c5 = arith.constant 5 : index
    %c0_22 = arith.constant 0 : index
    %c0_23 = arith.constant 0 : index
    %24 = vector.load %arg1[%c5, %c0_22, %c0_23] : memref<9x8x4xf32, #tpu.memory_space<vmem>>, vector<1x8x4xf32>
    %25 = vector.shape_cast %24 : vector<1x8x4xf32> to vector<8x4xf32>
    %c0_24 = arith.constant 0 : index
    %c14 = arith.constant 14 : index
    %26 = vector.load %arg0[%c0_24, %c14] : memref<4x432xf32, #tpu.memory_space<vmem>>, vector<4x314xf32>
    %cst_25 = arith.constant dense<0.000000e+00> : vector<8x314xf32>
    %27 = tpu.matmul %25, %26, %cst_25 {dimension_numbers = #tpu.dot_dimension_numbers<[1], [0], [0], [1], [0, 0, 1, 1], [], []>} : vector<8x4xf32>, vector<4x314xf32>, vector<8x314xf32> -> vector<8x314xf32>
    %28 = arith.addf %23, %27 : vector<8x314xf32>
    %c6 = arith.constant 6 : index
    %c0_26 = arith.constant 0 : index
    %c0_27 = arith.constant 0 : index
    %29 = vector.load %arg1[%c6, %c0_26, %c0_27] : memref<9x8x4xf32, #tpu.memory_space<vmem>>, vector<1x8x4xf32>
    %30 = vector.shape_cast %29 : vector<1x8x4xf32> to vector<8x4xf32>
    %c0_28 = arith.constant 0 : index
    %c24 = arith.constant 24 : index
    %31 = vector.load %arg0[%c0_28, %c24] : memref<4x432xf32, #tpu.memory_space<vmem>>, vector<4x314xf32>
    %cst_29 = arith.constant dense<0.000000e+00> : vector<8x314xf32>
    %32 = tpu.matmul %30, %31, %cst_29 {dimension_numbers = #tpu.dot_dimension_numbers<[1], [0], [0], [1], [0, 0, 1, 1], [], []>} : vector<8x4xf32>, vector<4x314xf32>, vector<8x314xf32> -> vector<8x314xf32>
    %33 = arith.addf %28, %32 : vector<8x314xf32>
    %c7 = arith.constant 7 : index
    %c0_30 = arith.constant 0 : index
    %c0_31 = arith.constant 0 : index
    %34 = vector.load %arg1[%c7, %c0_30, %c0_31] : memref<9x8x4xf32, #tpu.memory_space<vmem>>, vector<1x8x4xf32>
    %35 = vector.shape_cast %34 : vector<1x8x4xf32> to vector<8x4xf32>
    %c0_32 = arith.constant 0 : index
    %c25 = arith.constant 25 : index
    %36 = vector.load %arg0[%c0_32, %c25] : memref<4x432xf32, #tpu.memory_space<vmem>>, vector<4x314xf32>
    %cst_33 = arith.constant dense<0.000000e+00> : vector<8x314xf32>
    %37 = tpu.matmul %35, %36, %cst_33 {dimension_numbers = #tpu.dot_dimension_numbers<[1], [0], [0], [1], [0, 0, 1, 1], [], []>} : vector<8x4xf32>, vector<4x314xf32>, vector<8x314xf32> -> vector<8x314xf32>
    %38 = arith.addf %33, %37 : vector<8x314xf32>
    %c8 = arith.constant 8 : index
    %c0_34 = arith.constant 0 : index
    %c0_35 = arith.constant 0 : index
    %39 = vector.load %arg1[%c8, %c0_34, %c0_35] : memref<9x8x4xf32, #tpu.memory_space<vmem>>, vector<1x8x4xf32>
    %40 = vector.shape_cast %39 : vector<1x8x4xf32> to vector<8x4xf32>
    %c0_36 = arith.constant 0 : index
    %c26 = arith.constant 26 : index
    %41 = vector.load %arg0[%c0_36, %c26] : memref<4x432xf32, #tpu.memory_space<vmem>>, vector<4x314xf32>
    %cst_37 = arith.constant dense<0.000000e+00> : vector<8x314xf32>
    %42 = tpu.matmul %40, %41, %cst_37 {dimension_numbers = #tpu.dot_dimension_numbers<[1], [0], [0], [1], [0, 0, 1, 1], [], []>} : vector<8x4xf32>, vector<4x314xf32>, vector<8x314xf32> -> vector<8x314xf32>
    %43 = arith.addf %38, %42 : vector<8x314xf32>
    %c0_38 = arith.constant 0 : index
    %c0_39 = arith.constant 0 : index
    %44 = vector.load %arg7[%c0_38, %c0_39] : memref<1x314xf32, #tpu.memory_space<vmem>>, vector<1x314xf32>
    %45 = vector.broadcast %44 : vector<1x314xf32> to vector<8x314xf32>
    %46 = arith.mulf %43, %45 : vector<8x314xf32>
    %cst_40 = arith.constant dense<0.000000e+00> : vector<8xf32>
    %47 = vector.multi_reduction <add>, %46, %cst_40 [1] : vector<8x314xf32> to vector<8xf32>
    %48 = vector.shape_cast %47 : vector<8xf32> to vector<8x1xf32>
    %cst_41 = arith.constant 5.000000e-03 : f32
    %49 = vector.broadcast %cst_41 : f32 to vector<8x1xf32>
    %50 = arith.mulf %48, %49 : vector<8x1xf32>
    %51 = arith.mulf %46, %43 : vector<8x314xf32>
    %cst_42 = arith.constant dense<0.000000e+00> : vector<8xf32>
    %52 = vector.multi_reduction <add>, %51, %cst_42 [1] : vector<8x314xf32> to vector<8xf32>
    %53 = vector.shape_cast %52 : vector<8xf32> to vector<8x1xf32>
    %cst_43 = arith.constant 5.000000e-03 : f32
    %54 = vector.broadcast %cst_43 : f32 to vector<8x1xf32>
    %55 = arith.mulf %53, %54 : vector<8x1xf32>
    %56 = arith.mulf %50, %50 : vector<8x1xf32>
    %57 = arith.subf %55, %56 : vector<8x1xf32>
    %cst_44 = arith.constant 0.000000e+00 : f32
    %58 = vector.broadcast %cst_44 : f32 to vector<8x1xf32>
    %59 = arith.maximumf %57, %58 : vector<8x1xf32>
    %cst_45 = arith.constant 9.99999974E-6 : f32
    %60 = vector.broadcast %cst_45 : f32 to vector<8x1xf32>
    %61 = arith.addf %59, %60 : vector<8x1xf32>
    %62 = math.rsqrt %61 : vector<8x1xf32>
    %c0_46 = arith.constant 0 : index
    %c0_47 = arith.constant 0 : index
    %63 = vector.load %arg3[%c0_46, %c0_47] : memref<8x1xf32, #tpu.memory_space<vmem>>, vector<8x1xf32>
    %64 = arith.mulf %62, %63 : vector<8x1xf32>
    %c0_48 = arith.constant 0 : index
    %c0_49 = arith.constant 0 : index
    %65 = vector.load %arg4[%c0_48, %c0_49] : memref<8x1xf32, #tpu.memory_space<vmem>>, vector<8x1xf32>
    %66 = arith.mulf %50, %64 : vector<8x1xf32>
    %67 = arith.subf %65, %66 : vector<8x1xf32>
    %68 = vector.broadcast %64 : vector<8x1xf32> to vector<8x314xf32>
    %69 = arith.mulf %43, %68 : vector<8x314xf32>
    %70 = vector.broadcast %67 : vector<8x1xf32> to vector<8x314xf32>
    %71 = arith.addf %69, %70 : vector<8x314xf32>
    %cst_50 = arith.constant 0.000000e+00 : f32
    %72 = vector.broadcast %cst_50 : f32 to vector<8x314xf32>
    %73 = arith.maximumf %71, %72 : vector<8x314xf32>
    %c0_51 = arith.constant 0 : index
    %c0_52 = arith.constant 0 : index
    %c0_53 = arith.constant 0 : index
    %74 = vector.load %arg2[%c0_51, %c0_52, %c0_53] : memref<9x8x8xf32, #tpu.memory_space<vmem>>, vector<1x8x8xf32>
    %75 = vector.shape_cast %74 : vector<1x8x8xf32> to vector<8x8xf32>
    %76 = vector.extract_strided_slice %73 {offsets = [0, 0], sizes = [8, 288], strides = [1, 1]} : vector<8x314xf32> to vector<8x288xf32>
    %cst_54 = arith.constant dense<0.000000e+00> : vector<8x288xf32>
    %77 = tpu.matmul %75, %76, %cst_54 {dimension_numbers = #tpu.dot_dimension_numbers<[1], [0], [0], [1], [0, 0, 1, 1], [], []>} : vector<8x8xf32>, vector<8x288xf32>, vector<8x288xf32> -> vector<8x288xf32>
    %c1_55 = arith.constant 1 : index
    %c0_56 = arith.constant 0 : index
    %c0_57 = arith.constant 0 : index
    %78 = vector.load %arg2[%c1_55, %c0_56, %c0_57] : memref<9x8x8xf32, #tpu.memory_space<vmem>>, vector<1x8x8xf32>
    %79 = vector.shape_cast %78 : vector<1x8x8xf32> to vector<8x8xf32>
    %80 = vector.extract_strided_slice %73 {offsets = [0, 1], sizes = [8, 288], strides = [1, 1]} : vector<8x314xf32> to vector<8x288xf32>
    %cst_58 = arith.constant dense<0.000000e+00> : vector<8x288xf32>
    %81 = tpu.matmul %79, %80, %cst_58 {dimension_numbers = #tpu.dot_dimension_numbers<[1], [0], [0], [1], [0, 0, 1, 1], [], []>} : vector<8x8xf32>, vector<8x288xf32>, vector<8x288xf32> -> vector<8x288xf32>
    %82 = arith.addf %77, %81 : vector<8x288xf32>
    %c2_59 = arith.constant 2 : index
    %c0_60 = arith.constant 0 : index
    %c0_61 = arith.constant 0 : index
    %83 = vector.load %arg2[%c2_59, %c0_60, %c0_61] : memref<9x8x8xf32, #tpu.memory_space<vmem>>, vector<1x8x8xf32>
    %84 = vector.shape_cast %83 : vector<1x8x8xf32> to vector<8x8xf32>
    %85 = vector.extract_strided_slice %73 {offsets = [0, 2], sizes = [8, 288], strides = [1, 1]} : vector<8x314xf32> to vector<8x288xf32>
    %cst_62 = arith.constant dense<0.000000e+00> : vector<8x288xf32>
    %86 = tpu.matmul %84, %85, %cst_62 {dimension_numbers = #tpu.dot_dimension_numbers<[1], [0], [0], [1], [0, 0, 1, 1], [], []>} : vector<8x8xf32>, vector<8x288xf32>, vector<8x288xf32> -> vector<8x288xf32>
    %87 = arith.addf %82, %86 : vector<8x288xf32>
    %c3_63 = arith.constant 3 : index
    %c0_64 = arith.constant 0 : index
    %c0_65 = arith.constant 0 : index
    %88 = vector.load %arg2[%c3_63, %c0_64, %c0_65] : memref<9x8x8xf32, #tpu.memory_space<vmem>>, vector<1x8x8xf32>
    %89 = vector.shape_cast %88 : vector<1x8x8xf32> to vector<8x8xf32>
    %90 = vector.extract_strided_slice %73 {offsets = [0, 12], sizes = [8, 288], strides = [1, 1]} : vector<8x314xf32> to vector<8x288xf32>
    %cst_66 = arith.constant dense<0.000000e+00> : vector<8x288xf32>
    %91 = tpu.matmul %89, %90, %cst_66 {dimension_numbers = #tpu.dot_dimension_numbers<[1], [0], [0], [1], [0, 0, 1, 1], [], []>} : vector<8x8xf32>, vector<8x288xf32>, vector<8x288xf32> -> vector<8x288xf32>
    %92 = arith.addf %87, %91 : vector<8x288xf32>
    %c4_67 = arith.constant 4 : index
    %c0_68 = arith.constant 0 : index
    %c0_69 = arith.constant 0 : index
    %93 = vector.load %arg2[%c4_67, %c0_68, %c0_69] : memref<9x8x8xf32, #tpu.memory_space<vmem>>, vector<1x8x8xf32>
    %94 = vector.shape_cast %93 : vector<1x8x8xf32> to vector<8x8xf32>
    %95 = vector.extract_strided_slice %73 {offsets = [0, 13], sizes = [8, 288], strides = [1, 1]} : vector<8x314xf32> to vector<8x288xf32>
    %cst_70 = arith.constant dense<0.000000e+00> : vector<8x288xf32>
    %96 = tpu.matmul %94, %95, %cst_70 {dimension_numbers = #tpu.dot_dimension_numbers<[1], [0], [0], [1], [0, 0, 1, 1], [], []>} : vector<8x8xf32>, vector<8x288xf32>, vector<8x288xf32> -> vector<8x288xf32>
    %97 = arith.addf %92, %96 : vector<8x288xf32>
    %c5_71 = arith.constant 5 : index
    %c0_72 = arith.constant 0 : index
    %c0_73 = arith.constant 0 : index
    %98 = vector.load %arg2[%c5_71, %c0_72, %c0_73] : memref<9x8x8xf32, #tpu.memory_space<vmem>>, vector<1x8x8xf32>
    %99 = vector.shape_cast %98 : vector<1x8x8xf32> to vector<8x8xf32>
    %100 = vector.extract_strided_slice %73 {offsets = [0, 14], sizes = [8, 288], strides = [1, 1]} : vector<8x314xf32> to vector<8x288xf32>
    %cst_74 = arith.constant dense<0.000000e+00> : vector<8x288xf32>
    %101 = tpu.matmul %99, %100, %cst_74 {dimension_numbers = #tpu.dot_dimension_numbers<[1], [0], [0], [1], [0, 0, 1, 1], [], []>} : vector<8x8xf32>, vector<8x288xf32>, vector<8x288xf32> -> vector<8x288xf32>
    %102 = arith.addf %97, %101 : vector<8x288xf32>
    %c6_75 = arith.constant 6 : index
    %c0_76 = arith.constant 0 : index
    %c0_77 = arith.constant 0 : index
    %103 = vector.load %arg2[%c6_75, %c0_76, %c0_77] : memref<9x8x8xf32, #tpu.memory_space<vmem>>, vector<1x8x8xf32>
    %104 = vector.shape_cast %103 : vector<1x8x8xf32> to vector<8x8xf32>
    %105 = vector.extract_strided_slice %73 {offsets = [0, 24], sizes = [8, 288], strides = [1, 1]} : vector<8x314xf32> to vector<8x288xf32>
    %cst_78 = arith.constant dense<0.000000e+00> : vector<8x288xf32>
    %106 = tpu.matmul %104, %105, %cst_78 {dimension_numbers = #tpu.dot_dimension_numbers<[1], [0], [0], [1], [0, 0, 1, 1], [], []>} : vector<8x8xf32>, vector<8x288xf32>, vector<8x288xf32> -> vector<8x288xf32>
    %107 = arith.addf %102, %106 : vector<8x288xf32>
    %c7_79 = arith.constant 7 : index
    %c0_80 = arith.constant 0 : index
    %c0_81 = arith.constant 0 : index
    %108 = vector.load %arg2[%c7_79, %c0_80, %c0_81] : memref<9x8x8xf32, #tpu.memory_space<vmem>>, vector<1x8x8xf32>
    %109 = vector.shape_cast %108 : vector<1x8x8xf32> to vector<8x8xf32>
    %110 = vector.extract_strided_slice %73 {offsets = [0, 25], sizes = [8, 288], strides = [1, 1]} : vector<8x314xf32> to vector<8x288xf32>
    %cst_82 = arith.constant dense<0.000000e+00> : vector<8x288xf32>
    %111 = tpu.matmul %109, %110, %cst_82 {dimension_numbers = #tpu.dot_dimension_numbers<[1], [0], [0], [1], [0, 0, 1, 1], [], []>} : vector<8x8xf32>, vector<8x288xf32>, vector<8x288xf32> -> vector<8x288xf32>
    %112 = arith.addf %107, %111 : vector<8x288xf32>
    %c8_83 = arith.constant 8 : index
    %c0_84 = arith.constant 0 : index
    %c0_85 = arith.constant 0 : index
    %113 = vector.load %arg2[%c8_83, %c0_84, %c0_85] : memref<9x8x8xf32, #tpu.memory_space<vmem>>, vector<1x8x8xf32>
    %114 = vector.shape_cast %113 : vector<1x8x8xf32> to vector<8x8xf32>
    %115 = vector.extract_strided_slice %73 {offsets = [0, 26], sizes = [8, 288], strides = [1, 1]} : vector<8x314xf32> to vector<8x288xf32>
    %cst_86 = arith.constant dense<0.000000e+00> : vector<8x288xf32>
    %116 = tpu.matmul %114, %115, %cst_86 {dimension_numbers = #tpu.dot_dimension_numbers<[1], [0], [0], [1], [0, 0, 1, 1], [], []>} : vector<8x8xf32>, vector<8x288xf32>, vector<8x288xf32> -> vector<8x288xf32>
    %117 = arith.addf %112, %116 : vector<8x288xf32>
    %118 = vector.extract_strided_slice %44 {offsets = [0, 2], sizes = [1, 288], strides = [1, 1]} : vector<1x314xf32> to vector<1x288xf32>
    %119 = vector.extract_strided_slice %44 {offsets = [0, 24], sizes = [1, 288], strides = [1, 1]} : vector<1x314xf32> to vector<1x288xf32>
    %120 = arith.mulf %118, %119 : vector<1x288xf32>
    %121 = vector.broadcast %120 : vector<1x288xf32> to vector<8x288xf32>
    %122 = arith.mulf %117, %121 : vector<8x288xf32>
    %cst_87 = arith.constant dense<0.000000e+00> : vector<8xf32>
    %123 = vector.multi_reduction <add>, %122, %cst_87 [1] : vector<8x288xf32> to vector<8xf32>
    %124 = vector.shape_cast %123 : vector<8xf32> to vector<8x1xf32>
    %cst_88 = arith.constant 7.812500e-03 : f32
    %125 = vector.broadcast %cst_88 : f32 to vector<8x1xf32>
    %126 = arith.mulf %124, %125 : vector<8x1xf32>
    %127 = arith.mulf %122, %117 : vector<8x288xf32>
    %cst_89 = arith.constant dense<0.000000e+00> : vector<8xf32>
    %128 = vector.multi_reduction <add>, %127, %cst_89 [1] : vector<8x288xf32> to vector<8xf32>
    %129 = vector.shape_cast %128 : vector<8xf32> to vector<8x1xf32>
    %cst_90 = arith.constant 7.812500e-03 : f32
    %130 = vector.broadcast %cst_90 : f32 to vector<8x1xf32>
    %131 = arith.mulf %129, %130 : vector<8x1xf32>
    %132 = arith.mulf %126, %126 : vector<8x1xf32>
    %133 = arith.subf %131, %132 : vector<8x1xf32>
    %cst_91 = arith.constant 0.000000e+00 : f32
    %134 = vector.broadcast %cst_91 : f32 to vector<8x1xf32>
    %135 = arith.maximumf %133, %134 : vector<8x1xf32>
    %cst_92 = arith.constant 9.99999974E-6 : f32
    %136 = vector.broadcast %cst_92 : f32 to vector<8x1xf32>
    %137 = arith.addf %135, %136 : vector<8x1xf32>
    %138 = math.rsqrt %137 : vector<8x1xf32>
    %c0_93 = arith.constant 0 : index
    %c0_94 = arith.constant 0 : index
    %139 = vector.load %arg5[%c0_93, %c0_94] : memref<8x1xf32, #tpu.memory_space<vmem>>, vector<8x1xf32>
    %140 = arith.mulf %138, %139 : vector<8x1xf32>
    %c0_95 = arith.constant 0 : index
    %c0_96 = arith.constant 0 : index
    %141 = vector.load %arg6[%c0_95, %c0_96] : memref<8x1xf32, #tpu.memory_space<vmem>>, vector<8x1xf32>
    %142 = arith.mulf %126, %140 : vector<8x1xf32>
    %143 = arith.subf %141, %142 : vector<8x1xf32>
    %144 = vector.broadcast %140 : vector<8x1xf32> to vector<8x288xf32>
    %145 = arith.mulf %117, %144 : vector<8x288xf32>
    %146 = vector.broadcast %143 : vector<8x1xf32> to vector<8x288xf32>
    %147 = arith.addf %145, %146 : vector<8x288xf32>
    %cst_97 = arith.constant 0.000000e+00 : f32
    %148 = vector.broadcast %cst_97 : f32 to vector<8x288xf32>
    %149 = arith.maximumf %147, %148 : vector<8x288xf32>
    %c0_98 = arith.constant 0 : index
    %c0_99 = arith.constant 0 : index
    %150 = vector.load %arg8[%c0_98, %c0_99] : memref<8x288xf32, #tpu.memory_space<vmem>>, vector<8x288xf32>
    tpu.vector_store %arg8[%c0_98, %c0_99], %149 {strides = array<i32>} : memref<8x288xf32, #tpu.memory_space<vmem>>, vector<8x288xf32>,
    return
  }
}

</mosaic_0001>

<llo_original>
// kernel: tile.6
$region0: #{tile.6}
  #allocation0 [shape = 's32[1]{0}', space=sflag, size = 0x4, scoped, tag = 'scoped memory for tile.6']
  %s0 = inlined_call_operand.vmem [shape: f32[144], index: 0, kind: input, shape index: {}]
  %s1 = inlined_call_operand.vmem [shape: f32[2,144], index: 1, kind: output, shape index: {}]
  // Predicated region
  $region2: #{tile.6} parent=0 // pred_check
    _
  $region3: #{tile.6} parent=0 // pred_check_branch
    %3 = sbr.rel (0) target = $region5
  $region4: #{tile.6} parent=0 // pred_region
    _
  $region5: #{tile.6} parent=0 // pred_fallthru
    _
  %v4 = vld [vmem:[%s0] ss:$0 sm:$0xff]
  %5 = vst [vmem:[%s1] sm:$0x3] %v4
  %s6 = scalar_lea.vmem %s0, 1
  %v7 = vld [vmem:[%s6] ss:$0 sm:$0xff]
  %s8 = scalar_lea.vmem %s1, 2
  %9 = vst [vmem:[%s8] sm:$0x3] %v7

// kernel: tile.7
$region0: #{tile.7}
  %s0 = inlined_call_operand.vmem [shape: f32[2,144], index: 0, kind: input, shape index: {}]
  %s1 = inlined_call_operand.vmem [shape: f32[288], index: 1, kind: output, shape index: {}]
  $region1: #{tile.7} parent=0
    #allocation0 [shape = 'u8[4096]{0}', space=vmem, size = 0x1000, scoped, tag = 'scoped mem for output reshape']
    #allocation1 [shape = 'u8[8192]{0}', space=vmem, size = 0x2000, scoped, tag = 'scoped mem for input reshape']
    %s3 = sshll.u32 1, 2
    %s4 = ssub.s32 %s3, 1
    %s5 = scalar_lea.vmem %s0, 2
    %v6 = vld [vmem:[%s5] sm:%s4]
    %s7 = scalar_lea.vmem [#allocation1], 8
    %8 = vst [vmem:[%s7] sm:%s4] %v6
    %v9 = vld [vmem:[%s0] sm:%s4]
    %10 = vst [vmem:[#allocation1] sm:%s4] %v9
    %s11 = scalar_lea.vmem [#allocation1], 8
    %v12 = vld [vmem:[%s11] sm:$0x1]
    %vm13 = vcmask 130048
    %s14 = scalar_lea.vmem [#allocation0], 1
    %15 = vst.msk [vmem:[%s14] sm:$0x1] %vm13, %v12
    %v16 = vld [vmem:[#allocation1] sm:$0x1]
    %17 = vst [vmem:[#allocation0] sm:$0x1] %v16
    %s18 = scalar_lea.vmem [#allocation1], 1
    %v19 = vld [vmem:[%s18] sm:$0x1]
    %s20 = scalar_lea.vmem [#allocation1], 9
    %v21 = vld [vmem:[%s20] sm:$0x1]
    %vm22 = vcmask 916480
    %v23 = vsel %vm22, %v21, %v19
    %24 = vrot.lane.b32.xlu0 %v23, 16
    %v25 = vpop.permute.xlu0 %24
    %vm26 = vcmask 130048
    %s27 = scalar_lea.vmem [#allocation0], 2
    %28 = vst.msk [vmem:[%s27] sm:$0x1] %vm26, %v25
    %vm29 = vcmask 261248
    %s30 = scalar_lea.vmem [#allocation0], 2
    %31 = vst.msk [vmem:[%s30] sm:$0x1] %vm29, %v25
    %s32 = scalar_lea.vmem [#allocation1], 1
    %v33 = vld [vmem:[%s32] sm:$0x1]
    %34 = vrot.lane.b32.xlu0 %v33, 16
    %v35 = vpop.permute.xlu0 %34
    %vm36 = vcmask 1047680
    %s37 = scalar_lea.vmem [#allocation0], 1
    %38 = vst.msk [vmem:[%s37] sm:$0x1] %vm36, %v35
    %s40 = sshll.u32 1, 4
    %s41 = ssub.s32 %s40, 1
    %v43 = vld [vmem:[#allocation0] sm:%s41]
    %s44 = sshll.u32 1, 4
    %s45 = ssub.s32 %s44, 1
    %46 = vst [vmem:[%s1] sm:%s45] %v43

// kernel: down_dc_forward.1
$region0: #{down_dc_forward.1}
  #allocation0 [shape = 'u32[]', space=smem, size = 0x4, offset = 0x4, fixed_abs, tag = 'smem constant byte address 0x4 - core index']
  #allocation1 [shape = 'u32[144,128]{1,0:T(1,128)}', space=vmem, size = 0x12000, scoped, tag = 'internal scratch']
  %s0 = inlined_call_operand.vmem [shape: f32[4,432], index: 0, kind: input, shape index: {}]
  %s1 = inlined_call_operand.vmem [shape: f32[9,8,4], index: 1, kind: input, shape index: {}]
  %s2 = inlined_call_operand.vmem [shape: f32[9,8,8], index: 2, kind: input, shape index: {}]
  %s3 = inlined_call_operand.vmem [shape: f32[8,1], index: 3, kind: input, shape index: {}]
  %s4 = inlined_call_operand.vmem [shape: f32[8,1], index: 4, kind: input, shape index: {}]
  %s5 = inlined_call_operand.vmem [shape: f32[8,1], index: 5, kind: input, shape index: {}]
  %s6 = inlined_call_operand.vmem [shape: f32[8,1], index: 6, kind: input, shape index: {}]
  %s7 = inlined_call_operand.vmem [shape: f32[1,314], index: 7, kind: input, shape index: {}]
  %s8 = inlined_call_operand.vmem [shape: f32[8,288], index: 8, kind: output, shape index: {}]
  %s9 = sld [smem:[#allocation0]]
  $region42: #{down_dc_forward.1} parent=0
    _
  %s11 = ssub.s32 1, %s9
  %s12 = scalar_select 0, %s11, %s9
  // Predicated region
  $region2: #{down_dc_forward.1} parent=0 // pred_check
    _
  $region3: #{down_dc_forward.1} parent=0 // pred_check_branch
    %14 = sbr.rel (0) target = $region5
  $region4: #{down_dc_forward.1} parent=0 // pred_region
    _
  $region5: #{down_dc_forward.1} parent=0 // pred_fallthru
    _
  // Predicated region
  $region6: #{down_dc_forward.1} parent=0 // pred_check
    _
  $region7: #{down_dc_forward.1} parent=0 // pred_check_branch
    %16 = sbr.rel (0) target = $region9
  $region8: #{down_dc_forward.1} parent=0 // pred_region
    _
  $region9: #{down_dc_forward.1} parent=0 // pred_fallthru
    _
  // Predicated region
  $region10: #{down_dc_forward.1} parent=0 // pred_check
    _
  $region11: #{down_dc_forward.1} parent=0 // pred_check_branch
    %18 = sbr.rel (0) target = $region13
  $region12: #{down_dc_forward.1} parent=0 // pred_region
    _
  $region13: #{down_dc_forward.1} parent=0 // pred_fallthru
    _
  // Predicated region
  $region14: #{down_dc_forward.1} parent=0 // pred_check
    _
  $region15: #{down_dc_forward.1} parent=0 // pred_check_branch
    %20 = sbr.rel (0) target = $region17
  $region16: #{down_dc_forward.1} parent=0 // pred_region
    _
  $region17: #{down_dc_forward.1} parent=0 // pred_fallthru
    _
  // Predicated region
  $region18: #{down_dc_forward.1} parent=0 // pred_check
    _
  $region19: #{down_dc_forward.1} parent=0 // pred_check_branch
    %22 = sbr.rel (0) target = $region21
  $region20: #{down_dc_forward.1} parent=0 // pred_region
    _
  $region21: #{down_dc_forward.1} parent=0 // pred_fallthru
    _
  // Predicated region
  $region22: #{down_dc_forward.1} parent=0 // pred_check
    _
  $region23: #{down_dc_forward.1} parent=0 // pred_check_branch
    %24 = sbr.rel (0) target = $region25
  $region24: #{down_dc_forward.1} parent=0 // pred_region
    _
  $region25: #{down_dc_forward.1} parent=0 // pred_fallthru
    _
  // Predicated region
  $region26: #{down_dc_forward.1} parent=0 // pred_check
    _
  $region27: #{down_dc_forward.1} parent=0 // pred_check_branch
    %26 = sbr.rel (0) target = $region29
  $region28: #{down_dc_forward.1} parent=0 // pred_region
    _
  $region29: #{down_dc_forward.1} parent=0 // pred_fallthru
    _
  // Predicated region
  $region30: #{down_dc_forward.1} parent=0 // pred_check
    _
  $region31: #{down_dc_forward.1} parent=0 // pred_check_branch
    %28 = sbr.rel (0) target = $region33
  $region32: #{down_dc_forward.1} parent=0 // pred_region
    _
  $region33: #{down_dc_forward.1} parent=0 // pred_fallthru
    _
  %v29 = vld [vmem:[%s1] sm:$0xff]
  %v30 = vld [vmem:[%s0] sm:$0xff]
  %v31 = vld [vmem:[%s0 + $0x8] sm:$0xf]
  %s32 = scalar_lea.vmem %s1, 8
  %v33 = vld [vmem:[%s32] sm:$0xff]
  %v36 = vcombine.high %v30, %v30
  %37 = vrot.lane.b32.xlu0 %v30, 127
  %v38 = vpop.permute.xlu0 %37
  %39 = vrot.lane.b32.xlu0 %v36, 127
  %v40 = vpop.permute.xlu0 %39
  %41 = vrot.lane.b32.xlu0 %v31, 127
  %v42 = vpop.permute.xlu0 %41
  %vm43 = vcmask 1039360
  %v44 = vsel %vm43, %v38, %v40
  %v45 = vsel %vm43, %v40, %v42
  %vm46 = vcmask 31744
  %v48 = vsel %vm46, %v33, 0
  %vm50 = vcmask 1043456
  %v51 = vsel %vm50, %v44, 0
  %v53 = vsel %vm50, %v45, 0
  %v55 = vsel %vm50, %v42, 0
  %57 = vmatprep.subr.mxu0 0.0
  %58 = vmatpush1.msra.mxu0 0.0
  %59 = vmatprep.subr.mxu0 0.0
  %60 = vmatpush1.msra.mxu0 0.0
  %61 = vmatprep.subr.mxu0 0.0
  %62 = vmatpush1.msra.mxu0 0.0
  %63 = vmatprep.subr.mxu0 0.0
  %64 = vmatpush1.msra.mxu0 0.0
  %65 = vmatprep.subr.mxu0 0.0
  %66 = vmatpush1.msra.mxu0 0.0
  %67 = vmatprep.subr.mxu0 0.0
  %68 = vmatpush1.msra.mxu0 0.0
  %69 = vmatprep.subr.mxu0 0.0
  %70 = vmatpush1.msra.mxu0 0.0
  %71 = vmatprep.subr.mxu0 0.0
  %72 = vmatpush1.msra.mxu0 0.0
  %73 = vmatprep.subr.mxu0 0.0
  %74 = vmatpush1.msra.mxu0 0.0
  %75 = vmatprep.subr.mxu0 0.0
  %76 = vmatpush1.msra.mxu0 0.0
  %77 = vmatprep.subr.mxu0 0.0
  %78 = vmatpush1.msra.mxu0 0.0
  %79 = vmatprep.subr.mxu0 0.0
  %80 = vmatpush1.msra.mxu0 0.0
  %81 = vmatprep.subr.mxu0 0.0
  %82 = vmatpush1.msra.mxu0 0.0
  %83 = vmatprep.subr.mxu0 0.0
  %84 = vmatpush1.msra.mxu0 0.0
  %85 = vmatprep.subr.mxu0 0.0
  %86 = vmatpush1.msra.mxu0 0.0
  %87 = vmatprep.subr.mxu0 %v53
  %88 = vmatpush1.msra.mxu0 %v51
  %89 = vmatprep.subr.mxu0 0.0
  %90 = vmatpush2.msra.mxu0 0.0
  %91 = vmatprep.subr.mxu0 0.0
  %92 = vmatpush2.msra.mxu0 0.0
  %93 = vmatprep.subr.mxu0 0.0
  %94 = vmatpush2.msra.mxu0 0.0
  %95 = vmatprep.subr.mxu0 0.0
  %96 = vmatpush2.msra.mxu0 0.0
  %97 = vmatprep.subr.mxu0 0.0
  %98 = vmatpush2.msra.mxu0 0.0
  %99 = vmatprep.subr.mxu0 0.0
  %100 = vmatpush2.msra.mxu0 0.0
  %101 = vmatprep.subr.mxu0 0.0
  %102 = vmatpush2.msra.mxu0 0.0
  %103 = vmatprep.subr.mxu0 0.0
  %104 = vmatpush2.msra.mxu0 0.0
  %105 = vmatprep.subr.mxu0 0.0
  %106 = vmatpush2.msra.mxu0 0.0
  %107 = vmatprep.subr.mxu0 0.0
  %108 = vmatpush2.msra.mxu0 0.0
  %109 = vmatprep.subr.mxu0 0.0
  %110 = vmatpush2.msra.mxu0 0.0
  %111 = vmatprep.subr.mxu0 0.0
  %112 = vmatpush2.msra.mxu0 0.0
  %113 = vmatprep.subr.mxu0 0.0
  %114 = vmatpush2.msra.mxu0 0.0
  %115 = vmatprep.subr.mxu0 0.0
  %116 = vmatpush2.msra.mxu0 0.0
  %117 = vmatprep.subr.mxu0 0.0
  %118 = vmatpush2.msra.mxu0 0.0
  %119 = vmatprep.subr.mxu0 0.0
  %120 = vmatpush2.msra.mxu0 0.0
  %121 = vmatprep.mubr.f32.mxu0 0.0
  %122 = vmatmul.mubr.f32.gmra.mxu0 %v48
  %v123 = vpop.f32.mrf.mxu0
  %v124 = vadd.f32 0.0, %v123
  %v125 = vpop.f32.mrf.mxu0
  %v126 = vadd.f32 0.0, %v125
  %127 = vdwg.mxu0
  %128 = vmatprep.subr.mxu0 0.0
  %129 = vmatpush1.msra.mxu0 0.0
  %130 = vmatprep.subr.mxu0 0.0
  %131 = vmatpush1.msra.mxu0 0.0
  %132 = vmatprep.subr.mxu0 0.0
  %133 = vmatpush1.msra.mxu0 0.0
  %134 = vmatprep.subr.mxu0 0.0
  %135 = vmatpush1.msra.mxu0 0.0
  %136 = vmatprep.subr.mxu0 0.0
  %137 = vmatpush1.msra.mxu0 0.0
  %138 = vmatprep.subr.mxu0 0.0
  %139 = vmatpush1.msra.mxu0 0.0
  %140 = vmatprep.subr.mxu0 0.0
  %141 = vmatpush1.msra.mxu0 0.0
  %142 = vmatprep.subr.mxu0 0.0
  %143 = vmatpush1.msra.mxu0 0.0
  %144 = vmatprep.subr.mxu0 0.0
  %145 = vmatpush1.msra.mxu0 0.0
  %146 = vmatprep.subr.mxu0 0.0
  %147 = vmatpush1.msra.mxu0 0.0
  %148 = vmatprep.subr.mxu0 0.0
  %149 = vmatpush1.msra.mxu0 0.0
  %150 = vmatprep.subr.mxu0 0.0
  %151 = vmatpush1.msra.mxu0 0.0
  %152 = vmatprep.subr.mxu0 0.0
  %153 = vmatpush1.msra.mxu0 0.0
  %154 = vmatprep.subr.mxu0 0.0
  %155 = vmatpush1.msra.mxu0 0.0
  %156 = vmatprep.subr.mxu0 0.0
  %157 = vmatpush1.msra.mxu0 0.0
  %158 = vmatprep.subr.mxu0 0.0
  %159 = vmatpush1.msra.mxu0 %v55
  %160 = vmatprep.subr.mxu0 0.0
  %161 = vmatpush2.msra.mxu0 0.0
  %162 = vmatprep.subr.mxu0 0.0
  %163 = vmatpush2.msra.mxu0 0.0
  %164 = vmatprep.subr.mxu0 0.0
  %165 = vmatpush2.msra.mxu0 0.0
  %166 = vmatprep.subr.mxu0 0.0
  %167 = vmatpush2.msra.mxu0 0.0
  %168 = vmatprep.subr.mxu0 0.0
  %169 = vmatpush2.msra.mxu0 0.0
  %170 = vmatprep.subr.mxu0 0.0
  %171 = vmatpush2.msra.mxu0 0.0
  %172 = vmatprep.subr.mxu0 0.0
  %173 = vmatpush2.msra.mxu0 0.0
  %174 = vmatprep.subr.mxu0 0.0
  %175 = vmatpush2.msra.mxu0 0.0
  %176 = vmatprep.subr.mxu0 0.0
  %177 = vmatpush2.msra.mxu0 0.0
  %178 = vmatprep.subr.mxu0 0.0
  %179 = vmatpush2.msra.mxu0 0.0
  %180 = vmatprep.subr.mxu0 0.0
  %181 = vmatpush2.msra.mxu0 0.0
  %182 = vmatprep.subr.mxu0 0.0
  %183 = vmatpush2.msra.mxu0 0.0
  %184 = vmatprep.subr.mxu0 0.0
  %185 = vmatpush2.msra.mxu0 0.0
  %186 = vmatprep.subr.mxu0 0.0
  %187 = vmatpush2.msra.mxu0 0.0
  %188 = vmatprep.subr.mxu0 0.0
  %189 = vmatpush2.msra.mxu0 0.0
  %190 = vmatprep.subr.mxu0 0.0
  %191 = vmatpush2.msra.mxu0 0.0
  %192 = vmatprep.mubr.f32.mxu0 0.0
  %193 = vmatmul.mubr.f32.gmra.mxu0 %v48
  %v194 = vpop.f32.mrf.mxu0
  %v195 = vadd.f32 0.0, %v194
  %v196 = vpop.f32.mrf.mxu0
  %197 = vdwg.mxu0
  %v199 = vsel %vm46, %v29, 0
  %v201 = vsel %vm50, %v30, 0
  %v203 = vsel %vm50, %v36, 0
  %v205 = vsel %vm50, %v31, 0
  %207 = vmatprep.subr.mxu0 0.0
  %208 = vmatpush1.msra.mxu0 0.0
  %209 = vmatprep.subr.mxu0 0.0
  %210 = vmatpush1.msra.mxu0 0.0
  %211 = vmatprep.subr.mxu0 0.0
  %212 = vmatpush1.msra.mxu0 0.0
  %213 = vmatprep.subr.mxu0 0.0
  %214 = vmatpush1.msra.mxu0 0.0
  %215 = vmatprep.subr.mxu0 0.0
  %216 = vmatpush1.msra.mxu0 0.0
  %217 = vmatprep.subr.mxu0 0.0
  %218 = vmatpush1.msra.mxu0 0.0
  %219 = vmatprep.subr.mxu0 0.0
  %220 = vmatpush1.msra.mxu0 0.0
  %221 = vmatprep.subr.mxu0 0.0
  %222 = vmatpush1.msra.mxu0 0.0
  %223 = vmatprep.subr.mxu0 0.0
  %224 = vmatpush1.msra.mxu0 0.0
  %225 = vmatprep.subr.mxu0 0.0
  %226 = vmatpush1.msra.mxu0 0.0
  %227 = vmatprep.subr.mxu0 0.0
  %228 = vmatpush1.msra.mxu0 0.0
  %229 = vmatprep.subr.mxu0 0.0
  %230 = vmatpush1.msra.mxu0 0.0
  %231 = vmatprep.subr.mxu0 0.0
  %232 = vmatpush1.msra.mxu0 0.0
  %233 = vmatprep.subr.mxu0 0.0
  %234 = vmatpush1.msra.mxu0 0.0
  %235 = vmatprep.subr.mxu0 0.0
  %236 = vmatpush1.msra.mxu0 0.0
  %237 = vmatprep.subr.mxu0 %v203
  %238 = vmatpush1.msra.mxu0 %v201
  %239 = vmatprep.subr.mxu0 0.0
  %240 = vmatpush2.msra.mxu0 0.0
  %241 = vmatprep.subr.mxu0 0.0
  %242 = vmatpush2.msra.mxu0 0.0
  %243 = vmatprep.subr.mxu0 0.0
  %244 = vmatpush2.msra.mxu0 0.0
  %245 = vmatprep.subr.mxu0 0.0
  %246 = vmatpush2.msra.mxu0 0.0
  %247 = vmatprep.subr.mxu0 0.0
  %248 = vmatpush2.msra.mxu0 0.0
  %249 = vmatprep.subr.mxu0 0.0
  %250 = vmatpush2.msra.mxu0 0.0
  %251 = vmatprep.subr.mxu0 0.0
  %252 = vmatpush2.msra.mxu0 0.0
  %253 = vmatprep.subr.mxu0 0.0
  %254 = vmatpush2.msra.mxu0 0.0
  %255 = vmatprep.subr.mxu0 0.0
  %256 = vmatpush2.msra.mxu0 0.0
  %257 = vmatprep.subr.mxu0 0.0
  %258 = vmatpush2.msra.mxu0 0.0
  %259 = vmatprep.subr.mxu0 0.0
  %260 = vmatpush2.msra.mxu0 0.0
  %261 = vmatprep.subr.mxu0 0.0
  %262 = vmatpush2.msra.mxu0 0.0
  %263 = vmatprep.subr.mxu0 0.0
  %264 = vmatpush2.msra.mxu0 0.0
  %265 = vmatprep.subr.mxu0 0.0
  %266 = vmatpush2.msra.mxu0 0.0
  %267 = vmatprep.subr.mxu0 0.0
  %268 = vmatpush2.msra.mxu0 0.0
  %269 = vmatprep.subr.mxu0 0.0
  %270 = vmatpush2.msra.mxu0 0.0
  %271 = vmatprep.mubr.f32.mxu0 0.0
  %272 = vmatmul.mubr.f32.gmra.mxu0 %v199
  %v273 = vpop.f32.mrf.mxu0
  %v274 = vadd.f32 %v124, %v273
  %v275 = vpop.f32.mrf.mxu0
  %v276 = vadd.f32 %v126, %v275
  %277 = vdwg.mxu0
  %278 = vmatprep.subr.mxu0 0.0
  %279 = vmatpush1.msra.mxu0 0.0
  %280 = vmatprep.subr.mxu0 0.0
  %281 = vmatpush1.msra.mxu0 0.0
  %282 = vmatprep.subr.mxu0 0.0
  %283 = vmatpush1.msra.mxu0 0.0
  %284 = vmatprep.subr.mxu0 0.0
  %285 = vmatpush1.msra.mxu0 0.0
  %286 = vmatprep.subr.mxu0 0.0
  %287 = vmatpush1.msra.mxu0 0.0
  %288 = vmatprep.subr.mxu0 0.0
  %289 = vmatpush1.msra.mxu0 0.0
  %290 = vmatprep.subr.mxu0 0.0
  %291 = vmatpush1.msra.mxu0 0.0
  %292 = vmatprep.subr.mxu0 0.0
  %293 = vmatpush1.msra.mxu0 0.0
  %294 = vmatprep.subr.mxu0 0.0
  %295 = vmatpush1.msra.mxu0 0.0
  %296 = vmatprep.subr.mxu0 0.0
  %297 = vmatpush1.msra.mxu0 0.0
  %298 = vmatprep.subr.mxu0 0.0
  %299 = vmatpush1.msra.mxu0 0.0
  %300 = vmatprep.subr.mxu0 0.0
  %301 = vmatpush1.msra.mxu0 0.0
  %302 = vmatprep.subr.mxu0 0.0
  %303 = vmatpush1.msra.mxu0 0.0
  %304 = vmatprep.subr.mxu0 0.0
  %305 = vmatpush1.msra.mxu0 0.0
  %306 = vmatprep.subr.mxu0 0.0
  %307 = vmatpush1.msra.mxu0 0.0
  %308 = vmatprep.subr.mxu0 0.0
  %309 = vmatpush1.msra.mxu0 %v205
  %310 = vmatprep.subr.mxu0 0.0
  %311 = vmatpush2.msra.mxu0 0.0
  %312 = vmatprep.subr.mxu0 0.0
  %313 = vmatpush2.msra.mxu0 0.0
  %314 = vmatprep.subr.mxu0 0.0
  %315 = vmatpush2.msra.mxu0 0.0
  %316 = vmatprep.subr.mxu0 0.0
  %317 = vmatpush2.msra.mxu0 0.0
  %318 = vmatprep.subr.mxu0 0.0
  %319 = vmatpush2.msra.mxu0 0.0
  %320 = vmatprep.subr.mxu0 0.0
  %321 = vmatpush2.msra.mxu0 0.0
  %322 = vmatprep.subr.mxu0 0.0
  %323 = vmatpush2.msra.mxu0 0.0
  %324 = vmatprep.subr.mxu0 0.0
  %325 = vmatpush2.msra.mxu0 0.0
  %326 = vmatprep.subr.mxu0 0.0
  %327 = vmatpush2.msra.mxu0 0.0
  %328 = vmatprep.subr.mxu0 0.0
  %329 = vmatpush2.msra.mxu0 0.0
  %330 = vmatprep.subr.mxu0 0.0
  %331 = vmatpush2.msra.mxu0 0.0
  %332 = vmatprep.subr.mxu0 0.0
  %333 = vmatpush2.msra.mxu0 0.0
  %334 = vmatprep.subr.mxu0 0.0
  %335 = vmatpush2.msra.mxu0 0.0
  %336 = vmatprep.subr.mxu0 0.0
  %337 = vmatpush2.msra.mxu0 0.0
  %338 = vmatprep.subr.mxu0 0.0
  %339 = vmatpush2.msra.mxu0 0.0
  %340 = vmatprep.subr.mxu0 0.0
  %341 = vmatpush2.msra.mxu0 0.0
  %342 = vmatprep.mubr.f32.mxu0 0.0
  %343 = vmatmul.mubr.f32.gmra.mxu0 %v199
  %v344 = vpop.f32.mrf.mxu0
  %v345 = vadd.f32 %v195, %v344
  %v346 = vpop.f32.mrf.mxu0
  %347 = vdwg.mxu0
  %s348 = scalar_lea.vmem %s1, 16
  %v349 = vld [vmem:[%s348] sm:$0xff]
  %v350 = vld [vmem:[%s0] sm:$0xff]
  %v351 = vld [vmem:[%s0 + $0x8] sm:$0xf]
  %v354 = vcombine.high %v350, %v350
  %355 = vrot.lane.b32.xlu0 %v350, 126
  %v356 = vpop.permute.xlu0 %355
  %357 = vrot.lane.b32.xlu0 %v354, 126
  %v358 = vpop.permute.xlu0 %357
  %359 = vrot.lane.b32.xlu0 %v351, 126
  %v360 = vpop.permute.xlu0 %359
  %vm361 = vcmask 1031168
  %v362 = vsel %vm361, %v356, %v358
  %v363 = vsel %vm361, %v358, %v360
  %v365 = vsel %vm46, %v349, 0
  %v367 = vsel %vm50, %v362, 0
  %v369 = vsel %vm50, %v363, 0
  %v371 = vsel %vm50, %v360, 0
  %373 = vmatprep.subr.mxu0 0.0
  %374 = vmatpush1.msra.mxu0 0.0
  %375 = vmatprep.subr.mxu0 0.0
  %376 = vmatpush1.msra.mxu0 0.0
  %377 = vmatprep.subr.mxu0 0.0
  %378 = vmatpush1.msra.mxu0 0.0
  %379 = vmatprep.subr.mxu0 0.0
  %380 = vmatpush1.msra.mxu0 0.0
  %381 = vmatprep.subr.mxu0 0.0
  %382 = vmatpush1.msra.mxu0 0.0
  %383 = vmatprep.subr.mxu0 0.0
  %384 = vmatpush1.msra.mxu0 0.0
  %385 = vmatprep.subr.mxu0 0.0
  %386 = vmatpush1.msra.mxu0 0.0
  %387 = vmatprep.subr.mxu0 0.0
  %388 = vmatpush1.msra.mxu0 0.0
  %389 = vmatprep.subr.mxu0 0.0
  %390 = vmatpush1.msra.mxu0 0.0
  %391 = vmatprep.subr.mxu0 0.0
  %392 = vmatpush1.msra.mxu0 0.0
  %393 = vmatprep.subr.mxu0 0.0
  %394 = vmatpush1.msra.mxu0 0.0
  %395 = vmatprep.subr.mxu0 0.0
  %396 = vmatpush1.msra.mxu0 0.0
  %397 = vmatprep.subr.mxu0 0.0
  %398 = vmatpush1.msra.mxu0 0.0
  %399 = vmatprep.subr.mxu0 0.0
  %400 = vmatpush1.msra.mxu0 0.0
  %401 = vmatprep.subr.mxu0 0.0
  %402 = vmatpush1.msra.mxu0 0.0
  %403 = vmatprep.subr.mxu0 %v369
  %404 = vmatpush1.msra.mxu0 %v367
  %405 = vmatprep.subr.mxu0 0.0
  %406 = vmatpush2.msra.mxu0 0.0
  %407 = vmatprep.subr.mxu0 0.0
  %408 = vmatpush2.msra.mxu0 0.0
  %409 = vmatprep.subr.mxu0 0.0
  %410 = vmatpush2.msra.mxu0 0.0
  %411 = vmatprep.subr.mxu0 0.0
  %412 = vmatpush2.msra.mxu0 0.0
  %413 = vmatprep.subr.mxu0 0.0
  %414 = vmatpush2.msra.mxu0 0.0
  %415 = vmatprep.subr.mxu0 0.0
  %416 = vmatpush2.msra.mxu0 0.0
  %417 = vmatprep.subr.mxu0 0.0
  %418 = vmatpush2.msra.mxu0 0.0
  %419 = vmatprep.subr.mxu0 0.0
  %420 = vmatpush2.msra.mxu0 0.0
  %421 = vmatprep.subr.mxu0 0.0
  %422 = vmatpush2.msra.mxu0 0.0
  %423 = vmatprep.subr.mxu0 0.0
  %424 = vmatpush2.msra.mxu0 0.0
  %425 = vmatprep.subr.mxu0 0.0
  %426 = vmatpush2.msra.mxu0 0.0
  %427 = vmatprep.subr.mxu0 0.0
  %428 = vmatpush2.msra.mxu0 0.0
  %429 = vmatprep.subr.mxu0 0.0
  %430 = vmatpush2.msra.mxu0 0.0
  %431 = vmatprep.subr.mxu0 0.0
  %432 = vmatpush2.msra.mxu0 0.0
  %433 = vmatprep.subr.mxu0 0.0
  %434 = vmatpush2.msra.mxu0 0.0
  %435 = vmatprep.subr.mxu0 0.0
  %436 = vmatpush2.msra.mxu0 0.0
  %437 = vmatprep.mubr.f32.mxu0 0.0
  %438 = vmatmul.mubr.f32.gmra.mxu0 %v365
  %v439 = vpop.f32.mrf.mxu0
  %v440 = vadd.f32 0.0, %v439
  %v441 = vpop.f32.mrf.mxu0
  %v442 = vadd.f32 0.0, %v441
  %443 = vdwg.mxu0
  %444 = vmatprep.subr.mxu0 0.0
  %445 = vmatpush1.msra.mxu0 0.0
  %446 = vmatprep.subr.mxu0 0.0
  %447 = vmatpush1.msra.mxu0 0.0
  %448 = vmatprep.subr.mxu0 0.0
  %449 = vmatpush1.msra.mxu0 0.0
  %450 = vmatprep.subr.mxu0 0.0
  %451 = vmatpush1.msra.mxu0 0.0
  %452 = vmatprep.subr.mxu0 0.0
  %453 = vmatpush1.msra.mxu0 0.0
  %454 = vmatprep.subr.mxu0 0.0
  %455 = vmatpush1.msra.mxu0 0.0
  %456 = vmatprep.subr.mxu0 0.0
  %457 = vmatpush1.msra.mxu0 0.0
  %458 = vmatprep.subr.mxu0 0.0
  %459 = vmatpush1.msra.mxu0 0.0
  %460 = vmatprep.subr.mxu0 0.0
  %461 = vmatpush1.msra.mxu0 0.0
  %462 = vmatprep.subr.mxu0 0.0
  %463 = vmatpush1.msra.mxu0 0.0
  %464 = vmatprep.subr.mxu0 0.0
  %465 = vmatpush1.msra.mxu0 0.0
  %466 = vmatprep.subr.mxu0 0.0
  %467 = vmatpush1.msra.mxu0 0.0
  %468 = vmatprep.subr.mxu0 0.0
  %469 = vmatpush1.msra.mxu0 0.0
  %470 = vmatprep.subr.mxu0 0.0
  %471 = vmatpush1.msra.mxu0 0.0
  %472 = vmatprep.subr.mxu0 0.0
  %473 = vmatpush1.msra.mxu0 0.0
  %474 = vmatprep.subr.mxu0 0.0
  %475 = vmatpush1.msra.mxu0 %v371
  %476 = vmatprep.subr.mxu0 0.0
  %477 = vmatpush2.msra.mxu0 0.0
  %478 = vmatprep.subr.mxu0 0.0
  %479 = vmatpush2.msra.mxu0 0.0
  %480 = vmatprep.subr.mxu0 0.0
  %481 = vmatpush2.msra.mxu0 0.0
  %482 = vmatprep.subr.mxu0 0.0
  %483 = vmatpush2.msra.mxu0 0.0
  %484 = vmatprep.subr.mxu0 0.0
  %485 = vmatpush2.msra.mxu0 0.0
  %486 = vmatprep.subr.mxu0 0.0
  %487 = vmatpush2.msra.mxu0 0.0
  %488 = vmatprep.subr.mxu0 0.0
  %489 = vmatpush2.msra.mxu0 0.0
  %490 = vmatprep.subr.mxu0 0.0
  %491 = vmatpush2.msra.mxu0 0.0
  %492 = vmatprep.subr.mxu0 0.0
  %493 = vmatpush2.msra.mxu0 0.0
  %494 = vmatprep.subr.mxu0 0.0
  %495 = vmatpush2.msra.mxu0 0.0
  %496 = vmatprep.subr.mxu0 0.0
  %497 = vmatpush2.msra.mxu0 0.0
  %498 = vmatprep.subr.mxu0 0.0
  %499 = vmatpush2.msra.mxu0 0.0
  %500 = vmatprep.subr.mxu0 0.0
  %501 = vmatpush2.msra.mxu0 0.0
  %502 = vmatprep.subr.mxu0 0.0
  %503 = vmatpush2.msra.mxu0 0.0
  %504 = vmatprep.subr.mxu0 0.0
  %505 = vmatpush2.msra.mxu0 0.0
  %506 = vmatprep.subr.mxu0 0.0
  %507 = vmatpush2.msra.mxu0 0.0
  %508 = vmatprep.mubr.f32.mxu0 0.0
  %509 = vmatmul.mubr.f32.gmra.mxu0 %v365
  %v510 = vpop.f32.mrf.mxu0
  %v511 = vadd.f32 0.0, %v510
  %v512 = vpop.f32.mrf.mxu0
  %513 = vdwg.mxu0
  %v514 = vadd.f32 %v274, %v440
  %v515 = vadd.f32 %v276, %v442
  %v516 = vadd.f32 %v345, %v511
  %s517 = scalar_lea.vmem %s1, 24
  %v518 = vld [vmem:[%s517] sm:$0xff]
  %v519 = vld [vmem:[%s0] sm:$0xff]
  %v520 = vld [vmem:[%s0 + $0x8] sm:$0xf]
  %v523 = vcombine.high %v519, %v519
  %524 = vrot.lane.b32.xlu0 %v519, 116
  %v525 = vpop.permute.xlu0 %524
  %526 = vrot.lane.b32.xlu0 %v523, 116
  %v527 = vpop.permute.xlu0 %526
  %528 = vrot.lane.b32.xlu0 %v520, 116
  %v529 = vpop.permute.xlu0 %528
  %vm530 = vcmask 949248
  %v531 = vsel %vm530, %v525, %v527
  %v532 = vsel %vm530, %v527, %v529
  %v534 = vsel %vm46, %v518, 0
  %v536 = vsel %vm50, %v531, 0
  %v538 = vsel %vm50, %v532, 0
  %v540 = vsel %vm50, %v529, 0
  %542 = vmatprep.subr.mxu0 0.0
  %543 = vmatpush1.msra.mxu0 0.0
  %544 = vmatprep.subr.mxu0 0.0
  %545 = vmatpush1.msra.mxu0 0.0
  %546 = vmatprep.subr.mxu0 0.0
  %547 = vmatpush1.msra.mxu0 0.0
  %548 = vmatprep.subr.mxu0 0.0
  %549 = vmatpush1.msra.mxu0 0.0
  %550 = vmatprep.subr.mxu0 0.0
  %551 = vmatpush1.msra.mxu0 0.0
  %552 = vmatprep.subr.mxu0 0.0
  %553 = vmatpush1.msra.mxu0 0.0
  %554 = vmatprep.subr.mxu0 0.0
  %555 = vmatpush1.msra.mxu0 0.0
  %556 = vmatprep.subr.mxu0 0.0
  %557 = vmatpush1.msra.mxu0 0.0
  %558 = vmatprep.subr.mxu0 0.0
  %559 = vmatpush1.msra.mxu0 0.0
  %560 = vmatprep.subr.mxu0 0.0
  %561 = vmatpush1.msra.mxu0 0.0
  %562 = vmatprep.subr.mxu0 0.0
  %563 = vmatpush1.msra.mxu0 0.0
  %564 = vmatprep.subr.mxu0 0.0
  %565 = vmatpush1.msra.mxu0 0.0
  %566 = vmatprep.subr.mxu0 0.0
  %567 = vmatpush1.msra.mxu0 0.0
  %568 = vmatprep.subr.mxu0 0.0
  %569 = vmatpush1.msra.mxu0 0.0
  %570 = vmatprep.subr.mxu0 0.0
  %571 = vmatpush1.msra.mxu0 0.0
  %572 = vmatprep.subr.mxu0 %v538
  %573 = vmatpush1.msra.mxu0 %v536
  %574 = vmatprep.subr.mxu0 0.0
  %575 = vmatpush2.msra.mxu0 0.0
  %576 = vmatprep.subr.mxu0 0.0
  %577 = vmatpush2.msra.mxu0 0.0
  %578 = vmatprep.subr.mxu0 0.0
  %579 = vmatpush2.msra.mxu0 0.0
  %580 = vmatprep.subr.mxu0 0.0
  %581 = vmatpush2.msra.mxu0 0.0
  %582 = vmatprep.subr.mxu0 0.0
  %583 = vmatpush2.msra.mxu0 0.0
  %584 = vmatprep.subr.mxu0 0.0
  %585 = vmatpush2.msra.mxu0 0.0
  %586 = vmatprep.subr.mxu0 0.0
  %587 = vmatpush2.msra.mxu0 0.0
  %588 = vmatprep.subr.mxu0 0.0
  %589 = vmatpush2.msra.mxu0 0.0
  %590 = vmatprep.subr.mxu0 0.0
  %591 = vmatpush2.msra.mxu0 0.0
  %592 = vmatprep.subr.mxu0 0.0
  %593 = vmatpush2.msra.mxu0 0.0
  %594 = vmatprep.subr.mxu0 0.0
  %595 = vmatpush2.msra.mxu0 0.0
  %596 = vmatprep.subr.mxu0 0.0
  %597 = vmatpush2.msra.mxu0 0.0
  %598 = vmatprep.subr.mxu0 0.0
  %599 = vmatpush2.msra.mxu0 0.0
  %600 = vmatprep.subr.mxu0 0.0
  %601 = vmatpush2.msra.mxu0 0.0
  %602 = vmatprep.subr.mxu0 0.0
  %603 = vmatpush2.msra.mxu0 0.0
  %604 = vmatprep.subr.mxu0 0.0
  %605 = vmatpush2.msra.mxu0 0.0
  %606 = vmatprep.mubr.f32.mxu0 0.0
  %607 = vmatmul.mubr.f32.gmra.mxu0 %v534
  %v608 = vpop.f32.mrf.mxu0
  %v609 = vadd.f32 0.0, %v608
  %v610 = vpop.f32.mrf.mxu0
  %v611 = vadd.f32 0.0, %v610
  %612 = vdwg.mxu0
  %613 = vmatprep.subr.mxu0 0.0
  %614 = vmatpush1.msra.mxu0 0.0
  %615 = vmatprep.subr.mxu0 0.0
  %616 = vmatpush1.msra.mxu0 0.0
  %617 = vmatprep.subr.mxu0 0.0
  %618 = vmatpush1.msra.mxu0 0.0
  %619 = vmatprep.subr.mxu0 0.0
  %620 = vmatpush1.msra.mxu0 0.0
  %621 = vmatprep.subr.mxu0 0.0
  %622 = vmatpush1.msra.mxu0 0.0
  %623 = vmatprep.subr.mxu0 0.0
  %624 = vmatpush1.msra.mxu0 0.0
  %625 = vmatprep.subr.mxu0 0.0
  %626 = vmatpush1.msra.mxu0 0.0
  %627 = vmatprep.subr.mxu0 0.0
  %628 = vmatpush1.msra.mxu0 0.0
  %629 = vmatprep.subr.mxu0 0.0
  %630 = vmatpush1.msra.mxu0 0.0
  %631 = vmatprep.subr.mxu0 0.0
  %632 = vmatpush1.msra.mxu0 0.0
  %633 = vmatprep.subr.mxu0 0.0
  %634 = vmatpush1.msra.mxu0 0.0
  %635 = vmatprep.subr.mxu0 0.0
  %636 = vmatpush1.msra.mxu0 0.0
  %637 = vmatprep.subr.mxu0 0.0
  %638 = vmatpush1.msra.mxu0 0.0
  %639 = vmatprep.subr.mxu0 0.0
  %640 = vmatpush1.msra.mxu0 0.0
  %641 = vmatprep.subr.mxu0 0.0
  %642 = vmatpush1.msra.mxu0 0.0
  %643 = vmatprep.subr.mxu0 0.0
  %644 = vmatpush1.msra.mxu0 %v540
  %645 = vmatprep.subr.mxu0 0.0
  %646 = vmatpush2.msra.mxu0 0.0
  %647 = vmatprep.subr.mxu0 0.0
  %648 = vmatpush2.msra.mxu0 0.0
  %649 = vmatprep.subr.mxu0 0.0
  %650 = vmatpush2.msra.mxu0 0.0
  %651 = vmatprep.subr.mxu0 0.0
  %652 = vmatpush2.msra.mxu0 0.0
  %653 = vmatprep.subr.mxu0 0.0
  %654 = vmatpush2.msra.mxu0 0.0
  %655 = vmatprep.subr.mxu0 0.0
  %656 = vmatpush2.msra.mxu0 0.0
  %657 = vmatprep.subr.mxu0 0.0
  %658 = vmatpush2.msra.mxu0 0.0
  %659 = vmatprep.subr.mxu0 0.0
  %660 = vmatpush2.msra.mxu0 0.0
  %661 = vmatprep.subr.mxu0 0.0
  %662 = vmatpush2.msra.mxu0 0.0
  %663 = vmatprep.subr.mxu0 0.0
  %664 = vmatpush2.msra.mxu0 0.0
  %665 = vmatprep.subr.mxu0 0.0
  %666 = vmatpush2.msra.mxu0 0.0
  %667 = vmatprep.subr.mxu0 0.0
  %668 = vmatpush2.msra.mxu0 0.0
  %669 = vmatprep.subr.mxu0 0.0
  %670 = vmatpush2.msra.mxu0 0.0
  %671 = vmatprep.subr.mxu0 0.0
  %672 = vmatpush2.msra.mxu0 0.0
  %673 = vmatprep.subr.mxu0 0.0
  %674 = vmatpush2.msra.mxu0 0.0
  %675 = vmatprep.subr.mxu0 0.0
  %676 = vmatpush2.msra.mxu0 0.0
  %677 = vmatprep.mubr.f32.mxu0 0.0
  %678 = vmatmul.mubr.f32.gmra.mxu0 %v534
  %v679 = vpop.f32.mrf.mxu0
  %v680 = vadd.f32 0.0, %v679
  %v681 = vpop.f32.mrf.mxu0
  %682 = vdwg.mxu0
  %v683 = vadd.f32 %v514, %v609
  %v684 = vadd.f32 %v515, %v611
  %v685 = vadd.f32 %v516, %v680
  %s686 = scalar_lea.vmem %s1, 32
  %v687 = vld [vmem:[%s686] sm:$0xff]
  %v688 = vld [vmem:[%s0] sm:$0xff]
  %v689 = vld [vmem:[%s0 + $0x8] sm:$0xf]
  %v692 = vcombine.high %v688, %v688
  %693 = vrot.lane.b32.xlu0 %v688, 115
  %v694 = vpop.permute.xlu0 %693
  %695 = vrot.lane.b32.xlu0 %v692, 115
  %v696 = vpop.permute.xlu0 %695
  %697 = vrot.lane.b32.xlu0 %v689, 115
  %v698 = vpop.permute.xlu0 %697
  %vm699 = vcmask 941056
  %v700 = vsel %vm699, %v694, %v696
  %v701 = vsel %vm699, %v696, %v698
  %v703 = vsel %vm46, %v687, 0
  %v705 = vsel %vm50, %v700, 0
  %v707 = vsel %vm50, %v701, 0
  %v709 = vsel %vm50, %v698, 0
  %711 = vmatprep.subr.mxu0 0.0
  %712 = vmatpush1.msra.mxu0 0.0
  %713 = vmatprep.subr.mxu0 0.0
  %714 = vmatpush1.msra.mxu0 0.0
  %715 = vmatprep.subr.mxu0 0.0
  %716 = vmatpush1.msra.mxu0 0.0
  %717 = vmatprep.subr.mxu0 0.0
  %718 = vmatpush1.msra.mxu0 0.0
  %719 = vmatprep.subr.mxu0 0.0
  %720 = vmatpush1.msra.mxu0 0.0
  %721 = vmatprep.subr.mxu0 0.0
  %722 = vmatpush1.msra.mxu0 0.0
  %723 = vmatprep.subr.mxu0 0.0
  %724 = vmatpush1.msra.mxu0 0.0
  %725 = vmatprep.subr.mxu0 0.0
  %726 = vmatpush1.msra.mxu0 0.0
  %727 = vmatprep.subr.mxu0 0.0
  %728 = vmatpush1.msra.mxu0 0.0
  %729 = vmatprep.subr.mxu0 0.0
  %730 = vmatpush1.msra.mxu0 0.0
  %731 = vmatprep.subr.mxu0 0.0
  %732 = vmatpush1.msra.mxu0 0.0
  %733 = vmatprep.subr.mxu0 0.0
  %734 = vmatpush1.msra.mxu0 0.0
  %735 = vmatprep.subr.mxu0 0.0
  %736 = vmatpush1.msra.mxu0 0.0
  %737 = vmatprep.subr.mxu0 0.0
  %738 = vmatpush1.msra.mxu0 0.0
  %739 = vmatprep.subr.mxu0 0.0
  %740 = vmatpush1.msra.mxu0 0.0
  %741 = vmatprep.subr.mxu0 %v707
  %742 = vmatpush1.msra.mxu0 %v705
  %743 = vmatprep.subr.mxu0 0.0
  %744 = vmatpush2.msra.mxu0 0.0
  %745 = vmatprep.subr.mxu0 0.0
  %746 = vmatpush2.msra.mxu0 0.0
  %747 = vmatprep.subr.mxu0 0.0
  %748 = vmatpush2.msra.mxu0 0.0
  %749 = vmatprep.subr.mxu0 0.0
  %750 = vmatpush2.msra.mxu0 0.0
  %751 = vmatprep.subr.mxu0 0.0
  %752 = vmatpush2.msra.mxu0 0.0
  %753 = vmatprep.subr.mxu0 0.0
  %754 = vmatpush2.msra.mxu0 0.0
  %755 = vmatprep.subr.mxu0 0.0
  %756 = vmatpush2.msra.mxu0 0.0
  %757 = vmatprep.subr.mxu0 0.0
  %758 = vmatpush2.msra.mxu0 0.0
  %759 = vmatprep.subr.mxu0 0.0
  %760 = vmatpush2.msra.mxu0 0.0
  %761 = vmatprep.subr.mxu0 0.0
  %762 = vmatpush2.msra.mxu0 0.0
  %763 = vmatprep.subr.mxu0 0.0
  %764 = vmatpush2.msra.mxu0 0.0
  %765 = vmatprep.subr.mxu0 0.0
  %766 = vmatpush2.msra.mxu0 0.0
  %767 = vmatprep.subr.mxu0 0.0
  %768 = vmatpush2.msra.mxu0 0.0
  %769 = vmatprep.subr.mxu0 0.0
  %770 = vmatpush2.msra.mxu0 0.0
  %771 = vmatprep.subr.mxu0 0.0
  %772 = vmatpush2.msra.mxu0 0.0
  %773 = vmatprep.subr.mxu0 0.0
  %774 = vmatpush2.msra.mxu0 0.0
  %775 = vmatprep.mubr.f32.mxu0 0.0
  %776 = vmatmul.mubr.f32.gmra.mxu0 %v703
  %v777 = vpop.f32.mrf.mxu0
  %v778 = vadd.f32 0.0, %v777
  %v779 = vpop.f32.mrf.mxu0
  %v780 = vadd.f32 0.0, %v779
  %781 = vdwg.mxu0
  %782 = vmatprep.subr.mxu0 0.0
  %783 = vmatpush1.msra.mxu0 0.0
  %784 = vmatprep.subr.mxu0 0.0
  %785 = vmatpush1.msra.mxu0 0.0
  %786 = vmatprep.subr.mxu0 0.0
  %787 = vmatpush1.msra.mxu0 0.0
  %788 = vmatprep.subr.mxu0 0.0
  %789 = vmatpush1.msra.mxu0 0.0
  %790 = vmatprep.subr.mxu0 0.0
  %791 = vmatpush1.msra.mxu0 0.0
  %792 = vmatprep.subr.mxu0 0.0
  %793 = vmatpush1.msra.mxu0 0.0
  %794 = vmatprep.subr.mxu0 0.0
  %795 = vmatpush1.msra.mxu0 0.0
  %796 = vmatprep.subr.mxu0 0.0
  %797 = vmatpush1.msra.mxu0 0.0
  %798 = vmatprep.subr.mxu0 0.0
  %799 = vmatpush1.msra.mxu0 0.0
  %800 = vmatprep.subr.mxu0 0.0
  %801 = vmatpush1.msra.mxu0 0.0
  %802 = vmatprep.subr.mxu0 0.0
  %803 = vmatpush1.msra.mxu0 0.0
  %804 = vmatprep.subr.mxu0 0.0
  %805 = vmatpush1.msra.mxu0 0.0
  %806 = vmatprep.subr.mxu0 0.0
  %807 = vmatpush1.msra.mxu0 0.0
  %808 = vmatprep.subr.mxu0 0.0
  %809 = vmatpush1.msra.mxu0 0.0
  %810 = vmatprep.subr.mxu0 0.0
  %811 = vmatpush1.msra.mxu0 0.0
  %812 = vmatprep.subr.mxu0 0.0
  %813 = vmatpush1.msra.mxu0 %v709
  %814 = vmatprep.subr.mxu0 0.0
  %815 = vmatpush2.msra.mxu0 0.0
  %816 = vmatprep.subr.mxu0 0.0
  %817 = vmatpush2.msra.mxu0 0.0
  %818 = vmatprep.subr.mxu0 0.0
  %819 = vmatpush2.msra.mxu0 0.0
  %820 = vmatprep.subr.mxu0 0.0
  %821 = vmatpush2.msra.mxu0 0.0
  %822 = vmatprep.subr.mxu0 0.0
  %823 = vmatpush2.msra.mxu0 0.0
  %824 = vmatprep.subr.mxu0 0.0
  %825 = vmatpush2.msra.mxu0 0.0
  %826 = vmatprep.subr.mxu0 0.0
  %827 = vmatpush2.msra.mxu0 0.0
  %828 = vmatprep.subr.mxu0 0.0
  %829 = vmatpush2.msra.mxu0 0.0
  %830 = vmatprep.subr.mxu0 0.0
  %831 = vmatpush2.msra.mxu0 0.0
  %832 = vmatprep.subr.mxu0 0.0
  %833 = vmatpush2.msra.mxu0 0.0
  %834 = vmatprep.subr.mxu0 0.0
  %835 = vmatpush2.msra.mxu0 0.0
  %836 = vmatprep.subr.mxu0 0.0
  %837 = vmatpush2.msra.mxu0 0.0
  %838 = vmatprep.subr.mxu0 0.0
  %839 = vmatpush2.msra.mxu0 0.0
  %840 = vmatprep.subr.mxu0 0.0
  %841 = vmatpush2.msra.mxu0 0.0
  %842 = vmatprep.subr.mxu0 0.0
  %843 = vmatpush2.msra.mxu0 0.0
  %844 = vmatprep.subr.mxu0 0.0
  %845 = vmatpush2.msra.mxu0 0.0
  %846 = vmatprep.mubr.f32.mxu0 0.0
  %847 = vmatmul.mubr.f32.gmra.mxu0 %v703
  %v848 = vpop.f32.mrf.mxu0
  %v849 = vadd.f32 0.0, %v848
  %v850 = vpop.f32.mrf.mxu0
  %851 = vdwg.mxu0
  %v852 = vadd.f32 %v683, %v778
  %v853 = vadd.f32 %v684, %v780
  %v854 = vadd.f32 %v685, %v849
  %s855 = scalar_lea.vmem %s1, 40
  %v856 = vld [vmem:[%s855] sm:$0xff]
  %v857 = vld [vmem:[%s0] sm:$0xff]
  %v858 = vld [vmem:[%s0 + $0x8] sm:$0xf]
  %v861 = vcombine.high %v857, %v857
  %862 = vrot.lane.b32.xlu0 %v857, 114
  %v863 = vpop.permute.xlu0 %862
  %864 = vrot.lane.b32.xlu0 %v861, 114
  %v865 = vpop.permute.xlu0 %864
  %866 = vrot.lane.b32.xlu0 %v858, 114
  %v867 = vpop.permute.xlu0 %866
  %vm868 = vcmask 932864
  %v869 = vsel %vm868, %v863, %v865
  %v870 = vsel %vm868, %v865, %v867
  %v872 = vsel %vm46, %v856, 0
  %v874 = vsel %vm50, %v869, 0
  %v876 = vsel %vm50, %v870, 0
  %v878 = vsel %vm50, %v867, 0
  %880 = vmatprep.subr.mxu0 0.0
  %881 = vmatpush1.msra.mxu0 0.0
  %882 = vmatprep.subr.mxu0 0.0
  %883 = vmatpush1.msra.mxu0 0.0
  %884 = vmatprep.subr.mxu0 0.0
  %885 = vmatpush1.msra.mxu0 0.0
  %886 = vmatprep.subr.mxu0 0.0
  %887 = vmatpush1.msra.mxu0 0.0
  %888 = vmatprep.subr.mxu0 0.0
  %889 = vmatpush1.msra.mxu0 0.0
  %890 = vmatprep.subr.mxu0 0.0
  %891 = vmatpush1.msra.mxu0 0.0
  %892 = vmatprep.subr.mxu0 0.0
  %893 = vmatpush1.msra.mxu0 0.0
  %894 = vmatprep.subr.mxu0 0.0
  %895 = vmatpush1.msra.mxu0 0.0
  %896 = vmatprep.subr.mxu0 0.0
  %897 = vmatpush1.msra.mxu0 0.0
  %898 = vmatprep.subr.mxu0 0.0
  %899 = vmatpush1.msra.mxu0 0.0
  %900 = vmatprep.subr.mxu0 0.0
  %901 = vmatpush1.msra.mxu0 0.0
  %902 = vmatprep.subr.mxu0 0.0
  %903 = vmatpush1.msra.mxu0 0.0
  %904 = vmatprep.subr.mxu0 0.0
  %905 = vmatpush1.msra.mxu0 0.0
  %906 = vmatprep.subr.mxu0 0.0
  %907 = vmatpush1.msra.mxu0 0.0
  %908 = vmatprep.subr.mxu0 0.0
  %909 = vmatpush1.msra.mxu0 0.0
  %910 = vmatprep.subr.mxu0 %v876
  %911 = vmatpush1.msra.mxu0 %v874
  %912 = vmatprep.subr.mxu0 0.0
  %913 = vmatpush2.msra.mxu0 0.0
  %914 = vmatprep.subr.mxu0 0.0
  %915 = vmatpush2.msra.mxu0 0.0
  %916 = vmatprep.subr.mxu0 0.0
  %917 = vmatpush2.msra.mxu0 0.0
  %918 = vmatprep.subr.mxu0 0.0
  %919 = vmatpush2.msra.mxu0 0.0
  %920 = vmatprep.subr.mxu0 0.0
  %921 = vmatpush2.msra.mxu0 0.0
  %922 = vmatprep.subr.mxu0 0.0
  %923 = vmatpush2.msra.mxu0 0.0
  %924 = vmatprep.subr.mxu0 0.0
  %925 = vmatpush2.msra.mxu0 0.0
  %926 = vmatprep.subr.mxu0 0.0
  %927 = vmatpush2.msra.mxu0 0.0
  %928 = vmatprep.subr.mxu0 0.0
  %929 = vmatpush2.msra.mxu0 0.0
  %930 = vmatprep.subr.mxu0 0.0
  %931 = vmatpush2.msra.mxu0 0.0
  %932 = vmatprep.subr.mxu0 0.0
  %933 = vmatpush2.msra.mxu0 0.0
  %934 = vmatprep.subr.mxu0 0.0
  %935 = vmatpush2.msra.mxu0 0.0
  %936 = vmatprep.subr.mxu0 0.0
  %937 = vmatpush2.msra.mxu0 0.0
  %938 = vmatprep.subr.mxu0 0.0
  %939 = vmatpush2.msra.mxu0 0.0
  %940 = vmatprep.subr.mxu0 0.0
  %941 = vmatpush2.msra.mxu0 0.0
  %942 = vmatprep.subr.mxu0 0.0
  %943 = vmatpush2.msra.mxu0 0.0
  %944 = vmatprep.mubr.f32.mxu0 0.0
  %945 = vmatmul.mubr.f32.gmra.mxu0 %v872
  %v946 = vpop.f32.mrf.mxu0
  %v947 = vadd.f32 0.0, %v946
  %v948 = vpop.f32.mrf.mxu0
  %v949 = vadd.f32 0.0, %v948
  %950 = vdwg.mxu0
  %951 = vmatprep.subr.mxu0 0.0
  %952 = vmatpush1.msra.mxu0 0.0
  %953 = vmatprep.subr.mxu0 0.0
  %954 = vmatpush1.msra.mxu0 0.0
  %955 = vmatprep.subr.mxu0 0.0
  %956 = vmatpush1.msra.mxu0 0.0
  %957 = vmatprep.subr.mxu0 0.0
  %958 = vmatpush1.msra.mxu0 0.0
  %959 = vmatprep.subr.mxu0 0.0
  %960 = vmatpush1.msra.mxu0 0.0
  %961 = vmatprep.subr.mxu0 0.0
  %962 = vmatpush1.msra.mxu0 0.0
  %963 = vmatprep.subr.mxu0 0.0
  %964 = vmatpush1.msra.mxu0 0.0
  %965 = vmatprep.subr.mxu0 0.0
  %966 = vmatpush1.msra.mxu0 0.0
  %967 = vmatprep.subr.mxu0 0.0
  %968 = vmatpush1.msra.mxu0 0.0
  %969 = vmatprep.subr.mxu0 0.0
  %970 = vmatpush1.msra.mxu0 0.0
  %971 = vmatprep.subr.mxu0 0.0
  %972 = vmatpush1.msra.mxu0 0.0
  %973 = vmatprep.subr.mxu0 0.0
  %974 = vmatpush1.msra.mxu0 0.0
  %975 = vmatprep.subr.mxu0 0.0
  %976 = vmatpush1.msra.mxu0 0.0
  %977 = vmatprep.subr.mxu0 0.0
  %978 = vmatpush1.msra.mxu0 0.0
  %979 = vmatprep.subr.mxu0 0.0
  %980 = vmatpush1.msra.mxu0 0.0
  %981 = vmatprep.subr.mxu0 0.0
  %982 = vmatpush1.msra.mxu0 %v878
  %983 = vmatprep.subr.mxu0 0.0
  %984 = vmatpush2.msra.mxu0 0.0
  %985 = vmatprep.subr.mxu0 0.0
  %986 = vmatpush2.msra.mxu0 0.0
  %987 = vmatprep.subr.mxu0 0.0
  %988 = vmatpush2.msra.mxu0 0.0
  %989 = vmatprep.subr.mxu0 0.0
  %990 = vmatpush2.msra.mxu0 0.0
  %991 = vmatprep.subr.mxu0 0.0
  %992 = vmatpush2.msra.mxu0 0.0
  %993 = vmatprep.subr.mxu0 0.0
  %994 = vmatpush2.msra.mxu0 0.0
  %995 = vmatprep.subr.mxu0 0.0
  %996 = vmatpush2.msra.mxu0 0.0
  %997 = vmatprep.subr.mxu0 0.0
  %998 = vmatpush2.msra.mxu0 0.0
  %999 = vmatprep.subr.mxu0 0.0
  %1000 = vmatpush2.msra.mxu0 0.0
  %1001 = vmatprep.subr.mxu0 0.0
  %1002 = vmatpush2.msra.mxu0 0.0
  %1003 = vmatprep.subr.mxu0 0.0
  %1004 = vmatpush2.msra.mxu0 0.0
  %1005 = vmatprep.subr.mxu0 0.0
  %1006 = vmatpush2.msra.mxu0 0.0
  %1007 = vmatprep.subr.mxu0 0.0
  %1008 = vmatpush2.msra.mxu0 0.0
  %1009 = vmatprep.subr.mxu0 0.0
  %1010 = vmatpush2.msra.mxu0 0.0
  %1011 = vmatprep.subr.mxu0 0.0
  %1012 = vmatpush2.msra.mxu0 0.0
  %1013 = vmatprep.subr.mxu0 0.0
  %1014 = vmatpush2.msra.mxu0 0.0
  %1015 = vmatprep.mubr.f32.mxu0 0.0
  %1016 = vmatmul.mubr.f32.gmra.mxu0 %v872
  %v1017 = vpop.f32.mrf.mxu0
  %v1018 = vadd.f32 0.0, %v1017
  %v1019 = vpop.f32.mrf.mxu0
  %1020 = vdwg.mxu0
  %v1021 = vadd.f32 %v852, %v947
  %v1022 = vadd.f32 %v853, %v949
  %v1023 = vadd.f32 %v854, %v1018
  %s1024 = scalar_lea.vmem %s1, 48
  %v1025 = vld [vmem:[%s1024] sm:$0xff]
  %v1026 = vld [vmem:[%s0] sm:$0xff]
  %v1027 = vld [vmem:[%s0 + $0x8] sm:$0xf]
  %v1030 = vcombine.high %v1026, %v1026
  %1031 = vrot.lane.b32.xlu0 %v1026, 104
  %v1032 = vpop.permute.xlu0 %1031
  %1033 = vrot.lane.b32.xlu0 %v1030, 104
  %v1034 = vpop.permute.xlu0 %1033
  %1035 = vrot.lane.b32.xlu0 %v1027, 104
  %v1036 = vpop.permute.xlu0 %1035
  %vm1037 = vcmask 850944
  %v1038 = vsel %vm1037, %v1032, %v1034
  %v1039 = vsel %vm1037, %v1034, %v1036
  %v1041 = vsel %vm46, %v1025, 0
  %v1043 = vsel %vm50, %v1038, 0
  %v1045 = vsel %vm50, %v1039, 0
  %v1047 = vsel %vm50, %v1036, 0
  %1049 = vmatprep.subr.mxu0 0.0
  %1050 = vmatpush1.msra.mxu0 0.0
  %1051 = vmatprep.subr.mxu0 0.0
  %1052 = vmatpush1.msra.mxu0 0.0
  %1053 = vmatprep.subr.mxu0 0.0
  %1054 = vmatpush1.msra.mxu0 0.0
  %1055 = vmatprep.subr.mxu0 0.0
  %1056 = vmatpush1.msra.mxu0 0.0
  %1057 = vmatprep.subr.mxu0 0.0
  %1058 = vmatpush1.msra.mxu0 0.0
  %1059 = vmatprep.subr.mxu0 0.0
  %1060 = vmatpush1.msra.mxu0 0.0
  %1061 = vmatprep.subr.mxu0 0.0
  %1062 = vmatpush1.msra.mxu0 0.0
  %1063 = vmatprep.subr.mxu0 0.0
  %1064 = vmatpush1.msra.mxu0 0.0
  %1065 = vmatprep.subr.mxu0 0.0
  %1066 = vmatpush1.msra.mxu0 0.0
  %1067 = vmatprep.subr.mxu0 0.0
  %1068 = vmatpush1.msra.mxu0 0.0
  %1069 = vmatprep.subr.mxu0 0.0
  %1070 = vmatpush1.msra.mxu0 0.0
  %1071 = vmatprep.subr.mxu0 0.0
  %1072 = vmatpush1.msra.mxu0 0.0
  %1073 = vmatprep.subr.mxu0 0.0
  %1074 = vmatpush1.msra.mxu0 0.0
  %1075 = vmatprep.subr.mxu0 0.0
  %1076 = vmatpush1.msra.mxu0 0.0
  %1077 = vmatprep.subr.mxu0 0.0
  %1078 = vmatpush1.msra.mxu0 0.0
  %1079 = vmatprep.subr.mxu0 %v1045
  %1080 = vmatpush1.msra.mxu0 %v1043
  %1081 = vmatprep.subr.mxu0 0.0
  %1082 = vmatpush2.msra.mxu0 0.0
  %1083 = vmatprep.subr.mxu0 0.0
  %1084 = vmatpush2.msra.mxu0 0.0
  %1085 = vmatprep.subr.mxu0 0.0
  %1086 = vmatpush2.msra.mxu0 0.0
  %1087 = vmatprep.subr.mxu0 0.0
  %1088 = vmatpush2.msra.mxu0 0.0
  %1089 = vmatprep.subr.mxu0 0.0
  %1090 = vmatpush2.msra.mxu0 0.0
  %1091 = vmatprep.subr.mxu0 0.0
  %1092 = vmatpush2.msra.mxu0 0.0
  %1093 = vmatprep.subr.mxu0 0.0
  %1094 = vmatpush2.msra.mxu0 0.0
  %1095 = vmatprep.subr.mxu0 0.0
  %1096 = vmatpush2.msra.mxu0 0.0
  %1097 = vmatprep.subr.mxu0 0.0
  %1098 = vmatpush2.msra.mxu0 0.0
  %1099 = vmatprep.subr.mxu0 0.0
  %1100 = vmatpush2.msra.mxu0 0.0
  %1101 = vmatprep.subr.mxu0 0.0
  %1102 = vmatpush2.msra.mxu0 0.0
  %1103 = vmatprep.subr.mxu0 0.0
  %1104 = vmatpush2.msra.mxu0 0.0
  %1105 = vmatprep.subr.mxu0 0.0
  %1106 = vmatpush2.msra.mxu0 0.0
  %1107 = vmatprep.subr.mxu0 0.0
  %1108 = vmatpush2.msra.mxu0 0.0
  %1109 = vmatprep.subr.mxu0 0.0
  %1110 = vmatpush2.msra.mxu0 0.0
  %1111 = vmatprep.subr.mxu0 0.0
  %1112 = vmatpush2.msra.mxu0 0.0
  %1113 = vmatprep.mubr.f32.mxu0 0.0
  %1114 = vmatmul.mubr.f32.gmra.mxu0 %v1041
  %v1115 = vpop.f32.mrf.mxu0
  %v1116 = vadd.f32 0.0, %v1115
  %v1117 = vpop.f32.mrf.mxu0
  %v1118 = vadd.f32 0.0, %v1117
  %1119 = vdwg.mxu0
  %1120 = vmatprep.subr.mxu0 0.0
  %1121 = vmatpush1.msra.mxu0 0.0
  %1122 = vmatprep.subr.mxu0 0.0
  %1123 = vmatpush1.msra.mxu0 0.0
  %1124 = vmatprep.subr.mxu0 0.0
  %1125 = vmatpush1.msra.mxu0 0.0
  %1126 = vmatprep.subr.mxu0 0.0
  %1127 = vmatpush1.msra.mxu0 0.0
  %1128 = vmatprep.subr.mxu0 0.0
  %1129 = vmatpush1.msra.mxu0 0.0
  %1130 = vmatprep.subr.mxu0 0.0
  %1131 = vmatpush1.msra.mxu0 0.0
  %1132 = vmatprep.subr.mxu0 0.0
  %1133 = vmatpush1.msra.mxu0 0.0
  %1134 = vmatprep.subr.mxu0 0.0
  %1135 = vmatpush1.msra.mxu0 0.0
  %1136 = vmatprep.subr.mxu0 0.0
  %1137 = vmatpush1.msra.mxu0 0.0
  %1138 = vmatprep.subr.mxu0 0.0
  %1139 = vmatpush1.msra.mxu0 0.0
  %1140 = vmatprep.subr.mxu0 0.0
  %1141 = vmatpush1.msra.mxu0 0.0
  %1142 = vmatprep.subr.mxu0 0.0
  %1143 = vmatpush1.msra.mxu0 0.0
  %1144 = vmatprep.subr.mxu0 0.0
  %1145 = vmatpush1.msra.mxu0 0.0
  %1146 = vmatprep.subr.mxu0 0.0
  %1147 = vmatpush1.msra.mxu0 0.0
  %1148 = vmatprep.subr.mxu0 0.0
  %1149 = vmatpush1.msra.mxu0 0.0
  %1150 = vmatprep.subr.mxu0 0.0
  %1151 = vmatpush1.msra.mxu0 %v1047
  %1152 = vmatprep.subr.mxu0 0.0
  %1153 = vmatpush2.msra.mxu0 0.0
  %1154 = vmatprep.subr.mxu0 0.0
  %1155 = vmatpush2.msra.mxu0 0.0
  %1156 = vmatprep.subr.mxu0 0.0
  %1157 = vmatpush2.msra.mxu0 0.0
  %1158 = vmatprep.subr.mxu0 0.0
  %1159 = vmatpush2.msra.mxu0 0.0
  %1160 = vmatprep.subr.mxu0 0.0
  %1161 = vmatpush2.msra.mxu0 0.0
  %1162 = vmatprep.subr.mxu0 0.0
  %1163 = vmatpush2.msra.mxu0 0.0
  %1164 = vmatprep.subr.mxu0 0.0
  %1165 = vmatpush2.msra.mxu0 0.0
  %1166 = vmatprep.subr.mxu0 0.0
  %1167 = vmatpush2.msra.mxu0 0.0
  %1168 = vmatprep.subr.mxu0 0.0
  %1169 = vmatpush2.msra.mxu0 0.0
  %1170 = vmatprep.subr.mxu0 0.0
  %1171 = vmatpush2.msra.mxu0 0.0
  %1172 = vmatprep.subr.mxu0 0.0
  %1173 = vmatpush2.msra.mxu0 0.0
  %1174 = vmatprep.subr.mxu0 0.0
  %1175 = vmatpush2.msra.mxu0 0.0
  %1176 = vmatprep.subr.mxu0 0.0
  %1177 = vmatpush2.msra.mxu0 0.0
  %1178 = vmatprep.subr.mxu0 0.0
  %1179 = vmatpush2.msra.mxu0 0.0
  %1180 = vmatprep.subr.mxu0 0.0
  %1181 = vmatpush2.msra.mxu0 0.0
  %1182 = vmatprep.subr.mxu0 0.0
  %1183 = vmatpush2.msra.mxu0 0.0
  %1184 = vmatprep.mubr.f32.mxu0 0.0
  %1185 = vmatmul.mubr.f32.gmra.mxu0 %v1041
  %v1186 = vpop.f32.mrf.mxu0
  %v1187 = vadd.f32 0.0, %v1186
  %v1188 = vpop.f32.mrf.mxu0
  %1189 = vdwg.mxu0
  %v1190 = vadd.f32 %v1021, %v1116
  %v1191 = vadd.f32 %v1022, %v1118
  %v1192 = vadd.f32 %v1023, %v1187
  %s1193 = scalar_lea.vmem %s1, 56
  %v1194 = vld [vmem:[%s1193] sm:$0xff]
  %v1195 = vld [vmem:[%s0] sm:$0xff]
  %v1196 = vld [vmem:[%s0 + $0x8] sm:$0xf]
  %v1199 = vcombine.high %v1195, %v1195
  %1200 = vrot.lane.b32.xlu0 %v1195, 103
  %v1201 = vpop.permute.xlu0 %1200
  %1202 = vrot.lane.b32.xlu0 %v1199, 103
  %v1203 = vpop.permute.xlu0 %1202
  %1204 = vrot.lane.b32.xlu0 %v1196, 103
  %v1205 = vpop.permute.xlu0 %1204
  %vm1206 = vcmask 842752
  %v1207 = vsel %vm1206, %v1201, %v1203
  %v1208 = vsel %vm1206, %v1203, %v1205
  %v1210 = vsel %vm46, %v1194, 0
  %v1212 = vsel %vm50, %v1207, 0
  %v1214 = vsel %vm50, %v1208, 0
  %v1216 = vsel %vm50, %v1205, 0
  %1218 = vmatprep.subr.mxu0 0.0
  %1219 = vmatpush1.msra.mxu0 0.0
  %1220 = vmatprep.subr.mxu0 0.0
  %1221 = vmatpush1.msra.mxu0 0.0
  %1222 = vmatprep.subr.mxu0 0.0
  %1223 = vmatpush1.msra.mxu0 0.0
  %1224 = vmatprep.subr.mxu0 0.0
  %1225 = vmatpush1.msra.mxu0 0.0
  %1226 = vmatprep.subr.mxu0 0.0
  %1227 = vmatpush1.msra.mxu0 0.0
  %1228 = vmatprep.subr.mxu0 0.0
  %1229 = vmatpush1.msra.mxu0 0.0
  %1230 = vmatprep.subr.mxu0 0.0
  %1231 = vmatpush1.msra.mxu0 0.0
  %1232 = vmatprep.subr.mxu0 0.0
  %1233 = vmatpush1.msra.mxu0 0.0
  %1234 = vmatprep.subr.mxu0 0.0
  %1235 = vmatpush1.msra.mxu0 0.0
  %1236 = vmatprep.subr.mxu0 0.0
  %1237 = vmatpush1.msra.mxu0 0.0
  %1238 = vmatprep.subr.mxu0 0.0
  %1239 = vmatpush1.msra.mxu0 0.0
  %1240 = vmatprep.subr.mxu0 0.0
  %1241 = vmatpush1.msra.mxu0 0.0
  %1242 = vmatprep.subr.mxu0 0.0
  %1243 = vmatpush1.msra.mxu0 0.0
  %1244 = vmatprep.subr.mxu0 0.0
  %1245 = vmatpush1.msra.mxu0 0.0
  %1246 = vmatprep.subr.mxu0 0.0
  %1247 = vmatpush1.msra.mxu0 0.0
  %1248 = vmatprep.subr.mxu0 %v1214
  %1249 = vmatpush1.msra.mxu0 %v1212
  %1250 = vmatprep.subr.mxu0 0.0
  %1251 = vmatpush2.msra.mxu0 0.0
  %1252 = vmatprep.subr.mxu0 0.0
  %1253 = vmatpush2.msra.mxu0 0.0
  %1254 = vmatprep.subr.mxu0 0.0
  %1255 = vmatpush2.msra.mxu0 0.0
  %1256 = vmatprep.subr.mxu0 0.0
  %1257 = vmatpush2.msra.mxu0 0.0
  %1258 = vmatprep.subr.mxu0 0.0
  %1259 = vmatpush2.msra.mxu0 0.0
  %1260 = vmatprep.subr.mxu0 0.0
  %1261 = vmatpush2.msra.mxu0 0.0
  %1262 = vmatprep.subr.mxu0 0.0
  %1263 = vmatpush2.msra.mxu0 0.0
  %1264 = vmatprep.subr.mxu0 0.0
  %1265 = vmatpush2.msra.mxu0 0.0
  %1266 = vmatprep.subr.mxu0 0.0
  %1267 = vmatpush2.msra.mxu0 0.0
  %1268 = vmatprep.subr.mxu0 0.0
  %1269 = vmatpush2.msra.mxu0 0.0
  %1270 = vmatprep.subr.mxu0 0.0
  %1271 = vmatpush2.msra.mxu0 0.0
  %1272 = vmatprep.subr.mxu0 0.0
  %1273 = vmatpush2.msra.mxu0 0.0
  %1274 = vmatprep.subr.mxu0 0.0
  %1275 = vmatpush2.msra.mxu0 0.0
  %1276 = vmatprep.subr.mxu0 0.0
  %1277 = vmatpush2.msra.mxu0 0.0
  %1278 = vmatprep.subr.mxu0 0.0
  %1279 = vmatpush2.msra.mxu0 0.0
  %1280 = vmatprep.subr.mxu0 0.0
  %1281 = vmatpush2.msra.mxu0 0.0
  %1282 = vmatprep.mubr.f32.mxu0 0.0
  %1283 = vmatmul.mubr.f32.gmra.mxu0 %v1210
  %v1284 = vpop.f32.mrf.mxu0
  %v1285 = vadd.f32 0.0, %v1284
  %v1286 = vpop.f32.mrf.mxu0
  %v1287 = vadd.f32 0.0, %v1286
  %1288 = vdwg.mxu0
  %1289 = vmatprep.subr.mxu0 0.0
  %1290 = vmatpush1.msra.mxu0 0.0
  %1291 = vmatprep.subr.mxu0 0.0
  %1292 = vmatpush1.msra.mxu0 0.0
  %1293 = vmatprep.subr.mxu0 0.0
  %1294 = vmatpush1.msra.mxu0 0.0
  %1295 = vmatprep.subr.mxu0 0.0
  %1296 = vmatpush1.msra.mxu0 0.0
  %1297 = vmatprep.subr.mxu0 0.0
  %1298 = vmatpush1.msra.mxu0 0.0
  %1299 = vmatprep.subr.mxu0 0.0
  %1300 = vmatpush1.msra.mxu0 0.0
  %1301 = vmatprep.subr.mxu0 0.0
  %1302 = vmatpush1.msra.mxu0 0.0
  %1303 = vmatprep.subr.mxu0 0.0
  %1304 = vmatpush1.msra.mxu0 0.0
  %1305 = vmatprep.subr.mxu0 0.0
  %1306 = vmatpush1.msra.mxu0 0.0
  %1307 = vmatprep.subr.mxu0 0.0
  %1308 = vmatpush1.msra.mxu0 0.0
  %1309 = vmatprep.subr.mxu0 0.0
  %1310 = vmatpush1.msra.mxu0 0.0
  %1311 = vmatprep.subr.mxu0 0.0
  %1312 = vmatpush1.msra.mxu0 0.0
  %1313 = vmatprep.subr.mxu0 0.0
  %1314 = vmatpush1.msra.mxu0 0.0
  %1315 = vmatprep.subr.mxu0 0.0
  %1316 = vmatpush1.msra.mxu0 0.0
  %1317 = vmatprep.subr.mxu0 0.0
  %1318 = vmatpush1.msra.mxu0 0.0
  %1319 = vmatprep.subr.mxu0 0.0
  %1320 = vmatpush1.msra.mxu0 %v1216
  %1321 = vmatprep.subr.mxu0 0.0
  %1322 = vmatpush2.msra.mxu0 0.0
  %1323 = vmatprep.subr.mxu0 0.0
  %1324 = vmatpush2.msra.mxu0 0.0
  %1325 = vmatprep.subr.mxu0 0.0
  %1326 = vmatpush2.msra.mxu0 0.0
  %1327 = vmatprep.subr.mxu0 0.0
  %1328 = vmatpush2.msra.mxu0 0.0
  %1329 = vmatprep.subr.mxu0 0.0
  %1330 = vmatpush2.msra.mxu0 0.0
  %1331 = vmatprep.subr.mxu0 0.0
  %1332 = vmatpush2.msra.mxu0 0.0
  %1333 = vmatprep.subr.mxu0 0.0
  %1334 = vmatpush2.msra.mxu0 0.0
  %1335 = vmatprep.subr.mxu0 0.0
  %1336 = vmatpush2.msra.mxu0 0.0
  %1337 = vmatprep.subr.mxu0 0.0
  %1338 = vmatpush2.msra.mxu0 0.0
  %1339 = vmatprep.subr.mxu0 0.0
  %1340 = vmatpush2.msra.mxu0 0.0
  %1341 = vmatprep.subr.mxu0 0.0
  %1342 = vmatpush2.msra.mxu0 0.0
  %1343 = vmatprep.subr.mxu0 0.0
  %1344 = vmatpush2.msra.mxu0 0.0
  %1345 = vmatprep.subr.mxu0 0.0
  %1346 = vmatpush2.msra.mxu0 0.0
  %1347 = vmatprep.subr.mxu0 0.0
  %1348 = vmatpush2.msra.mxu0 0.0
  %1349 = vmatprep.subr.mxu0 0.0
  %1350 = vmatpush2.msra.mxu0 0.0
  %1351 = vmatprep.subr.mxu0 0.0
  %1352 = vmatpush2.msra.mxu0 0.0
  %1353 = vmatprep.mubr.f32.mxu0 0.0
  %1354 = vmatmul.mubr.f32.gmra.mxu0 %v1210
  %v1355 = vpop.f32.mrf.mxu0
  %v1356 = vadd.f32 0.0, %v1355
  %v1357 = vpop.f32.mrf.mxu0
  %1358 = vdwg.mxu0
  %v1359 = vadd.f32 %v1190, %v1285
  %v1360 = vadd.f32 %v1191, %v1287
  %v1361 = vadd.f32 %v1192, %v1356
  %s1362 = scalar_lea.vmem %s1, 64
  %v1363 = vld [vmem:[%s1362] sm:$0xff]
  %v1364 = vld [vmem:[%s0] sm:$0xff]
  %v1365 = vld [vmem:[%s0 + $0x8] sm:$0xf]
  %v1368 = vcombine.high %v1364, %v1364
  %1369 = vrot.lane.b32.xlu0 %v1364, 102
  %v1370 = vpop.permute.xlu0 %1369
  %1371 = vrot.lane.b32.xlu0 %v1368, 102
  %v1372 = vpop.permute.xlu0 %1371
  %1373 = vrot.lane.b32.xlu0 %v1365, 102
  %v1374 = vpop.permute.xlu0 %1373
  %vm1375 = vcmask 834560
  %v1376 = vsel %vm1375, %v1370, %v1372
  %v1377 = vsel %vm1375, %v1372, %v1374
  %v1379 = vsel %vm46, %v1363, 0
  %v1381 = vsel %vm50, %v1376, 0
  %v1383 = vsel %vm50, %v1377, 0
  %v1385 = vsel %vm50, %v1374, 0
  %1387 = vmatprep.subr.mxu0 0.0
  %1388 = vmatpush1.msra.mxu0 0.0
  %1389 = vmatprep.subr.mxu0 0.0
  %1390 = vmatpush1.msra.mxu0 0.0
  %1391 = vmatprep.subr.mxu0 0.0
  %1392 = vmatpush1.msra.mxu0 0.0
  %1393 = vmatprep.subr.mxu0 0.0
  %1394 = vmatpush1.msra.mxu0 0.0
  %1395 = vmatprep.subr.mxu0 0.0
  %1396 = vmatpush1.msra.mxu0 0.0
  %1397 = vmatprep.subr.mxu0 0.0
  %1398 = vmatpush1.msra.mxu0 0.0
  %1399 = vmatprep.subr.mxu0 0.0
  %1400 = vmatpush1.msra.mxu0 0.0
  %1401 = vmatprep.subr.mxu0 0.0
  %1402 = vmatpush1.msra.mxu0 0.0
  %1403 = vmatprep.subr.mxu0 0.0
  %1404 = vmatpush1.msra.mxu0 0.0
  %1405 = vmatprep.subr.mxu0 0.0
  %1406 = vmatpush1.msra.mxu0 0.0
  %1407 = vmatprep.subr.mxu0 0.0
  %1408 = vmatpush1.msra.mxu0 0.0
  %1409 = vmatprep.subr.mxu0 0.0
  %1410 = vmatpush1.msra.mxu0 0.0
  %1411 = vmatprep.subr.mxu0 0.0
  %1412 = vmatpush1.msra.mxu0 0.0
  %1413 = vmatprep.subr.mxu0 0.0
  %1414 = vmatpush1.msra.mxu0 0.0
  %1415 = vmatprep.subr.mxu0 0.0
  %1416 = vmatpush1.msra.mxu0 0.0
  %1417 = vmatprep.subr.mxu0 %v1383
  %1418 = vmatpush1.msra.mxu0 %v1381
  %1419 = vmatprep.subr.mxu0 0.0
  %1420 = vmatpush2.msra.mxu0 0.0
  %1421 = vmatprep.subr.mxu0 0.0
  %1422 = vmatpush2.msra.mxu0 0.0
  %1423 = vmatprep.subr.mxu0 0.0
  %1424 = vmatpush2.msra.mxu0 0.0
  %1425 = vmatprep.subr.mxu0 0.0
  %1426 = vmatpush2.msra.mxu0 0.0
  %1427 = vmatprep.subr.mxu0 0.0
  %1428 = vmatpush2.msra.mxu0 0.0
  %1429 = vmatprep.subr.mxu0 0.0
  %1430 = vmatpush2.msra.mxu0 0.0
  %1431 = vmatprep.subr.mxu0 0.0
  %1432 = vmatpush2.msra.mxu0 0.0
  %1433 = vmatprep.subr.mxu0 0.0
  %1434 = vmatpush2.msra.mxu0 0.0
  %1435 = vmatprep.subr.mxu0 0.0
  %1436 = vmatpush2.msra.mxu0 0.0
  %1437 = vmatprep.subr.mxu0 0.0
  %1438 = vmatpush2.msra.mxu0 0.0
  %1439 = vmatprep.subr.mxu0 0.0
  %1440 = vmatpush2.msra.mxu0 0.0
  %1441 = vmatprep.subr.mxu0 0.0
  %1442 = vmatpush2.msra.mxu0 0.0
  %1443 = vmatprep.subr.mxu0 0.0
  %1444 = vmatpush2.msra.mxu0 0.0
  %1445 = vmatprep.subr.mxu0 0.0
  %1446 = vmatpush2.msra.mxu0 0.0
  %1447 = vmatprep.subr.mxu0 0.0
  %1448 = vmatpush2.msra.mxu0 0.0
  %1449 = vmatprep.subr.mxu0 0.0
  %1450 = vmatpush2.msra.mxu0 0.0
  %1451 = vmatprep.mubr.f32.mxu0 0.0
  %1452 = vmatmul.mubr.f32.gmra.mxu0 %v1379
  %v1453 = vpop.f32.mrf.mxu0
  %v1454 = vadd.f32 0.0, %v1453
  %v1455 = vpop.f32.mrf.mxu0
  %v1456 = vadd.f32 0.0, %v1455
  %1457 = vdwg.mxu0
  %1458 = vmatprep.subr.mxu0 0.0
  %1459 = vmatpush1.msra.mxu0 0.0
  %1460 = vmatprep.subr.mxu0 0.0
  %1461 = vmatpush1.msra.mxu0 0.0
  %1462 = vmatprep.subr.mxu0 0.0
  %1463 = vmatpush1.msra.mxu0 0.0
  %1464 = vmatprep.subr.mxu0 0.0
  %1465 = vmatpush1.msra.mxu0 0.0
  %1466 = vmatprep.subr.mxu0 0.0
  %1467 = vmatpush1.msra.mxu0 0.0
  %1468 = vmatprep.subr.mxu0 0.0
  %1469 = vmatpush1.msra.mxu0 0.0
  %1470 = vmatprep.subr.mxu0 0.0
  %1471 = vmatpush1.msra.mxu0 0.0
  %1472 = vmatprep.subr.mxu0 0.0
  %1473 = vmatpush1.msra.mxu0 0.0
  %1474 = vmatprep.subr.mxu0 0.0
  %1475 = vmatpush1.msra.mxu0 0.0
  %1476 = vmatprep.subr.mxu0 0.0
  %1477 = vmatpush1.msra.mxu0 0.0
  %1478 = vmatprep.subr.mxu0 0.0
  %1479 = vmatpush1.msra.mxu0 0.0
  %1480 = vmatprep.subr.mxu0 0.0
  %1481 = vmatpush1.msra.mxu0 0.0
  %1482 = vmatprep.subr.mxu0 0.0
  %1483 = vmatpush1.msra.mxu0 0.0
  %1484 = vmatprep.subr.mxu0 0.0
  %1485 = vmatpush1.msra.mxu0 0.0
  %1486 = vmatprep.subr.mxu0 0.0
  %1487 = vmatpush1.msra.mxu0 0.0
  %1488 = vmatprep.subr.mxu0 0.0
  %1489 = vmatpush1.msra.mxu0 %v1385
  %1490 = vmatprep.subr.mxu0 0.0
  %1491 = vmatpush2.msra.mxu0 0.0
  %1492 = vmatprep.subr.mxu0 0.0
  %1493 = vmatpush2.msra.mxu0 0.0
  %1494 = vmatprep.subr.mxu0 0.0
  %1495 = vmatpush2.msra.mxu0 0.0
  %1496 = vmatprep.subr.mxu0 0.0
  %1497 = vmatpush2.msra.mxu0 0.0
  %1498 = vmatprep.subr.mxu0 0.0
  %1499 = vmatpush2.msra.mxu0 0.0
  %1500 = vmatprep.subr.mxu0 0.0
  %1501 = vmatpush2.msra.mxu0 0.0
  %1502 = vmatprep.subr.mxu0 0.0
  %1503 = vmatpush2.msra.mxu0 0.0
  %1504 = vmatprep.subr.mxu0 0.0
  %1505 = vmatpush2.msra.mxu0 0.0
  %1506 = vmatprep.subr.mxu0 0.0
  %1507 = vmatpush2.msra.mxu0 0.0
  %1508 = vmatprep.subr.mxu0 0.0
  %1509 = vmatpush2.msra.mxu0 0.0
  %1510 = vmatprep.subr.mxu0 0.0
  %1511 = vmatpush2.msra.mxu0 0.0
  %1512 = vmatprep.subr.mxu0 0.0
  %1513 = vmatpush2.msra.mxu0 0.0
  %1514 = vmatprep.subr.mxu0 0.0
  %1515 = vmatpush2.msra.mxu0 0.0
  %1516 = vmatprep.subr.mxu0 0.0
  %1517 = vmatpush2.msra.mxu0 0.0
  %1518 = vmatprep.subr.mxu0 0.0
  %1519 = vmatpush2.msra.mxu0 0.0
  %1520 = vmatprep.subr.mxu0 0.0
  %1521 = vmatpush2.msra.mxu0 0.0
  %1522 = vmatprep.mubr.f32.mxu0 0.0
  %1523 = vmatmul.mubr.f32.gmra.mxu0 %v1379
  %v1524 = vpop.f32.mrf.mxu0
  %v1525 = vadd.f32 0.0, %v1524
  %v1526 = vpop.f32.mrf.mxu0
  %1527 = vdwg.mxu0
  %v1528 = vadd.f32 %v1359, %v1454
  %v1529 = vadd.f32 %v1360, %v1456
  %v1530 = vadd.f32 %v1361, %v1525
  %v1531 = vld [vmem:[%s7] sm:$0x7]
  %v1533 = vlaneseq
  %v1534 = vshrl.u32 %v1533, 7
  %v1535 = vsub.s32 0, %v1534
  %v1536 = vrot.slane %v1531, %v1535
  %v1537 = vlaneseq
  %v1538 = vshrl.u32 %v1537, 7
  %v1539 = vsub.s32 1, %v1538
  %v1540 = vrot.slane %v1531, %v1539
  %v1541 = vlaneseq
  %v1542 = vshrl.u32 %v1541, 7
  %v1543 = vsub.s32 2, %v1542
  %v1544 = vrot.slane %v1531, %v1543
  %v1548 = vmul.f32 %v1528, %v1536
  %v1549 = vmul.f32 %v1529, %v1540
  %v1550 = vmul.f32 %v1530, %v1544
  %v1551 = vadd.f32 %v1548, %v1549
  %vm1552 = vcmask 474112
  %v1553 = vsel %vm1552, %v1550, 0.0
  %v1554 = vadd.f32 %v1551, %v1553
  %1555 = vadd.xlane.f32.xlu0 %v1554
  %v1556 = vpop.xlane.xlu0 %1555
  %v1557 = vmul.f32 %v1556, 0.005
  %v1558 = vmul.f32 %v1548, %v1528
  %v1559 = vmul.f32 %v1549, %v1529
  %v1560 = vmul.f32 %v1550, %v1530
  %v1561 = vadd.f32 %v1558, %v1559
  %v1562 = vsel %vm1552, %v1560, 0.0
  %v1563 = vadd.f32 %v1561, %v1562
  %1564 = vadd.xlane.f32.xlu0 %v1563
  %v1565 = vpop.xlane.xlu0 %1564
  %v1566 = vmul.f32 %v1565, 0.005
  %v1567 = vmul.f32 %v1557, %v1557
  %v1568 = vsub.f32 %v1566, %v1567
  %v1569 = vmax.f32 %v1568, 0.0
  %v1570 = vadd.f32 %v1569, 1e-05
  %v1571 = vrsqrt.pop %v1570
  %v1572 = vld [vmem:[%s3] sm:$0xff]
  %v1573 = vmul.f32 %v1571, %v1572
  %v1574 = vld [vmem:[%s4] sm:$0xff]
  %v1575 = vmul.f32 %v1557, %v1573
  %v1576 = vsub.f32 %v1574, %v1575
  %1578 = vset.pattern.permute.xlu0 0
  %1579 = vperm.xlu0 %1578, %v1573
  %v1580 = vpop.permute.xlu0 %1579
  %v1582 = vmul.f32 %v1528, %v1580
  %v1583 = vmul.f32 %v1529, %v1580
  %v1584 = vmul.f32 %v1530, %v1580
  %1586 = vset.pattern.permute.xlu0 0
  %1587 = vperm.xlu0 %1586, %v1576
  %v1588 = vpop.permute.xlu0 %1587
  %v1590 = vadd.f32 %v1582, %v1588
  %v1591 = vadd.f32 %v1583, %v1588
  %v1592 = vadd.f32 %v1584, %v1588
  %v1593 = vmax.f32 %v1590, 0.0
  %v1594 = vmax.f32 %v1591, 0.0
  %v1595 = vmax.f32 %v1592, 0.0
  %v1596 = vld [vmem:[%s2] sm:$0xff]
  %s1597 = scalar_lea.vmem %s2, 8
  %v1598 = vld [vmem:[%s1597] sm:$0xff]
  %1602 = vrot.lane.b32.xlu0 %v1593, 127
  %v1603 = vpop.permute.xlu0 %1602
  %1604 = vrot.lane.b32.xlu0 %v1594, 127
  %v1605 = vpop.permute.xlu0 %1604
  %1606 = vrot.lane.b32.xlu0 %v1595, 127
  %v1607 = vpop.permute.xlu0 %1606
  %v1608 = vsel %vm43, %v1603, %v1605
  %v1609 = vsel %vm43, %v1605, %v1607
  %vm1613 = vcmask 64512
  %v1615 = vsel %vm1613, %v1598, 0
  %1617 = vmatprep.subr.mxu0 0.0
  %1618 = vmatpush1.msra.mxu0 0.0
  %1619 = vmatprep.subr.mxu0 0.0
  %1620 = vmatpush1.msra.mxu0 0.0
  %1621 = vmatprep.subr.mxu0 0.0
  %1622 = vmatpush1.msra.mxu0 0.0
  %1623 = vmatprep.subr.mxu0 0.0
  %1624 = vmatpush1.msra.mxu0 0.0
  %1625 = vmatprep.subr.mxu0 0.0
  %1626 = vmatpush1.msra.mxu0 0.0
  %1627 = vmatprep.subr.mxu0 0.0
  %1628 = vmatpush1.msra.mxu0 0.0
  %1629 = vmatprep.subr.mxu0 0.0
  %1630 = vmatpush1.msra.mxu0 0.0
  %1631 = vmatprep.subr.mxu0 0.0
  %1632 = vmatpush1.msra.mxu0 0.0
  %1633 = vmatprep.subr.mxu0 0.0
  %1634 = vmatpush1.msra.mxu0 0.0
  %1635 = vmatprep.subr.mxu0 0.0
  %1636 = vmatpush1.msra.mxu0 0.0
  %1637 = vmatprep.subr.mxu0 0.0
  %1638 = vmatpush1.msra.mxu0 0.0
  %1639 = vmatprep.subr.mxu0 0.0
  %1640 = vmatpush1.msra.mxu0 0.0
  %1641 = vmatprep.subr.mxu0 0.0
  %1642 = vmatpush1.msra.mxu0 0.0
  %1643 = vmatprep.subr.mxu0 0.0
  %1644 = vmatpush1.msra.mxu0 0.0
  %1645 = vmatprep.subr.mxu0 0.0
  %1646 = vmatpush1.msra.mxu0 0.0
  %1647 = vmatprep.subr.mxu0 %v1609
  %1648 = vmatpush1.msra.mxu0 %v1608
  %1649 = vmatprep.subr.mxu0 0.0
  %1650 = vmatpush2.msra.mxu0 0.0
  %1651 = vmatprep.subr.mxu0 0.0
  %1652 = vmatpush2.msra.mxu0 0.0
  %1653 = vmatprep.subr.mxu0 0.0
  %1654 = vmatpush2.msra.mxu0 0.0
  %1655 = vmatprep.subr.mxu0 0.0
  %1656 = vmatpush2.msra.mxu0 0.0
  %1657 = vmatprep.subr.mxu0 0.0
  %1658 = vmatpush2.msra.mxu0 0.0
  %1659 = vmatprep.subr.mxu0 0.0
  %1660 = vmatpush2.msra.mxu0 0.0
  %1661 = vmatprep.subr.mxu0 0.0
  %1662 = vmatpush2.msra.mxu0 0.0
  %1663 = vmatprep.subr.mxu0 0.0
  %1664 = vmatpush2.msra.mxu0 0.0
  %1665 = vmatprep.subr.mxu0 0.0
  %1666 = vmatpush2.msra.mxu0 0.0
  %1667 = vmatprep.subr.mxu0 0.0
  %1668 = vmatpush2.msra.mxu0 0.0
  %1669 = vmatprep.subr.mxu0 0.0
  %1670 = vmatpush2.msra.mxu0 0.0
  %1671 = vmatprep.subr.mxu0 0.0
  %1672 = vmatpush2.msra.mxu0 0.0
  %1673 = vmatprep.subr.mxu0 0.0
  %1674 = vmatpush2.msra.mxu0 0.0
  %1675 = vmatprep.subr.mxu0 0.0
  %1676 = vmatpush2.msra.mxu0 0.0
  %1677 = vmatprep.subr.mxu0 0.0
  %1678 = vmatpush2.msra.mxu0 0.0
  %1679 = vmatprep.subr.mxu0 0.0
  %1680 = vmatpush2.msra.mxu0 0.0
  %1681 = vmatprep.mubr.f32.mxu0 0.0
  %1682 = vmatmul.mubr.f32.gmra.mxu0 %v1615
  %v1683 = vpop.f32.mrf.mxu0
  %v1684 = vadd.f32 0.0, %v1683
  %v1685 = vpop.f32.mrf.mxu0
  %v1686 = vadd.f32 0.0, %v1685
  %1687 = vdwg.mxu0
  %1688 = vmatprep.subr.mxu0 0.0
  %1689 = vmatpush1.msra.mxu0 0.0
  %1690 = vmatprep.subr.mxu0 0.0
  %1691 = vmatpush1.msra.mxu0 0.0
  %1692 = vmatprep.subr.mxu0 0.0
  %1693 = vmatpush1.msra.mxu0 0.0
  %1694 = vmatprep.subr.mxu0 0.0
  %1695 = vmatpush1.msra.mxu0 0.0
  %1696 = vmatprep.subr.mxu0 0.0
  %1697 = vmatpush1.msra.mxu0 0.0
  %1698 = vmatprep.subr.mxu0 0.0
  %1699 = vmatpush1.msra.mxu0 0.0
  %1700 = vmatprep.subr.mxu0 0.0
  %1701 = vmatpush1.msra.mxu0 0.0
  %1702 = vmatprep.subr.mxu0 0.0
  %1703 = vmatpush1.msra.mxu0 0.0
  %1704 = vmatprep.subr.mxu0 0.0
  %1705 = vmatpush1.msra.mxu0 0.0
  %1706 = vmatprep.subr.mxu0 0.0
  %1707 = vmatpush1.msra.mxu0 0.0
  %1708 = vmatprep.subr.mxu0 0.0
  %1709 = vmatpush1.msra.mxu0 0.0
  %1710 = vmatprep.subr.mxu0 0.0
  %1711 = vmatpush1.msra.mxu0 0.0
  %1712 = vmatprep.subr.mxu0 0.0
  %1713 = vmatpush1.msra.mxu0 0.0
  %1714 = vmatprep.subr.mxu0 0.0
  %1715 = vmatpush1.msra.mxu0 0.0
  %1716 = vmatprep.subr.mxu0 0.0
  %1717 = vmatpush1.msra.mxu0 0.0
  %1718 = vmatprep.subr.mxu0 0.0
  %1719 = vmatpush1.msra.mxu0 %v1607
  %1720 = vmatprep.subr.mxu0 0.0
  %1721 = vmatpush2.msra.mxu0 0.0
  %1722 = vmatprep.subr.mxu0 0.0
  %1723 = vmatpush2.msra.mxu0 0.0
  %1724 = vmatprep.subr.mxu0 0.0
  %1725 = vmatpush2.msra.mxu0 0.0
  %1726 = vmatprep.subr.mxu0 0.0
  %1727 = vmatpush2.msra.mxu0 0.0
  %1728 = vmatprep.subr.mxu0 0.0
  %1729 = vmatpush2.msra.mxu0 0.0
  %1730 = vmatprep.subr.mxu0 0.0
  %1731 = vmatpush2.msra.mxu0 0.0
  %1732 = vmatprep.subr.mxu0 0.0
  %1733 = vmatpush2.msra.mxu0 0.0
  %1734 = vmatprep.subr.mxu0 0.0
  %1735 = vmatpush2.msra.mxu0 0.0
  %1736 = vmatprep.subr.mxu0 0.0
  %1737 = vmatpush2.msra.mxu0 0.0
  %1738 = vmatprep.subr.mxu0 0.0
  %1739 = vmatpush2.msra.mxu0 0.0
  %1740 = vmatprep.subr.mxu0 0.0
  %1741 = vmatpush2.msra.mxu0 0.0
  %1742 = vmatprep.subr.mxu0 0.0
  %1743 = vmatpush2.msra.mxu0 0.0
  %1744 = vmatprep.subr.mxu0 0.0
  %1745 = vmatpush2.msra.mxu0 0.0
  %1746 = vmatprep.subr.mxu0 0.0
  %1747 = vmatpush2.msra.mxu0 0.0
  %1748 = vmatprep.subr.mxu0 0.0
  %1749 = vmatpush2.msra.mxu0 0.0
  %1750 = vmatprep.subr.mxu0 0.0
  %1751 = vmatpush2.msra.mxu0 0.0
  %1752 = vmatprep.mubr.f32.mxu0 0.0
  %1753 = vmatmul.mubr.f32.gmra.mxu0 %v1615
  %v1754 = vpop.f32.mrf.mxu0
  %v1755 = vadd.f32 0.0, %v1754
  %v1756 = vpop.f32.mrf.mxu0
  %1757 = vdwg.mxu0
  %v1759 = vsel %vm1613, %v1596, 0
  %1761 = vmatprep.subr.mxu0 0.0
  %1762 = vmatpush1.msra.mxu0 0.0
  %1763 = vmatprep.subr.mxu0 0.0
  %1764 = vmatpush1.msra.mxu0 0.0
  %1765 = vmatprep.subr.mxu0 0.0
  %1766 = vmatpush1.msra.mxu0 0.0
  %1767 = vmatprep.subr.mxu0 0.0
  %1768 = vmatpush1.msra.mxu0 0.0
  %1769 = vmatprep.subr.mxu0 0.0
  %1770 = vmatpush1.msra.mxu0 0.0
  %1771 = vmatprep.subr.mxu0 0.0
  %1772 = vmatpush1.msra.mxu0 0.0
  %1773 = vmatprep.subr.mxu0 0.0
  %1774 = vmatpush1.msra.mxu0 0.0
  %1775 = vmatprep.subr.mxu0 0.0
  %1776 = vmatpush1.msra.mxu0 0.0
  %1777 = vmatprep.subr.mxu0 0.0
  %1778 = vmatpush1.msra.mxu0 0.0
  %1779 = vmatprep.subr.mxu0 0.0
  %1780 = vmatpush1.msra.mxu0 0.0
  %1781 = vmatprep.subr.mxu0 0.0
  %1782 = vmatpush1.msra.mxu0 0.0
  %1783 = vmatprep.subr.mxu0 0.0
  %1784 = vmatpush1.msra.mxu0 0.0
  %1785 = vmatprep.subr.mxu0 0.0
  %1786 = vmatpush1.msra.mxu0 0.0
  %1787 = vmatprep.subr.mxu0 0.0
  %1788 = vmatpush1.msra.mxu0 0.0
  %1789 = vmatprep.subr.mxu0 0.0
  %1790 = vmatpush1.msra.mxu0 0.0
  %1791 = vmatprep.subr.mxu0 %v1594
  %1792 = vmatpush1.msra.mxu0 %v1593
  %1793 = vmatprep.subr.mxu0 0.0
  %1794 = vmatpush2.msra.mxu0 0.0
  %1795 = vmatprep.subr.mxu0 0.0
  %1796 = vmatpush2.msra.mxu0 0.0
  %1797 = vmatprep.subr.mxu0 0.0
  %1798 = vmatpush2.msra.mxu0 0.0
  %1799 = vmatprep.subr.mxu0 0.0
  %1800 = vmatpush2.msra.mxu0 0.0
  %1801 = vmatprep.subr.mxu0 0.0
  %1802 = vmatpush2.msra.mxu0 0.0
  %1803 = vmatprep.subr.mxu0 0.0
  %1804 = vmatpush2.msra.mxu0 0.0
  %1805 = vmatprep.subr.mxu0 0.0
  %1806 = vmatpush2.msra.mxu0 0.0
  %1807 = vmatprep.subr.mxu0 0.0
  %1808 = vmatpush2.msra.mxu0 0.0
  %1809 = vmatprep.subr.mxu0 0.0
  %1810 = vmatpush2.msra.mxu0 0.0
  %1811 = vmatprep.subr.mxu0 0.0
  %1812 = vmatpush2.msra.mxu0 0.0
  %1813 = vmatprep.subr.mxu0 0.0
  %1814 = vmatpush2.msra.mxu0 0.0
  %1815 = vmatprep.subr.mxu0 0.0
  %1816 = vmatpush2.msra.mxu0 0.0
  %1817 = vmatprep.subr.mxu0 0.0
  %1818 = vmatpush2.msra.mxu0 0.0
  %1819 = vmatprep.subr.mxu0 0.0
  %1820 = vmatpush2.msra.mxu0 0.0
  %1821 = vmatprep.subr.mxu0 0.0
  %1822 = vmatpush2.msra.mxu0 0.0
  %1823 = vmatprep.subr.mxu0 0.0
  %1824 = vmatpush2.msra.mxu0 0.0
  %1825 = vmatprep.mubr.f32.mxu0 0.0
  %1826 = vmatmul.mubr.f32.gmra.mxu0 %v1759
  %v1827 = vpop.f32.mrf.mxu0
  %v1828 = vadd.f32 %v1684, %v1827
  %v1829 = vpop.f32.mrf.mxu0
  %v1830 = vadd.f32 %v1686, %v1829
  %1831 = vdwg.mxu0
  %1832 = vmatprep.subr.mxu0 0.0
  %1833 = vmatpush1.msra.mxu0 0.0
  %1834 = vmatprep.subr.mxu0 0.0
  %1835 = vmatpush1.msra.mxu0 0.0
  %1836 = vmatprep.subr.mxu0 0.0
  %1837 = vmatpush1.msra.mxu0 0.0
  %1838 = vmatprep.subr.mxu0 0.0
  %1839 = vmatpush1.msra.mxu0 0.0
  %1840 = vmatprep.subr.mxu0 0.0
  %1841 = vmatpush1.msra.mxu0 0.0
  %1842 = vmatprep.subr.mxu0 0.0
  %1843 = vmatpush1.msra.mxu0 0.0
  %1844 = vmatprep.subr.mxu0 0.0
  %1845 = vmatpush1.msra.mxu0 0.0
  %1846 = vmatprep.subr.mxu0 0.0
  %1847 = vmatpush1.msra.mxu0 0.0
  %1848 = vmatprep.subr.mxu0 0.0
  %1849 = vmatpush1.msra.mxu0 0.0
  %1850 = vmatprep.subr.mxu0 0.0
  %1851 = vmatpush1.msra.mxu0 0.0
  %1852 = vmatprep.subr.mxu0 0.0
  %1853 = vmatpush1.msra.mxu0 0.0
  %1854 = vmatprep.subr.mxu0 0.0
  %1855 = vmatpush1.msra.mxu0 0.0
  %1856 = vmatprep.subr.mxu0 0.0
  %1857 = vmatpush1.msra.mxu0 0.0
  %1858 = vmatprep.subr.mxu0 0.0
  %1859 = vmatpush1.msra.mxu0 0.0
  %1860 = vmatprep.subr.mxu0 0.0
  %1861 = vmatpush1.msra.mxu0 0.0
  %1862 = vmatprep.subr.mxu0 0.0
  %1863 = vmatpush1.msra.mxu0 %v1595
  %1864 = vmatprep.subr.mxu0 0.0
  %1865 = vmatpush2.msra.mxu0 0.0
  %1866 = vmatprep.subr.mxu0 0.0
  %1867 = vmatpush2.msra.mxu0 0.0
  %1868 = vmatprep.subr.mxu0 0.0
  %1869 = vmatpush2.msra.mxu0 0.0
  %1870 = vmatprep.subr.mxu0 0.0
  %1871 = vmatpush2.msra.mxu0 0.0
  %1872 = vmatprep.subr.mxu0 0.0
  %1873 = vmatpush2.msra.mxu0 0.0
  %1874 = vmatprep.subr.mxu0 0.0
  %1875 = vmatpush2.msra.mxu0 0.0
  %1876 = vmatprep.subr.mxu0 0.0
  %1877 = vmatpush2.msra.mxu0 0.0
  %1878 = vmatprep.subr.mxu0 0.0
  %1879 = vmatpush2.msra.mxu0 0.0
  %1880 = vmatprep.subr.mxu0 0.0
  %1881 = vmatpush2.msra.mxu0 0.0
  %1882 = vmatprep.subr.mxu0 0.0
  %1883 = vmatpush2.msra.mxu0 0.0
  %1884 = vmatprep.subr.mxu0 0.0
  %1885 = vmatpush2.msra.mxu0 0.0
  %1886 = vmatprep.subr.mxu0 0.0
  %1887 = vmatpush2.msra.mxu0 0.0
  %1888 = vmatprep.subr.mxu0 0.0
  %1889 = vmatpush2.msra.mxu0 0.0
  %1890 = vmatprep.subr.mxu0 0.0
  %1891 = vmatpush2.msra.mxu0 0.0
  %1892 = vmatprep.subr.mxu0 0.0
  %1893 = vmatpush2.msra.mxu0 0.0
  %1894 = vmatprep.subr.mxu0 0.0
  %1895 = vmatpush2.msra.mxu0 0.0
  %1896 = vmatprep.mubr.f32.mxu0 0.0
  %1897 = vmatmul.mubr.f32.gmra.mxu0 %v1759
  %v1898 = vpop.f32.mrf.mxu0
  %v1899 = vadd.f32 %v1755, %v1898
  %v1900 = vpop.f32.mrf.mxu0
  %1901 = vdwg.mxu0
  %s1902 = scalar_lea.vmem %s2, 16
  %v1903 = vld [vmem:[%s1902] sm:$0xff]
  %1904 = vrot.lane.b32.xlu0 %v1593, 126
  %v1905 = vpop.permute.xlu0 %1904
  %1906 = vrot.lane.b32.xlu0 %v1594, 126
  %v1907 = vpop.permute.xlu0 %1906
  %1908 = vrot.lane.b32.xlu0 %v1595, 126
  %v1909 = vpop.permute.xlu0 %1908
  %v1910 = vsel %vm361, %v1905, %v1907
  %v1911 = vsel %vm361, %v1907, %v1909
  %v1916 = vsel %vm1613, %v1903, 0
  %1918 = vmatprep.subr.mxu0 0.0
  %1919 = vmatpush1.msra.mxu0 0.0
  %1920 = vmatprep.subr.mxu0 0.0
  %1921 = vmatpush1.msra.mxu0 0.0
  %1922 = vmatprep.subr.mxu0 0.0
  %1923 = vmatpush1.msra.mxu0 0.0
  %1924 = vmatprep.subr.mxu0 0.0
  %1925 = vmatpush1.msra.mxu0 0.0
  %1926 = vmatprep.subr.mxu0 0.0
  %1927 = vmatpush1.msra.mxu0 0.0
  %1928 = vmatprep.subr.mxu0 0.0
  %1929 = vmatpush1.msra.mxu0 0.0
  %1930 = vmatprep.subr.mxu0 0.0
  %1931 = vmatpush1.msra.mxu0 0.0
  %1932 = vmatprep.subr.mxu0 0.0
  %1933 = vmatpush1.msra.mxu0 0.0
  %1934 = vmatprep.subr.mxu0 0.0
  %1935 = vmatpush1.msra.mxu0 0.0
  %1936 = vmatprep.subr.mxu0 0.0
  %1937 = vmatpush1.msra.mxu0 0.0
  %1938 = vmatprep.subr.mxu0 0.0
  %1939 = vmatpush1.msra.mxu0 0.0
  %1940 = vmatprep.subr.mxu0 0.0
  %1941 = vmatpush1.msra.mxu0 0.0
  %1942 = vmatprep.subr.mxu0 0.0
  %1943 = vmatpush1.msra.mxu0 0.0
  %1944 = vmatprep.subr.mxu0 0.0
  %1945 = vmatpush1.msra.mxu0 0.0
  %1946 = vmatprep.subr.mxu0 0.0
  %1947 = vmatpush1.msra.mxu0 0.0
  %1948 = vmatprep.subr.mxu0 %v1911
  %1949 = vmatpush1.msra.mxu0 %v1910
  %1950 = vmatprep.subr.mxu0 0.0
  %1951 = vmatpush2.msra.mxu0 0.0
  %1952 = vmatprep.subr.mxu0 0.0
  %1953 = vmatpush2.msra.mxu0 0.0
  %1954 = vmatprep.subr.mxu0 0.0
  %1955 = vmatpush2.msra.mxu0 0.0
  %1956 = vmatprep.subr.mxu0 0.0
  %1957 = vmatpush2.msra.mxu0 0.0
  %1958 = vmatprep.subr.mxu0 0.0
  %1959 = vmatpush2.msra.mxu0 0.0
  %1960 = vmatprep.subr.mxu0 0.0
  %1961 = vmatpush2.msra.mxu0 0.0
  %1962 = vmatprep.subr.mxu0 0.0
  %1963 = vmatpush2.msra.mxu0 0.0
  %1964 = vmatprep.subr.mxu0 0.0
  %1965 = vmatpush2.msra.mxu0 0.0
  %1966 = vmatprep.subr.mxu0 0.0
  %1967 = vmatpush2.msra.mxu0 0.0
  %1968 = vmatprep.subr.mxu0 0.0
  %1969 = vmatpush2.msra.mxu0 0.0
  %1970 = vmatprep.subr.mxu0 0.0
  %1971 = vmatpush2.msra.mxu0 0.0
  %1972 = vmatprep.subr.mxu0 0.0
  %1973 = vmatpush2.msra.mxu0 0.0
  %1974 = vmatprep.subr.mxu0 0.0
  %1975 = vmatpush2.msra.mxu0 0.0
  %1976 = vmatprep.subr.mxu0 0.0
  %1977 = vmatpush2.msra.mxu0 0.0
  %1978 = vmatprep.subr.mxu0 0.0
  %1979 = vmatpush2.msra.mxu0 0.0
  %1980 = vmatprep.subr.mxu0 0.0
  %1981 = vmatpush2.msra.mxu0 0.0
  %1982 = vmatprep.mubr.f32.mxu0 0.0
  %1983 = vmatmul.mubr.f32.gmra.mxu0 %v1916
  %v1984 = vpop.f32.mrf.mxu0
  %v1985 = vadd.f32 0.0, %v1984
  %v1986 = vpop.f32.mrf.mxu0
  %v1987 = vadd.f32 0.0, %v1986
  %1988 = vdwg.mxu0
  %1989 = vmatprep.subr.mxu0 0.0
  %1990 = vmatpush1.msra.mxu0 0.0
  %1991 = vmatprep.subr.mxu0 0.0
  %1992 = vmatpush1.msra.mxu0 0.0
  %1993 = vmatprep.subr.mxu0 0.0
  %1994 = vmatpush1.msra.mxu0 0.0
  %1995 = vmatprep.subr.mxu0 0.0
  %1996 = vmatpush1.msra.mxu0 0.0
  %1997 = vmatprep.subr.mxu0 0.0
  %1998 = vmatpush1.msra.mxu0 0.0
  %1999 = vmatprep.subr.mxu0 0.0
  %2000 = vmatpush1.msra.mxu0 0.0
  %2001 = vmatprep.subr.mxu0 0.0
  %2002 = vmatpush1.msra.mxu0 0.0
  %2003 = vmatprep.subr.mxu0 0.0
  %2004 = vmatpush1.msra.mxu0 0.0
  %2005 = vmatprep.subr.mxu0 0.0
  %2006 = vmatpush1.msra.mxu0 0.0
  %2007 = vmatprep.subr.mxu0 0.0
  %2008 = vmatpush1.msra.mxu0 0.0
  %2009 = vmatprep.subr.mxu0 0.0
  %2010 = vmatpush1.msra.mxu0 0.0
  %2011 = vmatprep.subr.mxu0 0.0
  %2012 = vmatpush1.msra.mxu0 0.0
  %2013 = vmatprep.subr.mxu0 0.0
  %2014 = vmatpush1.msra.mxu0 0.0
  %2015 = vmatprep.subr.mxu0 0.0
  %2016 = vmatpush1.msra.mxu0 0.0
  %2017 = vmatprep.subr.mxu0 0.0
  %2018 = vmatpush1.msra.mxu0 0.0
  %2019 = vmatprep.subr.mxu0 0.0
  %2020 = vmatpush1.msra.mxu0 %v1909
  %2021 = vmatprep.subr.mxu0 0.0
  %2022 = vmatpush2.msra.mxu0 0.0
  %2023 = vmatprep.subr.mxu0 0.0
  %2024 = vmatpush2.msra.mxu0 0.0
  %2025 = vmatprep.subr.mxu0 0.0
  %2026 = vmatpush2.msra.mxu0 0.0
  %2027 = vmatprep.subr.mxu0 0.0
  %2028 = vmatpush2.msra.mxu0 0.0
  %2029 = vmatprep.subr.mxu0 0.0
  %2030 = vmatpush2.msra.mxu0 0.0
  %2031 = vmatprep.subr.mxu0 0.0
  %2032 = vmatpush2.msra.mxu0 0.0
  %2033 = vmatprep.subr.mxu0 0.0
  %2034 = vmatpush2.msra.mxu0 0.0
  %2035 = vmatprep.subr.mxu0 0.0
  %2036 = vmatpush2.msra.mxu0 0.0
  %2037 = vmatprep.subr.mxu0 0.0
  %2038 = vmatpush2.msra.mxu0 0.0
  %2039 = vmatprep.subr.mxu0 0.0
  %2040 = vmatpush2.msra.mxu0 0.0
  %2041 = vmatprep.subr.mxu0 0.0
  %2042 = vmatpush2.msra.mxu0 0.0
  %2043 = vmatprep.subr.mxu0 0.0
  %2044 = vmatpush2.msra.mxu0 0.0
  %2045 = vmatprep.subr.mxu0 0.0
  %2046 = vmatpush2.msra.mxu0 0.0
  %2047 = vmatprep.subr.mxu0 0.0
  %2048 = vmatpush2.msra.mxu0 0.0
  %2049 = vmatprep.subr.mxu0 0.0
  %2050 = vmatpush2.msra.mxu0 0.0
  %2051 = vmatprep.subr.mxu0 0.0
  %2052 = vmatpush2.msra.mxu0 0.0
  %2053 = vmatprep.mubr.f32.mxu0 0.0
  %2054 = vmatmul.mubr.f32.gmra.mxu0 %v1916
  %v2055 = vpop.f32.mrf.mxu0
  %v2056 = vadd.f32 0.0, %v2055
  %v2057 = vpop.f32.mrf.mxu0
  %2058 = vdwg.mxu0
  %v2059 = vadd.f32 %v1828, %v1985
  %v2060 = vadd.f32 %v1830, %v1987
  %v2061 = vadd.f32 %v1899, %v2056
  %s2062 = scalar_lea.vmem %s2, 24
  %v2063 = vld [vmem:[%s2062] sm:$0xff]
  %2064 = vrot.lane.b32.xlu0 %v1593, 116
  %v2065 = vpop.permute.xlu0 %2064
  %2066 = vrot.lane.b32.xlu0 %v1594, 116
  %v2067 = vpop.permute.xlu0 %2066
  %2068 = vrot.lane.b32.xlu0 %v1595, 116
  %v2069 = vpop.permute.xlu0 %2068
  %v2070 = vsel %vm530, %v2065, %v2067
  %v2071 = vsel %vm530, %v2067, %v2069
  %v2076 = vsel %vm1613, %v2063, 0
  %2078 = vmatprep.subr.mxu0 0.0
  %2079 = vmatpush1.msra.mxu0 0.0
  %2080 = vmatprep.subr.mxu0 0.0
  %2081 = vmatpush1.msra.mxu0 0.0
  %2082 = vmatprep.subr.mxu0 0.0
  %2083 = vmatpush1.msra.mxu0 0.0
  %2084 = vmatprep.subr.mxu0 0.0
  %2085 = vmatpush1.msra.mxu0 0.0
  %2086 = vmatprep.subr.mxu0 0.0
  %2087 = vmatpush1.msra.mxu0 0.0
  %2088 = vmatprep.subr.mxu0 0.0
  %2089 = vmatpush1.msra.mxu0 0.0
  %2090 = vmatprep.subr.mxu0 0.0
  %2091 = vmatpush1.msra.mxu0 0.0
  %2092 = vmatprep.subr.mxu0 0.0
  %2093 = vmatpush1.msra.mxu0 0.0
  %2094 = vmatprep.subr.mxu0 0.0
  %2095 = vmatpush1.msra.mxu0 0.0
  %2096 = vmatprep.subr.mxu0 0.0
  %2097 = vmatpush1.msra.mxu0 0.0
  %2098 = vmatprep.subr.mxu0 0.0
  %2099 = vmatpush1.msra.mxu0 0.0
  %2100 = vmatprep.subr.mxu0 0.0
  %2101 = vmatpush1.msra.mxu0 0.0
  %2102 = vmatprep.subr.mxu0 0.0
  %2103 = vmatpush1.msra.mxu0 0.0
  %2104 = vmatprep.subr.mxu0 0.0
  %2105 = vmatpush1.msra.mxu0 0.0
  %2106 = vmatprep.subr.mxu0 0.0
  %2107 = vmatpush1.msra.mxu0 0.0
  %2108 = vmatprep.subr.mxu0 %v2071
  %2109 = vmatpush1.msra.mxu0 %v2070
  %2110 = vmatprep.subr.mxu0 0.0
  %2111 = vmatpush2.msra.mxu0 0.0
  %2112 = vmatprep.subr.mxu0 0.0
  %2113 = vmatpush2.msra.mxu0 0.0
  %2114 = vmatprep.subr.mxu0 0.0
  %2115 = vmatpush2.msra.mxu0 0.0
  %2116 = vmatprep.subr.mxu0 0.0
  %2117 = vmatpush2.msra.mxu0 0.0
  %2118 = vmatprep.subr.mxu0 0.0
  %2119 = vmatpush2.msra.mxu0 0.0
  %2120 = vmatprep.subr.mxu0 0.0
  %2121 = vmatpush2.msra.mxu0 0.0
  %2122 = vmatprep.subr.mxu0 0.0
  %2123 = vmatpush2.msra.mxu0 0.0
  %2124 = vmatprep.subr.mxu0 0.0
  %2125 = vmatpush2.msra.mxu0 0.0
  %2126 = vmatprep.subr.mxu0 0.0
  %2127 = vmatpush2.msra.mxu0 0.0
  %2128 = vmatprep.subr.mxu0 0.0
  %2129 = vmatpush2.msra.mxu0 0.0
  %2130 = vmatprep.subr.mxu0 0.0
  %2131 = vmatpush2.msra.mxu0 0.0
  %2132 = vmatprep.subr.mxu0 0.0
  %2133 = vmatpush2.msra.mxu0 0.0
  %2134 = vmatprep.subr.mxu0 0.0
  %2135 = vmatpush2.msra.mxu0 0.0
  %2136 = vmatprep.subr.mxu0 0.0
  %2137 = vmatpush2.msra.mxu0 0.0
  %2138 = vmatprep.subr.mxu0 0.0
  %2139 = vmatpush2.msra.mxu0 0.0
  %2140 = vmatprep.subr.mxu0 0.0
  %2141 = vmatpush2.msra.mxu0 0.0
  %2142 = vmatprep.mubr.f32.mxu0 0.0
  %2143 = vmatmul.mubr.f32.gmra.mxu0 %v2076
  %v2144 = vpop.f32.mrf.mxu0
  %v2145 = vadd.f32 0.0, %v2144
  %v2146 = vpop.f32.mrf.mxu0
  %v2147 = vadd.f32 0.0, %v2146
  %2148 = vdwg.mxu0
  %2149 = vmatprep.subr.mxu0 0.0
  %2150 = vmatpush1.msra.mxu0 0.0
  %2151 = vmatprep.subr.mxu0 0.0
  %2152 = vmatpush1.msra.mxu0 0.0
  %2153 = vmatprep.subr.mxu0 0.0
  %2154 = vmatpush1.msra.mxu0 0.0
  %2155 = vmatprep.subr.mxu0 0.0
  %2156 = vmatpush1.msra.mxu0 0.0
  %2157 = vmatprep.subr.mxu0 0.0
  %2158 = vmatpush1.msra.mxu0 0.0
  %2159 = vmatprep.subr.mxu0 0.0
  %2160 = vmatpush1.msra.mxu0 0.0
  %2161 = vmatprep.subr.mxu0 0.0
  %2162 = vmatpush1.msra.mxu0 0.0
  %2163 = vmatprep.subr.mxu0 0.0
  %2164 = vmatpush1.msra.mxu0 0.0
  %2165 = vmatprep.subr.mxu0 0.0
  %2166 = vmatpush1.msra.mxu0 0.0
  %2167 = vmatprep.subr.mxu0 0.0
  %2168 = vmatpush1.msra.mxu0 0.0
  %2169 = vmatprep.subr.mxu0 0.0
  %2170 = vmatpush1.msra.mxu0 0.0
  %2171 = vmatprep.subr.mxu0 0.0
  %2172 = vmatpush1.msra.mxu0 0.0
  %2173 = vmatprep.subr.mxu0 0.0
  %2174 = vmatpush1.msra.mxu0 0.0
  %2175 = vmatprep.subr.mxu0 0.0
  %2176 = vmatpush1.msra.mxu0 0.0
  %2177 = vmatprep.subr.mxu0 0.0
  %2178 = vmatpush1.msra.mxu0 0.0
  %2179 = vmatprep.subr.mxu0 0.0
  %2180 = vmatpush1.msra.mxu0 %v2069
  %2181 = vmatprep.subr.mxu0 0.0
  %2182 = vmatpush2.msra.mxu0 0.0
  %2183 = vmatprep.subr.mxu0 0.0
  %2184 = vmatpush2.msra.mxu0 0.0
  %2185 = vmatprep.subr.mxu0 0.0
  %2186 = vmatpush2.msra.mxu0 0.0
  %2187 = vmatprep.subr.mxu0 0.0
  %2188 = vmatpush2.msra.mxu0 0.0
  %2189 = vmatprep.subr.mxu0 0.0
  %2190 = vmatpush2.msra.mxu0 0.0
  %2191 = vmatprep.subr.mxu0 0.0
  %2192 = vmatpush2.msra.mxu0 0.0
  %2193 = vmatprep.subr.mxu0 0.0
  %2194 = vmatpush2.msra.mxu0 0.0
  %2195 = vmatprep.subr.mxu0 0.0
  %2196 = vmatpush2.msra.mxu0 0.0
  %2197 = vmatprep.subr.mxu0 0.0
  %2198 = vmatpush2.msra.mxu0 0.0
  %2199 = vmatprep.subr.mxu0 0.0
  %2200 = vmatpush2.msra.mxu0 0.0
  %2201 = vmatprep.subr.mxu0 0.0
  %2202 = vmatpush2.msra.mxu0 0.0
  %2203 = vmatprep.subr.mxu0 0.0
  %2204 = vmatpush2.msra.mxu0 0.0
  %2205 = vmatprep.subr.mxu0 0.0
  %2206 = vmatpush2.msra.mxu0 0.0
  %2207 = vmatprep.subr.mxu0 0.0
  %2208 = vmatpush2.msra.mxu0 0.0
  %2209 = vmatprep.subr.mxu0 0.0
  %2210 = vmatpush2.msra.mxu0 0.0
  %2211 = vmatprep.subr.mxu0 0.0
  %2212 = vmatpush2.msra.mxu0 0.0
  %2213 = vmatprep.mubr.f32.mxu0 0.0
  %2214 = vmatmul.mubr.f32.gmra.mxu0 %v2076
  %v2215 = vpop.f32.mrf.mxu0
  %v2216 = vadd.f32 0.0, %v2215
  %v2217 = vpop.f32.mrf.mxu0
  %2218 = vdwg.mxu0
  %v2219 = vadd.f32 %v2059, %v2145
  %v2220 = vadd.f32 %v2060, %v2147
  %v2221 = vadd.f32 %v2061, %v2216
  %s2222 = scalar_lea.vmem %s2, 32
  %v2223 = vld [vmem:[%s2222] sm:$0xff]
  %2224 = vrot.lane.b32.xlu0 %v1593, 115
  %v2225 = vpop.permute.xlu0 %2224
  %2226 = vrot.lane.b32.xlu0 %v1594, 115
  %v2227 = vpop.permute.xlu0 %2226
  %2228 = vrot.lane.b32.xlu0 %v1595, 115
  %v2229 = vpop.permute.xlu0 %2228
  %v2230 = vsel %vm699, %v2225, %v2227
  %v2231 = vsel %vm699, %v2227, %v2229
  %v2236 = vsel %vm1613, %v2223, 0
  %2238 = vmatprep.subr.mxu0 0.0
  %2239 = vmatpush1.msra.mxu0 0.0
  %2240 = vmatprep.subr.mxu0 0.0
  %2241 = vmatpush1.msra.mxu0 0.0
  %2242 = vmatprep.subr.mxu0 0.0
  %2243 = vmatpush1.msra.mxu0 0.0
  %2244 = vmatprep.subr.mxu0 0.0
  %2245 = vmatpush1.msra.mxu0 0.0
  %2246 = vmatprep.subr.mxu0 0.0
  %2247 = vmatpush1.msra.mxu0 0.0
  %2248 = vmatprep.subr.mxu0 0.0
  %2249 = vmatpush1.msra.mxu0 0.0
  %2250 = vmatprep.subr.mxu0 0.0
  %2251 = vmatpush1.msra.mxu0 0.0
  %2252 = vmatprep.subr.mxu0 0.0
  %2253 = vmatpush1.msra.mxu0 0.0
  %2254 = vmatprep.subr.mxu0 0.0
  %2255 = vmatpush1.msra.mxu0 0.0
  %2256 = vmatprep.subr.mxu0 0.0
  %2257 = vmatpush1.msra.mxu0 0.0
  %2258 = vmatprep.subr.mxu0 0.0
  %2259 = vmatpush1.msra.mxu0 0.0
  %2260 = vmatprep.subr.mxu0 0.0
  %2261 = vmatpush1.msra.mxu0 0.0
  %2262 = vmatprep.subr.mxu0 0.0
  %2263 = vmatpush1.msra.mxu0 0.0
  %2264 = vmatprep.subr.mxu0 0.0
  %2265 = vmatpush1.msra.mxu0 0.0
  %2266 = vmatprep.subr.mxu0 0.0
  %2267 = vmatpush1.msra.mxu0 0.0
  %2268 = vmatprep.subr.mxu0 %v2231
  %2269 = vmatpush1.msra.mxu0 %v2230
  %2270 = vmatprep.subr.mxu0 0.0
  %2271 = vmatpush2.msra.mxu0 0.0
  %2272 = vmatprep.subr.mxu0 0.0
  %2273 = vmatpush2.msra.mxu0 0.0
  %2274 = vmatprep.subr.mxu0 0.0
  %2275 = vmatpush2.msra.mxu0 0.0
  %2276 = vmatprep.subr.mxu0 0.0
  %2277 = vmatpush2.msra.mxu0 0.0
  %2278 = vmatprep.subr.mxu0 0.0
  %2279 = vmatpush2.msra.mxu0 0.0
  %2280 = vmatprep.subr.mxu0 0.0
  %2281 = vmatpush2.msra.mxu0 0.0
  %2282 = vmatprep.subr.mxu0 0.0
  %2283 = vmatpush2.msra.mxu0 0.0
  %2284 = vmatprep.subr.mxu0 0.0
  %2285 = vmatpush2.msra.mxu0 0.0
  %2286 = vmatprep.subr.mxu0 0.0
  %2287 = vmatpush2.msra.mxu0 0.0
  %2288 = vmatprep.subr.mxu0 0.0
  %2289 = vmatpush2.msra.mxu0 0.0
  %2290 = vmatprep.subr.mxu0 0.0
  %2291 = vmatpush2.msra.mxu0 0.0
  %2292 = vmatprep.subr.mxu0 0.0
  %2293 = vmatpush2.msra.mxu0 0.0
  %2294 = vmatprep.subr.mxu0 0.0
  %2295 = vmatpush2.msra.mxu0 0.0
  %2296 = vmatprep.subr.mxu0 0.0
  %2297 = vmatpush2.msra.mxu0 0.0
  %2298 = vmatprep.subr.mxu0 0.0
  %2299 = vmatpush2.msra.mxu0 0.0
  %2300 = vmatprep.subr.mxu0 0.0
  %2301 = vmatpush2.msra.mxu0 0.0
  %2302 = vmatprep.mubr.f32.mxu0 0.0
  %2303 = vmatmul.mubr.f32.gmra.mxu0 %v2236
  %v2304 = vpop.f32.mrf.mxu0
  %v2305 = vadd.f32 0.0, %v2304
  %v2306 = vpop.f32.mrf.mxu0
  %v2307 = vadd.f32 0.0, %v2306
  %2308 = vdwg.mxu0
  %2309 = vmatprep.subr.mxu0 0.0
  %2310 = vmatpush1.msra.mxu0 0.0
  %2311 = vmatprep.subr.mxu0 0.0
  %2312 = vmatpush1.msra.mxu0 0.0
  %2313 = vmatprep.subr.mxu0 0.0
  %2314 = vmatpush1.msra.mxu0 0.0
  %2315 = vmatprep.subr.mxu0 0.0
  %2316 = vmatpush1.msra.mxu0 0.0
  %2317 = vmatprep.subr.mxu0 0.0
  %2318 = vmatpush1.msra.mxu0 0.0
  %2319 = vmatprep.subr.mxu0 0.0
  %2320 = vmatpush1.msra.mxu0 0.0
  %2321 = vmatprep.subr.mxu0 0.0
  %2322 = vmatpush1.msra.mxu0 0.0
  %2323 = vmatprep.subr.mxu0 0.0
  %2324 = vmatpush1.msra.mxu0 0.0
  %2325 = vmatprep.subr.mxu0 0.0
  %2326 = vmatpush1.msra.mxu0 0.0
  %2327 = vmatprep.subr.mxu0 0.0
  %2328 = vmatpush1.msra.mxu0 0.0
  %2329 = vmatprep.subr.mxu0 0.0
  %2330 = vmatpush1.msra.mxu0 0.0
  %2331 = vmatprep.subr.mxu0 0.0
  %2332 = vmatpush1.msra.mxu0 0.0
  %2333 = vmatprep.subr.mxu0 0.0
  %2334 = vmatpush1.msra.mxu0 0.0
  %2335 = vmatprep.subr.mxu0 0.0
  %2336 = vmatpush1.msra.mxu0 0.0
  %2337 = vmatprep.subr.mxu0 0.0
  %2338 = vmatpush1.msra.mxu0 0.0
  %2339 = vmatprep.subr.mxu0 0.0
  %2340 = vmatpush1.msra.mxu0 %v2229
  %2341 = vmatprep.subr.mxu0 0.0
  %2342 = vmatpush2.msra.mxu0 0.0
  %2343 = vmatprep.subr.mxu0 0.0
  %2344 = vmatpush2.msra.mxu0 0.0
  %2345 = vmatprep.subr.mxu0 0.0
  %2346 = vmatpush2.msra.mxu0 0.0
  %2347 = vmatprep.subr.mxu0 0.0
  %2348 = vmatpush2.msra.mxu0 0.0
  %2349 = vmatprep.subr.mxu0 0.0
  %2350 = vmatpush2.msra.mxu0 0.0
  %2351 = vmatprep.subr.mxu0 0.0
  %2352 = vmatpush2.msra.mxu0 0.0
  %2353 = vmatprep.subr.mxu0 0.0
  %2354 = vmatpush2.msra.mxu0 0.0
  %2355 = vmatprep.subr.mxu0 0.0
  %2356 = vmatpush2.msra.mxu0 0.0
  %2357 = vmatprep.subr.mxu0 0.0
  %2358 = vmatpush2.msra.mxu0 0.0
  %2359 = vmatprep.subr.mxu0 0.0
  %2360 = vmatpush2.msra.mxu0 0.0
  %2361 = vmatprep.subr.mxu0 0.0
  %2362 = vmatpush2.msra.mxu0 0.0
  %2363 = vmatprep.subr.mxu0 0.0
  %2364 = vmatpush2.msra.mxu0 0.0
  %2365 = vmatprep.subr.mxu0 0.0
  %2366 = vmatpush2.msra.mxu0 0.0
  %2367 = vmatprep.subr.mxu0 0.0
  %2368 = vmatpush2.msra.mxu0 0.0
  %2369 = vmatprep.subr.mxu0 0.0
  %2370 = vmatpush2.msra.mxu0 0.0
  %2371 = vmatprep.subr.mxu0 0.0
  %2372 = vmatpush2.msra.mxu0 0.0
  %2373 = vmatprep.mubr.f32.mxu0 0.0
  %2374 = vmatmul.mubr.f32.gmra.mxu0 %v2236
  %v2375 = vpop.f32.mrf.mxu0
  %v2376 = vadd.f32 0.0, %v2375
  %v2377 = vpop.f32.mrf.mxu0
  %2378 = vdwg.mxu0
  %v2379 = vadd.f32 %v2219, %v2305
  %v2380 = vadd.f32 %v2220, %v2307
  %v2381 = vadd.f32 %v2221, %v2376
  %s2382 = scalar_lea.vmem %s2, 40
  %v2383 = vld [vmem:[%s2382] sm:$0xff]
  %2384 = vrot.lane.b32.xlu0 %v1593, 114
  %v2385 = vpop.permute.xlu0 %2384
  %2386 = vrot.lane.b32.xlu0 %v1594, 114
  %v2387 = vpop.permute.xlu0 %2386
  %2388 = vrot.lane.b32.xlu0 %v1595, 114
  %v2389 = vpop.permute.xlu0 %2388
  %v2390 = vsel %vm868, %v2385, %v2387
  %v2391 = vsel %vm868, %v2387, %v2389
  %v2396 = vsel %vm1613, %v2383, 0
  %2398 = vmatprep.subr.mxu0 0.0
  %2399 = vmatpush1.msra.mxu0 0.0
  %2400 = vmatprep.subr.mxu0 0.0
  %2401 = vmatpush1.msra.mxu0 0.0
  %2402 = vmatprep.subr.mxu0 0.0
  %2403 = vmatpush1.msra.mxu0 0.0
  %2404 = vmatprep.subr.mxu0 0.0
  %2405 = vmatpush1.msra.mxu0 0.0
  %2406 = vmatprep.subr.mxu0 0.0
  %2407 = vmatpush1.msra.mxu0 0.0
  %2408 = vmatprep.subr.mxu0 0.0
  %2409 = vmatpush1.msra.mxu0 0.0
  %2410 = vmatprep.subr.mxu0 0.0
  %2411 = vmatpush1.msra.mxu0 0.0
  %2412 = vmatprep.subr.mxu0 0.0
  %2413 = vmatpush1.msra.mxu0 0.0
  %2414 = vmatprep.subr.mxu0 0.0
  %2415 = vmatpush1.msra.mxu0 0.0
  %2416 = vmatprep.subr.mxu0 0.0
  %2417 = vmatpush1.msra.mxu0 0.0
  %2418 = vmatprep.subr.mxu0 0.0
  %2419 = vmatpush1.msra.mxu0 0.0
  %2420 = vmatprep.subr.mxu0 0.0
  %2421 = vmatpush1.msra.mxu0 0.0
  %2422 = vmatprep.subr.mxu0 0.0
  %2423 = vmatpush1.msra.mxu0 0.0
  %2424 = vmatprep.subr.mxu0 0.0
  %2425 = vmatpush1.msra.mxu0 0.0
  %2426 = vmatprep.subr.mxu0 0.0
  %2427 = vmatpush1.msra.mxu0 0.0
  %2428 = vmatprep.subr.mxu0 %v2391
  %2429 = vmatpush1.msra.mxu0 %v2390
  %2430 = vmatprep.subr.mxu0 0.0
  %2431 = vmatpush2.msra.mxu0 0.0
  %2432 = vmatprep.subr.mxu0 0.0
  %2433 = vmatpush2.msra.mxu0 0.0
  %2434 = vmatprep.subr.mxu0 0.0
  %2435 = vmatpush2.msra.mxu0 0.0
  %2436 = vmatprep.subr.mxu0 0.0
  %2437 = vmatpush2.msra.mxu0 0.0
  %2438 = vmatprep.subr.mxu0 0.0
  %2439 = vmatpush2.msra.mxu0 0.0
  %2440 = vmatprep.subr.mxu0 0.0
  %2441 = vmatpush2.msra.mxu0 0.0
  %2442 = vmatprep.subr.mxu0 0.0
  %2443 = vmatpush2.msra.mxu0 0.0
  %2444 = vmatprep.subr.mxu0 0.0
  %2445 = vmatpush2.msra.mxu0 0.0
  %2446 = vmatprep.subr.mxu0 0.0
  %2447 = vmatpush2.msra.mxu0 0.0
  %2448 = vmatprep.subr.mxu0 0.0
  %2449 = vmatpush2.msra.mxu0 0.0
  %2450 = vmatprep.subr.mxu0 0.0
  %2451 = vmatpush2.msra.mxu0 0.0
  %2452 = vmatprep.subr.mxu0 0.0
  %2453 = vmatpush2.msra.mxu0 0.0
  %2454 = vmatprep.subr.mxu0 0.0
  %2455 = vmatpush2.msra.mxu0 0.0
  %2456 = vmatprep.subr.mxu0 0.0
  %2457 = vmatpush2.msra.mxu0 0.0
  %2458 = vmatprep.subr.mxu0 0.0
  %2459 = vmatpush2.msra.mxu0 0.0
  %2460 = vmatprep.subr.mxu0 0.0
  %2461 = vmatpush2.msra.mxu0 0.0
  %2462 = vmatprep.mubr.f32.mxu0 0.0
  %2463 = vmatmul.mubr.f32.gmra.mxu0 %v2396
  %v2464 = vpop.f32.mrf.mxu0
  %v2465 = vadd.f32 0.0, %v2464
  %v2466 = vpop.f32.mrf.mxu0
  %v2467 = vadd.f32 0.0, %v2466
  %2468 = vdwg.mxu0
  %2469 = vmatprep.subr.mxu0 0.0
  %2470 = vmatpush1.msra.mxu0 0.0
  %2471 = vmatprep.subr.mxu0 0.0
  %2472 = vmatpush1.msra.mxu0 0.0
  %2473 = vmatprep.subr.mxu0 0.0
  %2474 = vmatpush1.msra.mxu0 0.0
  %2475 = vmatprep.subr.mxu0 0.0
  %2476 = vmatpush1.msra.mxu0 0.0
  %2477 = vmatprep.subr.mxu0 0.0
  %2478 = vmatpush1.msra.mxu0 0.0
  %2479 = vmatprep.subr.mxu0 0.0
  %2480 = vmatpush1.msra.mxu0 0.0
  %2481 = vmatprep.subr.mxu0 0.0
  %2482 = vmatpush1.msra.mxu0 0.0
  %2483 = vmatprep.subr.mxu0 0.0
  %2484 = vmatpush1.msra.mxu0 0.0
  %2485 = vmatprep.subr.mxu0 0.0
  %2486 = vmatpush1.msra.mxu0 0.0
  %2487 = vmatprep.subr.mxu0 0.0
  %2488 = vmatpush1.msra.mxu0 0.0
  %2489 = vmatprep.subr.mxu0 0.0
  %2490 = vmatpush1.msra.mxu0 0.0
  %2491 = vmatprep.subr.mxu0 0.0
  %2492 = vmatpush1.msra.mxu0 0.0
  %2493 = vmatprep.subr.mxu0 0.0
  %2494 = vmatpush1.msra.mxu0 0.0
  %2495 = vmatprep.subr.mxu0 0.0
  %2496 = vmatpush1.msra.mxu0 0.0
  %2497 = vmatprep.subr.mxu0 0.0
  %2498 = vmatpush1.msra.mxu0 0.0
  %2499 = vmatprep.subr.mxu0 0.0
  %2500 = vmatpush1.msra.mxu0 %v2389
  %2501 = vmatprep.subr.mxu0 0.0
  %2502 = vmatpush2.msra.mxu0 0.0
  %2503 = vmatprep.subr.mxu0 0.0
  %2504 = vmatpush2.msra.mxu0 0.0
  %2505 = vmatprep.subr.mxu0 0.0
  %2506 = vmatpush2.msra.mxu0 0.0
  %2507 = vmatprep.subr.mxu0 0.0
  %2508 = vmatpush2.msra.mxu0 0.0
  %2509 = vmatprep.subr.mxu0 0.0
  %2510 = vmatpush2.msra.mxu0 0.0
  %2511 = vmatprep.subr.mxu0 0.0
  %2512 = vmatpush2.msra.mxu0 0.0
  %2513 = vmatprep.subr.mxu0 0.0
  %2514 = vmatpush2.msra.mxu0 0.0
  %2515 = vmatprep.subr.mxu0 0.0
  %2516 = vmatpush2.msra.mxu0 0.0
  %2517 = vmatprep.subr.mxu0 0.0
  %2518 = vmatpush2.msra.mxu0 0.0
  %2519 = vmatprep.subr.mxu0 0.0
  %2520 = vmatpush2.msra.mxu0 0.0
  %2521 = vmatprep.subr.mxu0 0.0
  %2522 = vmatpush2.msra.mxu0 0.0
  %2523 = vmatprep.subr.mxu0 0.0
  %2524 = vmatpush2.msra.mxu0 0.0
  %2525 = vmatprep.subr.mxu0 0.0
  %2526 = vmatpush2.msra.mxu0 0.0
  %2527 = vmatprep.subr.mxu0 0.0
  %2528 = vmatpush2.msra.mxu0 0.0
  %2529 = vmatprep.subr.mxu0 0.0
  %2530 = vmatpush2.msra.mxu0 0.0
  %2531 = vmatprep.subr.mxu0 0.0
  %2532 = vmatpush2.msra.mxu0 0.0
  %2533 = vmatprep.mubr.f32.mxu0 0.0
  %2534 = vmatmul.mubr.f32.gmra.mxu0 %v2396
  %v2535 = vpop.f32.mrf.mxu0
  %v2536 = vadd.f32 0.0, %v2535
  %v2537 = vpop.f32.mrf.mxu0
  %2538 = vdwg.mxu0
  %v2539 = vadd.f32 %v2379, %v2465
  %v2540 = vadd.f32 %v2380, %v2467
  %v2541 = vadd.f32 %v2381, %v2536
  %s2542 = scalar_lea.vmem %s2, 48
  %v2543 = vld [vmem:[%s2542] sm:$0xff]
  %2544 = vrot.lane.b32.xlu0 %v1593, 104
  %v2545 = vpop.permute.xlu0 %2544
  %2546 = vrot.lane.b32.xlu0 %v1594, 104
  %v2547 = vpop.permute.xlu0 %2546
  %2548 = vrot.lane.b32.xlu0 %v1595, 104
  %v2549 = vpop.permute.xlu0 %2548
  %v2550 = vsel %vm1037, %v2545, %v2547
  %v2551 = vsel %vm1037, %v2547, %v2549
  %v2556 = vsel %vm1613, %v2543, 0
  %2558 = vmatprep.subr.mxu0 0.0
  %2559 = vmatpush1.msra.mxu0 0.0
  %2560 = vmatprep.subr.mxu0 0.0
  %2561 = vmatpush1.msra.mxu0 0.0
  %2562 = vmatprep.subr.mxu0 0.0
  %2563 = vmatpush1.msra.mxu0 0.0
  %2564 = vmatprep.subr.mxu0 0.0
  %2565 = vmatpush1.msra.mxu0 0.0
  %2566 = vmatprep.subr.mxu0 0.0
  %2567 = vmatpush1.msra.mxu0 0.0
  %2568 = vmatprep.subr.mxu0 0.0
  %2569 = vmatpush1.msra.mxu0 0.0
  %2570 = vmatprep.subr.mxu0 0.0
  %2571 = vmatpush1.msra.mxu0 0.0
  %2572 = vmatprep.subr.mxu0 0.0
  %2573 = vmatpush1.msra.mxu0 0.0
  %2574 = vmatprep.subr.mxu0 0.0
  %2575 = vmatpush1.msra.mxu0 0.0
  %2576 = vmatprep.subr.mxu0 0.0
  %2577 = vmatpush1.msra.mxu0 0.0
  %2578 = vmatprep.subr.mxu0 0.0
  %2579 = vmatpush1.msra.mxu0 0.0
  %2580 = vmatprep.subr.mxu0 0.0
  %2581 = vmatpush1.msra.mxu0 0.0
  %2582 = vmatprep.subr.mxu0 0.0
  %2583 = vmatpush1.msra.mxu0 0.0
  %2584 = vmatprep.subr.mxu0 0.0
  %2585 = vmatpush1.msra.mxu0 0.0
  %2586 = vmatprep.subr.mxu0 0.0
  %2587 = vmatpush1.msra.mxu0 0.0
  %2588 = vmatprep.subr.mxu0 %v2551
  %2589 = vmatpush1.msra.mxu0 %v2550
  %2590 = vmatprep.subr.mxu0 0.0
  %2591 = vmatpush2.msra.mxu0 0.0
  %2592 = vmatprep.subr.mxu0 0.0
  %2593 = vmatpush2.msra.mxu0 0.0
  %2594 = vmatprep.subr.mxu0 0.0
  %2595 = vmatpush2.msra.mxu0 0.0
  %2596 = vmatprep.subr.mxu0 0.0
  %2597 = vmatpush2.msra.mxu0 0.0
  %2598 = vmatprep.subr.mxu0 0.0
  %2599 = vmatpush2.msra.mxu0 0.0
  %2600 = vmatprep.subr.mxu0 0.0
  %2601 = vmatpush2.msra.mxu0 0.0
  %2602 = vmatprep.subr.mxu0 0.0
  %2603 = vmatpush2.msra.mxu0 0.0
  %2604 = vmatprep.subr.mxu0 0.0
  %2605 = vmatpush2.msra.mxu0 0.0
  %2606 = vmatprep.subr.mxu0 0.0
  %2607 = vmatpush2.msra.mxu0 0.0
  %2608 = vmatprep.subr.mxu0 0.0
  %2609 = vmatpush2.msra.mxu0 0.0
  %2610 = vmatprep.subr.mxu0 0.0
  %2611 = vmatpush2.msra.mxu0 0.0
  %2612 = vmatprep.subr.mxu0 0.0
  %2613 = vmatpush2.msra.mxu0 0.0
  %2614 = vmatprep.subr.mxu0 0.0
  %2615 = vmatpush2.msra.mxu0 0.0
  %2616 = vmatprep.subr.mxu0 0.0
  %2617 = vmatpush2.msra.mxu0 0.0
  %2618 = vmatprep.subr.mxu0 0.0
  %2619 = vmatpush2.msra.mxu0 0.0
  %2620 = vmatprep.subr.mxu0 0.0
  %2621 = vmatpush2.msra.mxu0 0.0
  %2622 = vmatprep.mubr.f32.mxu0 0.0
  %2623 = vmatmul.mubr.f32.gmra.mxu0 %v2556
  %v2624 = vpop.f32.mrf.mxu0
  %v2625 = vadd.f32 0.0, %v2624
  %v2626 = vpop.f32.mrf.mxu0
  %v2627 = vadd.f32 0.0, %v2626
  %2628 = vdwg.mxu0
  %2629 = vmatprep.subr.mxu0 0.0
  %2630 = vmatpush1.msra.mxu0 0.0
  %2631 = vmatprep.subr.mxu0 0.0
  %2632 = vmatpush1.msra.mxu0 0.0
  %2633 = vmatprep.subr.mxu0 0.0
  %2634 = vmatpush1.msra.mxu0 0.0
  %2635 = vmatprep.subr.mxu0 0.0
  %2636 = vmatpush1.msra.mxu0 0.0
  %2637 = vmatprep.subr.mxu0 0.0
  %2638 = vmatpush1.msra.mxu0 0.0
  %2639 = vmatprep.subr.mxu0 0.0
  %2640 = vmatpush1.msra.mxu0 0.0
  %2641 = vmatprep.subr.mxu0 0.0
  %2642 = vmatpush1.msra.mxu0 0.0
  %2643 = vmatprep.subr.mxu0 0.0
  %2644 = vmatpush1.msra.mxu0 0.0
  %2645 = vmatprep.subr.mxu0 0.0
  %2646 = vmatpush1.msra.mxu0 0.0
  %2647 = vmatprep.subr.mxu0 0.0
  %2648 = vmatpush1.msra.mxu0 0.0
  %2649 = vmatprep.subr.mxu0 0.0
  %2650 = vmatpush1.msra.mxu0 0.0
  %2651 = vmatprep.subr.mxu0 0.0
  %2652 = vmatpush1.msra.mxu0 0.0
  %2653 = vmatprep.subr.mxu0 0.0
  %2654 = vmatpush1.msra.mxu0 0.0
  %2655 = vmatprep.subr.mxu0 0.0
  %2656 = vmatpush1.msra.mxu0 0.0
  %2657 = vmatprep.subr.mxu0 0.0
  %2658 = vmatpush1.msra.mxu0 0.0
  %2659 = vmatprep.subr.mxu0 0.0
  %2660 = vmatpush1.msra.mxu0 %v2549
  %2661 = vmatprep.subr.mxu0 0.0
  %2662 = vmatpush2.msra.mxu0 0.0
  %2663 = vmatprep.subr.mxu0 0.0
  %2664 = vmatpush2.msra.mxu0 0.0
  %2665 = vmatprep.subr.mxu0 0.0
  %2666 = vmatpush2.msra.mxu0 0.0
  %2667 = vmatprep.subr.mxu0 0.0
  %2668 = vmatpush2.msra.mxu0 0.0
  %2669 = vmatprep.subr.mxu0 0.0
  %2670 = vmatpush2.msra.mxu0 0.0
  %2671 = vmatprep.subr.mxu0 0.0
  %2672 = vmatpush2.msra.mxu0 0.0
  %2673 = vmatprep.subr.mxu0 0.0
  %2674 = vmatpush2.msra.mxu0 0.0
  %2675 = vmatprep.subr.mxu0 0.0
  %2676 = vmatpush2.msra.mxu0 0.0
  %2677 = vmatprep.subr.mxu0 0.0
  %2678 = vmatpush2.msra.mxu0 0.0
  %2679 = vmatprep.subr.mxu0 0.0
  %2680 = vmatpush2.msra.mxu0 0.0
  %2681 = vmatprep.subr.mxu0 0.0
  %2682 = vmatpush2.msra.mxu0 0.0
  %2683 = vmatprep.subr.mxu0 0.0
  %2684 = vmatpush2.msra.mxu0 0.0
  %2685 = vmatprep.subr.mxu0 0.0
  %2686 = vmatpush2.msra.mxu0 0.0
  %2687 = vmatprep.subr.mxu0 0.0
  %2688 = vmatpush2.msra.mxu0 0.0
  %2689 = vmatprep.subr.mxu0 0.0
  %2690 = vmatpush2.msra.mxu0 0.0
  %2691 = vmatprep.subr.mxu0 0.0
  %2692 = vmatpush2.msra.mxu0 0.0
  %2693 = vmatprep.mubr.f32.mxu0 0.0
  %2694 = vmatmul.mubr.f32.gmra.mxu0 %v2556
  %v2695 = vpop.f32.mrf.mxu0
  %v2696 = vadd.f32 0.0, %v2695
  %v2697 = vpop.f32.mrf.mxu0
  %2698 = vdwg.mxu0
  %v2699 = vadd.f32 %v2539, %v2625
  %v2700 = vadd.f32 %v2540, %v2627
  %v2701 = vadd.f32 %v2541, %v2696
  %s2702 = scalar_lea.vmem %s2, 56
  %v2703 = vld [vmem:[%s2702] sm:$0xff]
  %2704 = vrot.lane.b32.xlu0 %v1593, 103
  %v2705 = vpop.permute.xlu0 %2704
  %2706 = vrot.lane.b32.xlu0 %v1594, 103
  %v2707 = vpop.permute.xlu0 %2706
  %2708 = vrot.lane.b32.xlu0 %v1595, 103
  %v2709 = vpop.permute.xlu0 %2708
  %v2710 = vsel %vm1206, %v2705, %v2707
  %v2711 = vsel %vm1206, %v2707, %v2709
  %v2716 = vsel %vm1613, %v2703, 0
  %2718 = vmatprep.subr.mxu0 0.0
  %2719 = vmatpush1.msra.mxu0 0.0
  %2720 = vmatprep.subr.mxu0 0.0
  %2721 = vmatpush1.msra.mxu0 0.0
  %2722 = vmatprep.subr.mxu0 0.0
  %2723 = vmatpush1.msra.mxu0 0.0
  %2724 = vmatprep.subr.mxu0 0.0
  %2725 = vmatpush1.msra.mxu0 0.0
  %2726 = vmatprep.subr.mxu0 0.0
  %2727 = vmatpush1.msra.mxu0 0.0
  %2728 = vmatprep.subr.mxu0 0.0
  %2729 = vmatpush1.msra.mxu0 0.0
  %2730 = vmatprep.subr.mxu0 0.0
  %2731 = vmatpush1.msra.mxu0 0.0
  %2732 = vmatprep.subr.mxu0 0.0
  %2733 = vmatpush1.msra.mxu0 0.0
  %2734 = vmatprep.subr.mxu0 0.0
  %2735 = vmatpush1.msra.mxu0 0.0
  %2736 = vmatprep.subr.mxu0 0.0
  %2737 = vmatpush1.msra.mxu0 0.0
  %2738 = vmatprep.subr.mxu0 0.0
  %2739 = vmatpush1.msra.mxu0 0.0
  %2740 = vmatprep.subr.mxu0 0.0
  %2741 = vmatpush1.msra.mxu0 0.0
  %2742 = vmatprep.subr.mxu0 0.0
  %2743 = vmatpush1.msra.mxu0 0.0
  %2744 = vmatprep.subr.mxu0 0.0
  %2745 = vmatpush1.msra.mxu0 0.0
  %2746 = vmatprep.subr.mxu0 0.0
  %2747 = vmatpush1.msra.mxu0 0.0
  %2748 = vmatprep.subr.mxu0 %v2711
  %2749 = vmatpush1.msra.mxu0 %v2710
  %2750 = vmatprep.subr.mxu0 0.0
  %2751 = vmatpush2.msra.mxu0 0.0
  %2752 = vmatprep.subr.mxu0 0.0
  %2753 = vmatpush2.msra.mxu0 0.0
  %2754 = vmatprep.subr.mxu0 0.0
  %2755 = vmatpush2.msra.mxu0 0.0
  %2756 = vmatprep.subr.mxu0 0.0
  %2757 = vmatpush2.msra.mxu0 0.0
  %2758 = vmatprep.subr.mxu0 0.0
  %2759 = vmatpush2.msra.mxu0 0.0
  %2760 = vmatprep.subr.mxu0 0.0
  %2761 = vmatpush2.msra.mxu0 0.0
  %2762 = vmatprep.subr.mxu0 0.0
  %2763 = vmatpush2.msra.mxu0 0.0
  %2764 = vmatprep.subr.mxu0 0.0
  %2765 = vmatpush2.msra.mxu0 0.0
  %2766 = vmatprep.subr.mxu0 0.0
  %2767 = vmatpush2.msra.mxu0 0.0
  %2768 = vmatprep.subr.mxu0 0.0
  %2769 = vmatpush2.msra.mxu0 0.0
  %2770 = vmatprep.subr.mxu0 0.0
  %2771 = vmatpush2.msra.mxu0 0.0
  %2772 = vmatprep.subr.mxu0 0.0
  %2773 = vmatpush2.msra.mxu0 0.0
  %2774 = vmatprep.subr.mxu0 0.0
  %2775 = vmatpush2.msra.mxu0 0.0
  %2776 = vmatprep.subr.mxu0 0.0
  %2777 = vmatpush2.msra.mxu0 0.0
  %2778 = vmatprep.subr.mxu0 0.0
  %2779 = vmatpush2.msra.mxu0 0.0
  %2780 = vmatprep.subr.mxu0 0.0
  %2781 = vmatpush2.msra.mxu0 0.0
  %2782 = vmatprep.mubr.f32.mxu0 0.0
  %2783 = vmatmul.mubr.f32.gmra.mxu0 %v2716
  %v2784 = vpop.f32.mrf.mxu0
  %v2785 = vadd.f32 0.0, %v2784
  %v2786 = vpop.f32.mrf.mxu0
  %v2787 = vadd.f32 0.0, %v2786
  %2788 = vdwg.mxu0
  %2789 = vmatprep.subr.mxu0 0.0
  %2790 = vmatpush1.msra.mxu0 0.0
  %2791 = vmatprep.subr.mxu0 0.0
  %2792 = vmatpush1.msra.mxu0 0.0
  %2793 = vmatprep.subr.mxu0 0.0
  %2794 = vmatpush1.msra.mxu0 0.0
  %2795 = vmatprep.subr.mxu0 0.0
  %2796 = vmatpush1.msra.mxu0 0.0
  %2797 = vmatprep.subr.mxu0 0.0
  %2798 = vmatpush1.msra.mxu0 0.0
  %2799 = vmatprep.subr.mxu0 0.0
  %2800 = vmatpush1.msra.mxu0 0.0
  %2801 = vmatprep.subr.mxu0 0.0
  %2802 = vmatpush1.msra.mxu0 0.0
  %2803 = vmatprep.subr.mxu0 0.0
  %2804 = vmatpush1.msra.mxu0 0.0
  %2805 = vmatprep.subr.mxu0 0.0
  %2806 = vmatpush1.msra.mxu0 0.0
  %2807 = vmatprep.subr.mxu0 0.0
  %2808 = vmatpush1.msra.mxu0 0.0
  %2809 = vmatprep.subr.mxu0 0.0
  %2810 = vmatpush1.msra.mxu0 0.0
  %2811 = vmatprep.subr.mxu0 0.0
  %2812 = vmatpush1.msra.mxu0 0.0
  %2813 = vmatprep.subr.mxu0 0.0
  %2814 = vmatpush1.msra.mxu0 0.0
  %2815 = vmatprep.subr.mxu0 0.0
  %2816 = vmatpush1.msra.mxu0 0.0
  %2817 = vmatprep.subr.mxu0 0.0
  %2818 = vmatpush1.msra.mxu0 0.0
  %2819 = vmatprep.subr.mxu0 0.0
  %2820 = vmatpush1.msra.mxu0 %v2709
  %2821 = vmatprep.subr.mxu0 0.0
  %2822 = vmatpush2.msra.mxu0 0.0
  %2823 = vmatprep.subr.mxu0 0.0
  %2824 = vmatpush2.msra.mxu0 0.0
  %2825 = vmatprep.subr.mxu0 0.0
  %2826 = vmatpush2.msra.mxu0 0.0
  %2827 = vmatprep.subr.mxu0 0.0
  %2828 = vmatpush2.msra.mxu0 0.0
  %2829 = vmatprep.subr.mxu0 0.0
  %2830 = vmatpush2.msra.mxu0 0.0
  %2831 = vmatprep.subr.mxu0 0.0
  %2832 = vmatpush2.msra.mxu0 0.0
  %2833 = vmatprep.subr.mxu0 0.0
  %2834 = vmatpush2.msra.mxu0 0.0
  %2835 = vmatprep.subr.mxu0 0.0
  %2836 = vmatpush2.msra.mxu0 0.0
  %2837 = vmatprep.subr.mxu0 0.0
  %2838 = vmatpush2.msra.mxu0 0.0
  %2839 = vmatprep.subr.mxu0 0.0
  %2840 = vmatpush2.msra.mxu0 0.0
  %2841 = vmatprep.subr.mxu0 0.0
  %2842 = vmatpush2.msra.mxu0 0.0
  %2843 = vmatprep.subr.mxu0 0.0
  %2844 = vmatpush2.msra.mxu0 0.0
  %2845 = vmatprep.subr.mxu0 0.0
  %2846 = vmatpush2.msra.mxu0 0.0
  %2847 = vmatprep.subr.mxu0 0.0
  %2848 = vmatpush2.msra.mxu0 0.0
  %2849 = vmatprep.subr.mxu0 0.0
  %2850 = vmatpush2.msra.mxu0 0.0
  %2851 = vmatprep.subr.mxu0 0.0
  %2852 = vmatpush2.msra.mxu0 0.0
  %2853 = vmatprep.mubr.f32.mxu0 0.0
  %2854 = vmatmul.mubr.f32.gmra.mxu0 %v2716
  %v2855 = vpop.f32.mrf.mxu0
  %v2856 = vadd.f32 0.0, %v2855
  %v2857 = vpop.f32.mrf.mxu0
  %2858 = vdwg.mxu0
  %v2859 = vadd.f32 %v2699, %v2785
  %v2860 = vadd.f32 %v2700, %v2787
  %v2861 = vadd.f32 %v2701, %v2856
  %s2862 = scalar_lea.vmem %s2, 64
  %v2863 = vld [vmem:[%s2862] sm:$0xff]
  %2864 = vrot.lane.b32.xlu0 %v1593, 102
  %v2865 = vpop.permute.xlu0 %2864
  %2866 = vrot.lane.b32.xlu0 %v1594, 102
  %v2867 = vpop.permute.xlu0 %2866
  %2868 = vrot.lane.b32.xlu0 %v1595, 102
  %v2869 = vpop.permute.xlu0 %2868
  %v2870 = vsel %vm1375, %v2865, %v2867
  %v2871 = vsel %vm1375, %v2867, %v2869
  %v2876 = vsel %vm1613, %v2863, 0
  %2878 = vmatprep.subr.mxu0 0.0
  %2879 = vmatpush1.msra.mxu0 0.0
  %2880 = vmatprep.subr.mxu0 0.0
  %2881 = vmatpush1.msra.mxu0 0.0
  %2882 = vmatprep.subr.mxu0 0.0
  %2883 = vmatpush1.msra.mxu0 0.0
  %2884 = vmatprep.subr.mxu0 0.0
  %2885 = vmatpush1.msra.mxu0 0.0
  %2886 = vmatprep.subr.mxu0 0.0
  %2887 = vmatpush1.msra.mxu0 0.0
  %2888 = vmatprep.subr.mxu0 0.0
  %2889 = vmatpush1.msra.mxu0 0.0
  %2890 = vmatprep.subr.mxu0 0.0
  %2891 = vmatpush1.msra.mxu0 0.0
  %2892 = vmatprep.subr.mxu0 0.0
  %2893 = vmatpush1.msra.mxu0 0.0
  %2894 = vmatprep.subr.mxu0 0.0
  %2895 = vmatpush1.msra.mxu0 0.0
  %2896 = vmatprep.subr.mxu0 0.0
  %2897 = vmatpush1.msra.mxu0 0.0
  %2898 = vmatprep.subr.mxu0 0.0
  %2899 = vmatpush1.msra.mxu0 0.0
  %2900 = vmatprep.subr.mxu0 0.0
  %2901 = vmatpush1.msra.mxu0 0.0
  %2902 = vmatprep.subr.mxu0 0.0
  %2903 = vmatpush1.msra.mxu0 0.0
  %2904 = vmatprep.subr.mxu0 0.0
  %2905 = vmatpush1.msra.mxu0 0.0
  %2906 = vmatprep.subr.mxu0 0.0
  %2907 = vmatpush1.msra.mxu0 0.0
  %2908 = vmatprep.subr.mxu0 %v2871
  %2909 = vmatpush1.msra.mxu0 %v2870
  %2910 = vmatprep.subr.mxu0 0.0
  %2911 = vmatpush2.msra.mxu0 0.0
  %2912 = vmatprep.subr.mxu0 0.0
  %2913 = vmatpush2.msra.mxu0 0.0
  %2914 = vmatprep.subr.mxu0 0.0
  %2915 = vmatpush2.msra.mxu0 0.0
  %2916 = vmatprep.subr.mxu0 0.0
  %2917 = vmatpush2.msra.mxu0 0.0
  %2918 = vmatprep.subr.mxu0 0.0
  %2919 = vmatpush2.msra.mxu0 0.0
  %2920 = vmatprep.subr.mxu0 0.0
  %2921 = vmatpush2.msra.mxu0 0.0
  %2922 = vmatprep.subr.mxu0 0.0
  %2923 = vmatpush2.msra.mxu0 0.0
  %2924 = vmatprep.subr.mxu0 0.0
  %2925 = vmatpush2.msra.mxu0 0.0
  %2926 = vmatprep.subr.mxu0 0.0
  %2927 = vmatpush2.msra.mxu0 0.0
  %2928 = vmatprep.subr.mxu0 0.0
  %2929 = vmatpush2.msra.mxu0 0.0
  %2930 = vmatprep.subr.mxu0 0.0
  %2931 = vmatpush2.msra.mxu0 0.0
  %2932 = vmatprep.subr.mxu0 0.0
  %2933 = vmatpush2.msra.mxu0 0.0
  %2934 = vmatprep.subr.mxu0 0.0
  %2935 = vmatpush2.msra.mxu0 0.0
  %2936 = vmatprep.subr.mxu0 0.0
  %2937 = vmatpush2.msra.mxu0 0.0
  %2938 = vmatprep.subr.mxu0 0.0
  %2939 = vmatpush2.msra.mxu0 0.0
  %2940 = vmatprep.subr.mxu0 0.0
  %2941 = vmatpush2.msra.mxu0 0.0
  %2942 = vmatprep.mubr.f32.mxu0 0.0
  %2943 = vmatmul.mubr.f32.gmra.mxu0 %v2876
  %v2944 = vpop.f32.mrf.mxu0
  %v2945 = vadd.f32 0.0, %v2944
  %v2946 = vpop.f32.mrf.mxu0
  %v2947 = vadd.f32 0.0, %v2946
  %2948 = vdwg.mxu0
  %2949 = vmatprep.subr.mxu0 0.0
  %2950 = vmatpush1.msra.mxu0 0.0
  %2951 = vmatprep.subr.mxu0 0.0
  %2952 = vmatpush1.msra.mxu0 0.0
  %2953 = vmatprep.subr.mxu0 0.0
  %2954 = vmatpush1.msra.mxu0 0.0
  %2955 = vmatprep.subr.mxu0 0.0
  %2956 = vmatpush1.msra.mxu0 0.0
  %2957 = vmatprep.subr.mxu0 0.0
  %2958 = vmatpush1.msra.mxu0 0.0
  %2959 = vmatprep.subr.mxu0 0.0
  %2960 = vmatpush1.msra.mxu0 0.0
  %2961 = vmatprep.subr.mxu0 0.0
  %2962 = vmatpush1.msra.mxu0 0.0
  %2963 = vmatprep.subr.mxu0 0.0
  %2964 = vmatpush1.msra.mxu0 0.0
  %2965 = vmatprep.subr.mxu0 0.0
  %2966 = vmatpush1.msra.mxu0 0.0
  %2967 = vmatprep.subr.mxu0 0.0
  %2968 = vmatpush1.msra.mxu0 0.0
  %2969 = vmatprep.subr.mxu0 0.0
  %2970 = vmatpush1.msra.mxu0 0.0
  %2971 = vmatprep.subr.mxu0 0.0
  %2972 = vmatpush1.msra.mxu0 0.0
  %2973 = vmatprep.subr.mxu0 0.0
  %2974 = vmatpush1.msra.mxu0 0.0
  %2975 = vmatprep.subr.mxu0 0.0
  %2976 = vmatpush1.msra.mxu0 0.0
  %2977 = vmatprep.subr.mxu0 0.0
  %2978 = vmatpush1.msra.mxu0 0.0
  %2979 = vmatprep.subr.mxu0 0.0
  %2980 = vmatpush1.msra.mxu0 %v2869
  %2981 = vmatprep.subr.mxu0 0.0
  %2982 = vmatpush2.msra.mxu0 0.0
  %2983 = vmatprep.subr.mxu0 0.0
  %2984 = vmatpush2.msra.mxu0 0.0
  %2985 = vmatprep.subr.mxu0 0.0
  %2986 = vmatpush2.msra.mxu0 0.0
  %2987 = vmatprep.subr.mxu0 0.0
  %2988 = vmatpush2.msra.mxu0 0.0
  %2989 = vmatprep.subr.mxu0 0.0
  %2990 = vmatpush2.msra.mxu0 0.0
  %2991 = vmatprep.subr.mxu0 0.0
  %2992 = vmatpush2.msra.mxu0 0.0
  %2993 = vmatprep.subr.mxu0 0.0
  %2994 = vmatpush2.msra.mxu0 0.0
  %2995 = vmatprep.subr.mxu0 0.0
  %2996 = vmatpush2.msra.mxu0 0.0
  %2997 = vmatprep.subr.mxu0 0.0
  %2998 = vmatpush2.msra.mxu0 0.0
  %2999 = vmatprep.subr.mxu0 0.0
  %3000 = vmatpush2.msra.mxu0 0.0
  %3001 = vmatprep.subr.mxu0 0.0
  %3002 = vmatpush2.msra.mxu0 0.0
  %3003 = vmatprep.subr.mxu0 0.0
  %3004 = vmatpush2.msra.mxu0 0.0
  %3005 = vmatprep.subr.mxu0 0.0
  %3006 = vmatpush2.msra.mxu0 0.0
  %3007 = vmatprep.subr.mxu0 0.0
  %3008 = vmatpush2.msra.mxu0 0.0
  %3009 = vmatprep.subr.mxu0 0.0
  %3010 = vmatpush2.msra.mxu0 0.0
  %3011 = vmatprep.subr.mxu0 0.0
  %3012 = vmatpush2.msra.mxu0 0.0
  %3013 = vmatprep.mubr.f32.mxu0 0.0
  %3014 = vmatmul.mubr.f32.gmra.mxu0 %v2876
  %v3015 = vpop.f32.mrf.mxu0
  %v3016 = vadd.f32 0.0, %v3015
  %v3017 = vpop.f32.mrf.mxu0
  %3018 = vdwg.mxu0
  %v3019 = vadd.f32 %v2859, %v2945
  %v3020 = vadd.f32 %v2860, %v2947
  %v3021 = vadd.f32 %v2861, %v3016
  %3022 = vrot.lane.b32.xlu0 %v1531, 106
  %v3023 = vpop.permute.xlu0 %3022
  %v3024 = vrot.slane %v3023, 1
  %vm3025 = vcmask 867328
  %v3026 = vsel %vm3025, %v3023, %v3024
  %v3028 = vmul.f32 %v1531, %v3026
  %v3030 = vlaneseq
  %v3031 = vshrl.u32 %v3030, 7
  %v3032 = vsub.s32 0, %v3031
  %v3033 = vrot.slane %v3028, %v3032
  %v3034 = vlaneseq
  %v3035 = vshrl.u32 %v3034, 7
  %v3036 = vsub.s32 1, %v3035
  %v3037 = vrot.slane %v3028, %v3036
  %v3038 = vlaneseq
  %v3039 = vshrl.u32 %v3038, 7
  %v3040 = vsub.s32 2, %v3039
  %v3041 = vrot.slane %v3028, %v3040
  %3042 = vrot.lane.b32.xlu0 %v3033, 126
  %v3043 = vpop.permute.xlu0 %3042
  %3044 = vrot.lane.b32.xlu0 %v3037, 126
  %v3045 = vpop.permute.xlu0 %3044
  %3046 = vrot.lane.b32.xlu0 %v3041, 126
  %v3047 = vpop.permute.xlu0 %3046
  %v3048 = vsel %vm361, %v3043, %v3045
  %v3049 = vsel %vm361, %v3045, %v3047
  %v3053 = vmul.f32 %v3019, %v3048
  %v3054 = vmul.f32 %v3020, %v3049
  %v3055 = vmul.f32 %v3021, %v3047
  %v3056 = vadd.f32 %v3053, %v3054
  %vm3057 = vcmask 261120
  %v3058 = vsel %vm3057, %v3055, 0.0
  %v3059 = vadd.f32 %v3056, %v3058
  %3060 = vadd.xlane.f32.xlu0 %v3059
  %v3061 = vpop.xlane.xlu0 %3060
  %v3062 = vmul.f32 %v3061, 0.0078125
  %v3063 = vmul.f32 %v3053, %v3019
  %v3064 = vmul.f32 %v3054, %v3020
  %v3065 = vmul.f32 %v3055, %v3021
  %v3066 = vadd.f32 %v3063, %v3064
  %v3067 = vsel %vm3057, %v3065, 0.0
  %v3068 = vadd.f32 %v3066, %v3067
  %3069 = vadd.xlane.f32.xlu0 %v3068
  %v3070 = vpop.xlane.xlu0 %3069
  %v3071 = vmul.f32 %v3070, 0.0078125
  %v3072 = vmul.f32 %v3062, %v3062
  %v3073 = vsub.f32 %v3071, %v3072
  %v3074 = vmax.f32 %v3073, 0.0
  %v3075 = vadd.f32 %v3074, 1e-05
  %v3076 = vrsqrt.pop %v3075
  %v3077 = vld [vmem:[%s5] sm:$0xff]
  %v3078 = vmul.f32 %v3076, %v3077
  %v3079 = vld [vmem:[%s6] sm:$0xff]
  %v3080 = vmul.f32 %v3062, %v3078
  %v3081 = vsub.f32 %v3079, %v3080
  %3083 = vset.pattern.permute.xlu0 0
  %3084 = vperm.xlu0 %3083, %v3078
  %v3085 = vpop.permute.xlu0 %3084
  %v3087 = vmul.f32 %v3019, %v3085
  %v3088 = vmul.f32 %v3020, %v3085
  %v3089 = vmul.f32 %v3021, %v3085
  %3091 = vset.pattern.permute.xlu0 0
  %3092 = vperm.xlu0 %3091, %v3081
  %v3093 = vpop.permute.xlu0 %3092
  %v3095 = vadd.f32 %v3087, %v3093
  %v3096 = vadd.f32 %v3088, %v3093
  %v3097 = vadd.f32 %v3089, %v3093
  %v3098 = vmax.f32 %v3095, 0.0
  %v3099 = vmax.f32 %v3096, 0.0
  %v3100 = vmax.f32 %v3097, 0.0
  %3101 = vst [vmem:[%s8] sm:$0xff] %v3098
  %3102 = vst [vmem:[%s8 + $0x8] sm:$0xff] %v3099
  %3103 = vst.msk [vmem:[%s8 + $0x10] sm:$0xff] %vm3057, %v3100
  // Predicated region
  $region34: #{down_dc_forward.1} parent=0 // pred_check
    _
  $region35: #{down_dc_forward.1} parent=0 // pred_check_branch
    %3105 = sbr.rel (0) target = $region37
  $region36: #{down_dc_forward.1} parent=0 // pred_region
    _
  $region37: #{down_dc_forward.1} parent=0 // pred_fallthru
    _
  // Predicated region
  $region38: #{down_dc_forward.1} parent=0 // pred_check
    _
  $region39: #{down_dc_forward.1} parent=0 // pred_check_branch
    %3107 = sbr.rel (0) target = $region41
  $region40: #{down_dc_forward.1} parent=0 // pred_region
    _
  $region41: #{down_dc_forward.1} parent=0 // pred_fallthru
    _

</llo_original>
